<compile_context>
chip_gen: v7x
topology: tpu7x:2x2x1
jax: 0.10.0
libtpu: 0.0.40
codegen_flags: <defaults>
</compile_context>

<pallas_src>
import functools

import jax
import jax.numpy as jnp
from jax.experimental import pallas as pl
from jax.experimental.pallas import tpu as pltpu

# ---------------- small synthetic CLIP-ViT config ----------------
B = 2                 # batch
C = 3                 # image channels (NCHW input, like PyTorch)
IMG = 16              # image height = width
PATCH = 4             # patch size
GRIDP = IMG // PATCH
NUM_PATCHES = GRIDP * GRIDP      # 16
SEQ = NUM_PATCHES + 1            # 17  (CLS + patches)
SEQ_P = 24                       # SEQ padded to a multiple of 8 sublanes
D = 32                           # hidden width
HEADS = 4
HEAD_DIM = D // HEADS            # 8
MLP = 4 * D                      # 128
LAYERS = 2
PROJ_DIM = 16                    # output embedding dim (model.proj)
PD = C * PATCH * PATCH           # 48  flattened patch dim
LN_EPS = 1e-5
BT = B * SEQ_P                   # 48  packed (batch * padded tokens) rows
NEG_INF = -1e30


def _ln(x, g, b):
    mu = jnp.mean(x, axis=-1, keepdims=True)
    var = jnp.mean((x - mu) ** 2, axis=-1, keepdims=True)
    return (x - mu) * jax.lax.rsqrt(var + LN_EPS) * g + b


# ---------------- fused kernel: one grid step == one transformer layer ----------------
def clip_fused_kernel(
    # resident (constant block index) inputs
    patches_ref, mean_ref, istd_ref, wemb_ref, bemb_ref,
    cls_ref, pos_ref, lnpre_g_ref, lnpre_b_ref,
    # per-layer streamed weight slabs (leading LAYERS axis squeezed away)
    ln1g_ref, ln1b_ref, wqkv_ref, bqkv_ref, wo_ref, bo_ref,
    ln2g_ref, ln2b_ref, w1_ref, b1_ref, w2_ref, b2_ref,
    # head (resident)
    lnpost_g_ref, lnpost_b_ref, proj_ref,
    # output
    out_ref,
    # scratch: residual activations carried across layers
    x_ref,
    *, l2_normalize):
    f32 = jnp.float32
    bf16 = jnp.bfloat16
    l = pl.program_id(0)

    # ---- stage 0: pixel-normalize + patch embed + [CLS|patch|pad] + pos + ln_pre ----
    @pl.when(l == 0)
    def _embed():
        px = patches_ref[...].reshape(B * NUM_PATCHES, PD)
        px = (px - mean_ref[...]) * istd_ref[...]                       # self.normalize
        emb = jnp.dot(px.astype(bf16), wemb_ref[...],
                      preferred_element_type=f32) + bemb_ref[...]       # (B*NP, D)
        emb = emb.reshape(B, NUM_PATCHES, D)
        cls_rows = jnp.broadcast_to(cls_ref[...][None, :, :], (B, 1, D))
        pad = jnp.zeros((B, SEQ_P - SEQ, D), f32)
        tok = jnp.concatenate([cls_rows, emb, pad], axis=1)             # (B, SEQ_P, D)
        tok = tok + pos_ref[...][None, :, :]                            # + positional emb
        x0 = _ln(tok, lnpre_g_ref[...], lnpre_b_ref[...])               # ln_pre
        x_ref[...] = x0.reshape(BT, D)

    # ---- one pre-LN transformer block (runs every grid step on layer l's weights) ----
    x = x_ref[...]                                                      # (BT, D) f32

    # multi-head self-attention: single lane-dense QKV matmul
    h = _ln(x, ln1g_ref[...], ln1b_ref[...])
    qkv = jnp.dot(h.astype(bf16), wqkv_ref[...],
                  preferred_element_type=f32) + bqkv_ref[...]           # (BT, 3D)

    # key-padding mask generated in-kernel (padded tokens SEQ..SEQ_P masked as keys)
    kv_ids = jax.lax.broadcasted_iota(jnp.int32, (1, 1, SEQ_P), 2)
    kmask = jnp.where(kv_ids < SEQ, 0.0, NEG_INF)                       # (1,1,SEQ_P) f32
    scale = HEAD_DIM ** -0.5

    # per-batch, head-batched attention (HEADS is tiny & static -> unrolled).
    # TODO(synk): at real sizes merge heads into the einsum batch dim / a grid axis.
    heads_out = []
    for hh in range(HEADS):
        q = qkv[:, hh * HEAD_DIM:(hh + 1) * HEAD_DIM].reshape(B, SEQ_P, HEAD_DIM)
        k = qkv[:, D + hh * HEAD_DIM:D + (hh + 1) * HEAD_DIM].reshape(B, SEQ_P, HEAD_DIM)
        v = qkv[:, 2 * D + hh * HEAD_DIM:2 * D + (hh + 1) * HEAD_DIM].reshape(B, SEQ_P, HEAD_DIM)
        s = jnp.einsum('bqe,bke->bqk', q.astype(bf16), k.astype(bf16),
                       preferred_element_type=f32) * scale + kmask       # (B, T, T)
        s = s - jnp.max(s, axis=-1, keepdims=True)
        p = jnp.exp(s)
        p = p / jnp.sum(p, axis=-1, keepdims=True)                       # exact softmax
        o = jnp.einsum('bqk,bke->bqe', p.astype(bf16), v.astype(bf16),
                       preferred_element_type=f32)                       # (B, T, Hd)
        heads_out.append(o.reshape(BT, HEAD_DIM))
    o_all = jnp.concatenate(heads_out, axis=-1)                          # (BT, D)

    # single lane-dense output projection
    attn = jnp.dot(o_all.astype(bf16), wo_ref[...],
                   preferred_element_type=f32) + bo_ref[...]
    x = x + attn

    # MLP with QuickGELU
    h2 = _ln(x, ln2g_ref[...], ln2b_ref[...])
    m = jnp.dot(h2.astype(bf16), w1_ref[...],
                preferred_element_type=f32) + b1_ref[...]                # (BT, MLP)
    m = m * (1.0 / (1.0 + jnp.exp(-1.702 * m)))                          # QuickGELU (f32)
    x = x + jnp.dot(m.astype(bf16), w2_ref[...],
                    preferred_element_type=f32) + b2_ref[...]
    x_ref[...] = x

    # ---- final stage: CLS pooling, ln_post, @ proj, optional F.normalize ----
    @pl.when(l == pl.num_programs(0) - 1)
    def _head():
        pooled = x.reshape(B, SEQ_P, D)[:, 0, :]                         # (B, D) CLS rows
        hp = _ln(pooled, lnpost_g_ref[...], lnpost_b_ref[...])
        e = jnp.dot(hp.astype(bf16), proj_ref[...],
                    preferred_element_type=f32)                          # (B, PROJ)
        if l2_normalize:                                                 # F.normalize(dim=-1)
            ss = jnp.sum(e * e, axis=-1, keepdims=True)
            e = e * jax.lax.rsqrt(jnp.maximum(ss, 1e-24))
        out_ref[...] = e


# ---------------- full forward (single pallas_call, grid over layers) ----------------
@functools.partial(jax.jit, static_argnames=("output_normalize",))
def clip_vision_forward(params, x_nchw, output_normalize=False):
    bf16 = jnp.bfloat16

    # patchify NCHW -> (B, num_patches, C*p*p); (C, ph, pw) flattening order matches
    # torch.nn.Conv2d weight flattening (stride-p "conv" patch embed).
    x = x_nchw.reshape(B, C, GRIDP, PATCH, GRIDP, PATCH)
    patches = x.transpose(0, 2, 4, 1, 3, 5).reshape(B, NUM_PATCHES, PD)

    # pad positional embedding rows SEQ..SEQ_P with zeros (padded keys masked in-kernel)
    pos_p = jnp.pad(params["pos"], ((0, SEQ_P - SEQ), (0, 0)))

    inputs = (
        # resident
        patches, params["norm_mean"], params["norm_inv_std"],
        params["w_embed"].astype(bf16), params["b_embed"],
        params["cls"], pos_p, params["ln_pre_g"], params["ln_pre_b"],
        # per-layer streamed (leading LAYERS axis)
        params["ln1_g"], params["ln1_b"],
        params["wqkv"].astype(bf16), params["bqkv"],
        params["wo"].astype(bf16), params["bo"],
        params["ln2_g"], params["ln2_b"],
        params["w1"].astype(bf16), params["b1"],
        params["w2"].astype(bf16), params["b2"],
        # head (resident)
        params["ln_post_g"], params["ln_post_b"], params["proj"].astype(bf16),
    )

    n_resident_pre = 9
    n_layer = 12
    in_specs = []
    for idx, a in enumerate(inputs):
        if n_resident_pre <= idx < n_resident_pre + n_layer:
            # stream one layer slab per grid step (leading LAYERS dim squeezed)
            in_specs.append(pl.BlockSpec((None,) + a.shape[1:], lambda l: (l, 0, 0)))
        else:
            # resident: constant block index -> DMA'd once, stays in VMEM
            in_specs.append(pl.BlockSpec(a.shape, lambda l, nd=a.ndim: (0,) * nd))

    kernel = functools.partial(clip_fused_kernel, l2_normalize=output_normalize)
    return pl.pallas_call(
        kernel,
        out_shape=jax.ShapeDtypeStruct((B, PROJ_DIM), jnp.float32),
        grid=(LAYERS,),
        in_specs=in_specs,
        out_specs=pl.BlockSpec((B, PROJ_DIM), lambda l: (0, 0)),
        scratch_shapes=[pltpu.VMEM((BT, D), jnp.float32)],
        compiler_params=pltpu.CompilerParams(
            dimension_semantics=("arbitrary",),          # layers are sequential
            vmem_limit_bytes=32 * 1024 * 1024,           # raise further for real sizes
        ),
    )(*inputs)


# ---------------- deterministic parameter init ----------------
def init_params(key):
    ks = iter(jax.random.split(key, 32))

    def nrm(shape, scale=0.05):
        return scale * jax.random.normal(next(ks), shape, dtype=jnp.float32)

    mean_c = jnp.array([0.48145466, 0.4578275, 0.40821073], jnp.float32)
    std_c = jnp.array([0.26862954, 0.26130258, 0.27577711], jnp.float32)

    return {
        "norm_mean": jnp.repeat(mean_c, PATCH * PATCH)[None, :],
        "norm_inv_std": (1.0 / jnp.repeat(std_c, PATCH * PATCH))[None, :],
        "w_embed": nrm((PD, D)),
        "b_embed": jnp.zeros((1, D), jnp.float32),
        "cls": nrm((1, D)),
        "pos": nrm((SEQ, D)),
        "ln_pre_g": jnp.ones((1, D), jnp.float32),
        "ln_pre_b": jnp.zeros((1, D), jnp.float32),
        # stacked per-layer params (leading LAYERS axis)
        "ln1_g": jnp.ones((LAYERS, 1, D), jnp.float32),
        "ln1_b": jnp.zeros((LAYERS, 1, D), jnp.float32),
        "wqkv": nrm((LAYERS, D, 3 * D)),
        "bqkv": jnp.zeros((LAYERS, 1, 3 * D), jnp.float32),
        "wo": nrm((LAYERS, D, D)),
        "bo": jnp.zeros((LAYERS, 1, D), jnp.float32),
        "ln2_g": jnp.ones((LAYERS, 1, D), jnp.float32),
        "ln2_b": jnp.zeros((LAYERS, 1, D), jnp.float32),
        "w1": nrm((LAYERS, D, MLP)),
        "b1": jnp.zeros((LAYERS, 1, MLP), jnp.float32),
        "w2": nrm((LAYERS, MLP, D)),
        "b2": jnp.zeros((LAYERS, 1, D), jnp.float32),
        "ln_post_g": jnp.ones((1, D), jnp.float32),
        "ln_post_b": jnp.zeros((1, D), jnp.float32),
        "proj": nrm((D, PROJ_DIM)),
    }


if __name__ == "__main__":
    key = jax.random.PRNGKey(0)
    pkey, xkey = jax.random.split(key)
    params = init_params(pkey)

    # NCHW image input, like the PyTorch module's `vision_`
    x = jax.random.uniform(xkey, (B, C, IMG, IMG), dtype=jnp.float32)

    out = jax.block_until_ready(clip_vision_forward(params, x, output_normalize=False))
    assert out.shape == (B, PROJ_DIM) and out.dtype == jnp.float32
    assert bool(jnp.all(jnp.isfinite(out)))

    # also exercise the output_normalize=True branch (F.normalize(dim=-1))
    out_n = jax.block_until_ready(clip_vision_forward(params, x, output_normalize=True))
    assert out_n.shape == (B, PROJ_DIM)
    assert bool(jnp.all(jnp.isfinite(out_n)))

    print("KERNEL_OK")
</pallas_src>

<mosaic_0001>
module attributes {stable_mosaic.version = 11 : i64} {
  func.func @clip_fused_kernel(%arg0: i32, %arg1: memref<2x16x48xf32, #tpu.memory_space<vmem>>, %arg2: memref<1x48xf32, #tpu.memory_space<vmem>>, %arg3: memref<1x48xf32, #tpu.memory_space<vmem>>, %arg4: memref<48x32xbf16, #tpu.memory_space<vmem>>, %arg5: memref<1x32xf32, #tpu.memory_space<vmem>>, %arg6: memref<1x32xf32, #tpu.memory_space<vmem>>, %arg7: memref<24x32xf32, #tpu.memory_space<vmem>>, %arg8: memref<1x32xf32, #tpu.memory_space<vmem>>, %arg9: memref<1x32xf32, #tpu.memory_space<vmem>>, %arg10: memref<1x1x32xf32, #tpu.memory_space<vmem>>, %arg11: memref<1x1x32xf32, #tpu.memory_space<vmem>>, %arg12: memref<1x32x96xbf16, #tpu.memory_space<vmem>>, %arg13: memref<1x1x96xf32, #tpu.memory_space<vmem>>, %arg14: memref<1x32x32xbf16, #tpu.memory_space<vmem>>, %arg15: memref<1x1x32xf32, #tpu.memory_space<vmem>>, %arg16: memref<1x1x32xf32, #tpu.memory_space<vmem>>, %arg17: memref<1x1x32xf32, #tpu.memory_space<vmem>>, %arg18: memref<1x32x128xbf16, #tpu.memory_space<vmem>>, %arg19: memref<1x1x128xf32, #tpu.memory_space<vmem>>, %arg20: memref<1x128x32xbf16, #tpu.memory_space<vmem>>, %arg21: memref<1x1x32xf32, #tpu.memory_space<vmem>>, %arg22: memref<1x32xf32, #tpu.memory_space<vmem>>, %arg23: memref<1x32xf32, #tpu.memory_space<vmem>>, %arg24: memref<32x16xbf16, #tpu.memory_space<vmem>>, %arg25: memref<2x16xf32, #tpu.memory_space<vmem>>, %arg26: memref<48x32xf32, #tpu.memory_space<vmem>>) attributes {dimension_semantics = [#tpu.dimension_semantics<arbitrary>], iteration_bounds = array<i64: 2>, scalar_prefetch = 0 : i64, scratch_operands = 1 : i64, tpu.core_type = #tpu.core_type<tc>, window_params = [{pipeline_mode = #tpu.pipeline_mode<synchronous>, transform_indices = @transform_0, window_bounds = array<i64: 2, 16, 48>}, {pipeline_mode = #tpu.pipeline_mode<synchronous>, transform_indices = @transform_1, window_bounds = array<i64: 1, 48>}, {pipeline_mode = #tpu.pipeline_mode<synchronous>, transform_indices = @transform_2, window_bounds = array<i64: 1, 48>}, {pipeline_mode = #tpu.pipeline_mode<synchronous>, transform_indices = @transform_3, window_bounds = array<i64: 48, 32>}, {pipeline_mode = #tpu.pipeline_mode<synchronous>, transform_indices = @transform_4, window_bounds = array<i64: 1, 32>}, {pipeline_mode = #tpu.pipeline_mode<synchronous>, transform_indices = @transform_5, window_bounds = array<i64: 1, 32>}, {pipeline_mode = #tpu.pipeline_mode<synchronous>, transform_indices = @transform_6, window_bounds = array<i64: 24, 32>}, {pipeline_mode = #tpu.pipeline_mode<synchronous>, transform_indices = @transform_7, window_bounds = array<i64: 1, 32>}, {pipeline_mode = #tpu.pipeline_mode<synchronous>, transform_indices = @transform_8, window_bounds = array<i64: 1, 32>}, {transform_indices = @transform_9, window_bounds = array<i64: 1, 1, 32>}, {transform_indices = @transform_10, window_bounds = array<i64: 1, 1, 32>}, {transform_indices = @transform_11, window_bounds = array<i64: 1, 32, 96>}, {transform_indices = @transform_12, window_bounds = array<i64: 1, 1, 96>}, {transform_indices = @transform_13, window_bounds = array<i64: 1, 32, 32>}, {transform_indices = @transform_14, window_bounds = array<i64: 1, 1, 32>}, {transform_indices = @transform_15, window_bounds = array<i64: 1, 1, 32>}, {transform_indices = @transform_16, window_bounds = array<i64: 1, 1, 32>}, {transform_indices = @transform_17, window_bounds = array<i64: 1, 32, 128>}, {transform_indices = @transform_18, window_bounds = array<i64: 1, 1, 128>}, {transform_indices = @transform_19, window_bounds = array<i64: 1, 128, 32>}, {transform_indices = @transform_20, window_bounds = array<i64: 1, 1, 32>}, {pipeline_mode = #tpu.pipeline_mode<synchronous>, transform_indices = @transform_21, window_bounds = array<i64: 1, 32>}, {pipeline_mode = #tpu.pipeline_mode<synchronous>, transform_indices = @transform_22, window_bounds = array<i64: 1, 32>}, {pipeline_mode = #tpu.pipeline_mode<synchronous>, transform_indices = @transform_23, window_bounds = array<i64: 32, 16>}, {pipeline_mode = #tpu.pipeline_mode<synchronous>, transform_indices = @transform_24, window_bounds = array<i64: 2, 16>}]} {
    %c0_i32 = arith.constant 0 : i32
    %0 = arith.cmpi eq, %arg0, %c0_i32 : i32
    %1 = arith.extui %0 : i1 to i32
    %c0_i32_0 = arith.constant 0 : i32
    %2 = arith.cmpi ne, %1, %c0_i32_0 : i32
    scf.if %2 {
      %c0_79 = arith.constant 0 : index
      %c0_80 = arith.constant 0 : index
      %c0_81 = arith.constant 0 : index
      %213 = vector.load %arg1[%c0_79, %c0_80, %c0_81] : memref<2x16x48xf32, #tpu.memory_space<vmem>>, vector<2x16x48xf32>
      %214 = vector.shape_cast %213 : vector<2x16x48xf32> to vector<32x48xf32>
      %c0_82 = arith.constant 0 : index
      %c0_83 = arith.constant 0 : index
      %215 = vector.load %arg2[%c0_82, %c0_83] : memref<1x48xf32, #tpu.memory_space<vmem>>, vector<1x48xf32>
      %216 = vector.broadcast %215 : vector<1x48xf32> to vector<32x48xf32>
      %217 = arith.subf %214, %216 : vector<32x48xf32>
      %c0_84 = arith.constant 0 : index
      %c0_85 = arith.constant 0 : index
      %218 = vector.load %arg3[%c0_84, %c0_85] : memref<1x48xf32, #tpu.memory_space<vmem>>, vector<1x48xf32>
      %219 = vector.broadcast %218 : vector<1x48xf32> to vector<32x48xf32>
      %220 = arith.mulf %217, %219 : vector<32x48xf32>
      %221 = arith.truncf %220 : vector<32x48xf32> to vector<32x48xbf16>
      %c0_86 = arith.constant 0 : index
      %c0_87 = arith.constant 0 : index
      %222 = vector.load %arg4[%c0_86, %c0_87] : memref<48x32xbf16, #tpu.memory_space<vmem>>, vector<48x32xbf16>
      %cst_88 = arith.constant dense<0.000000e+00> : vector<32x32xf32>
      %223 = tpu.matmul %221, %222, %cst_88 {dimension_numbers = #tpu.dot_dimension_numbers<[1], [0], [0], [1], [0, 0, 1, 1], [], []>} : vector<32x48xbf16>, vector<48x32xbf16>, vector<32x32xf32> -> vector<32x32xf32>
      %c0_89 = arith.constant 0 : index
      %c0_90 = arith.constant 0 : index
      %224 = vector.load %arg5[%c0_89, %c0_90] : memref<1x32xf32, #tpu.memory_space<vmem>>, vector<1x32xf32>
      %225 = vector.broadcast %224 : vector<1x32xf32> to vector<32x32xf32>
      %226 = arith.addf %223, %225 : vector<32x32xf32>
      %227 = vector.shape_cast %226 : vector<32x32xf32> to vector<2x16x32xf32>
      %c0_91 = arith.constant 0 : index
      %c0_92 = arith.constant 0 : index
      %228 = vector.load %arg6[%c0_91, %c0_92] : memref<1x32xf32, #tpu.memory_space<vmem>>, vector<1x32xf32>
      %229 = vector.shape_cast %228 : vector<1x32xf32> to vector<1x1x32xf32>
      %230 = vector.shape_cast %229 : vector<1x1x32xf32> to vector<1x1x32xf32>
      %231 = vector.broadcast %230 : vector<1x1x32xf32> to vector<2x1x32xf32>
      %cst_93 = arith.constant 0.000000e+00 : f32
      %232 = vector.broadcast %cst_93 : f32 to vector<2x7x32xf32>
      %233 = tpu.concatenate %231, %227, %232 in 1 : vector<2x1x32xf32>, vector<2x16x32xf32>, vector<2x7x32xf32> -> vector<2x24x32xf32>
      %c0_94 = arith.constant 0 : index
      %c0_95 = arith.constant 0 : index
      %234 = vector.load %arg7[%c0_94, %c0_95] : memref<24x32xf32, #tpu.memory_space<vmem>>, vector<24x32xf32>
      %235 = vector.shape_cast %234 : vector<24x32xf32> to vector<1x24x32xf32>
      %236 = vector.broadcast %235 : vector<1x24x32xf32> to vector<2x24x32xf32>
      %237 = arith.addf %233, %236 : vector<2x24x32xf32>
      %c0_96 = arith.constant 0 : index
      %c0_97 = arith.constant 0 : index
      %238 = vector.load %arg8[%c0_96, %c0_97] : memref<1x32xf32, #tpu.memory_space<vmem>>, vector<1x32xf32>
      %c0_98 = arith.constant 0 : index
      %c0_99 = arith.constant 0 : index
      %239 = vector.load %arg9[%c0_98, %c0_99] : memref<1x32xf32, #tpu.memory_space<vmem>>, vector<1x32xf32>
      %cst_100 = arith.constant dense<0.000000e+00> : vector<2x24xf32>
      %240 = vector.multi_reduction <add>, %237, %cst_100 [2] : vector<2x24x32xf32> to vector<2x24xf32>
      %241 = vector.shape_cast %240 : vector<2x24xf32> to vector<2x24x1xf32>
      %cst_101 = arith.constant 3.200000e+01 : f32
      %242 = vector.broadcast %cst_101 : f32 to vector<2x24x1xf32>
      %243 = arith.divf %241, %242 : vector<2x24x1xf32>
      %244 = vector.broadcast %243 : vector<2x24x1xf32> to vector<2x24x32xf32>
      %245 = arith.subf %237, %244 : vector<2x24x32xf32>
      %246 = arith.mulf %245, %245 : vector<2x24x32xf32>
      %cst_102 = arith.constant dense<0.000000e+00> : vector<2x24xf32>
      %247 = vector.multi_reduction <add>, %246, %cst_102 [2] : vector<2x24x32xf32> to vector<2x24xf32>
      %248 = vector.shape_cast %247 : vector<2x24xf32> to vector<2x24x1xf32>
      %cst_103 = arith.constant 3.200000e+01 : f32
      %249 = vector.broadcast %cst_103 : f32 to vector<2x24x1xf32>
      %250 = arith.divf %248, %249 : vector<2x24x1xf32>
      %251 = vector.broadcast %243 : vector<2x24x1xf32> to vector<2x24x32xf32>
      %252 = arith.subf %237, %251 : vector<2x24x32xf32>
      %cst_104 = arith.constant 9.99999974E-6 : f32
      %253 = vector.broadcast %cst_104 : f32 to vector<2x24x1xf32>
      %254 = arith.addf %250, %253 : vector<2x24x1xf32>
      %255 = math.rsqrt %254 : vector<2x24x1xf32>
      %256 = vector.broadcast %255 : vector<2x24x1xf32> to vector<2x24x32xf32>
      %257 = arith.mulf %252, %256 : vector<2x24x32xf32>
      %258 = vector.shape_cast %238 : vector<1x32xf32> to vector<1x1x32xf32>
      %259 = vector.broadcast %258 : vector<1x1x32xf32> to vector<2x24x32xf32>
      %260 = arith.mulf %257, %259 : vector<2x24x32xf32>
      %261 = vector.shape_cast %239 : vector<1x32xf32> to vector<1x1x32xf32>
      %262 = vector.broadcast %261 : vector<1x1x32xf32> to vector<2x24x32xf32>
      %263 = arith.addf %260, %262 : vector<2x24x32xf32>
      %264 = vector.shape_cast %263 : vector<2x24x32xf32> to vector<48x32xf32>
      %c0_105 = arith.constant 0 : index
      %c0_106 = arith.constant 0 : index
      %265 = vector.load %arg26[%c0_105, %c0_106] : memref<48x32xf32, #tpu.memory_space<vmem>>, vector<48x32xf32>
      tpu.vector_store %arg26[%c0_105, %c0_106], %264 {strides = array<i32>} : memref<48x32xf32, #tpu.memory_space<vmem>>, vector<48x32xf32>,
    } else {
    }
    %c0 = arith.constant 0 : index
    %c0_1 = arith.constant 0 : index
    %3 = vector.load %arg26[%c0, %c0_1] : memref<48x32xf32, #tpu.memory_space<vmem>>, vector<48x32xf32>
    %c0_2 = arith.constant 0 : index
    %c0_3 = arith.constant 0 : index
    %c0_4 = arith.constant 0 : index
    %4 = vector.load %arg10[%c0_2, %c0_3, %c0_4] : memref<1x1x32xf32, #tpu.memory_space<vmem>>, vector<1x1x32xf32>
    %5 = vector.shape_cast %4 : vector<1x1x32xf32> to vector<1x32xf32>
    %c0_5 = arith.constant 0 : index
    %c0_6 = arith.constant 0 : index
    %c0_7 = arith.constant 0 : index
    %6 = vector.load %arg11[%c0_5, %c0_6, %c0_7] : memref<1x1x32xf32, #tpu.memory_space<vmem>>, vector<1x1x32xf32>
    %7 = vector.shape_cast %6 : vector<1x1x32xf32> to vector<1x32xf32>
    %cst = arith.constant dense<0.000000e+00> : vector<48xf32>
    %8 = vector.multi_reduction <add>, %3, %cst [1] : vector<48x32xf32> to vector<48xf32>
    %9 = vector.shape_cast %8 : vector<48xf32> to vector<48x1xf32>
    %cst_8 = arith.constant 3.200000e+01 : f32
    %10 = vector.broadcast %cst_8 : f32 to vector<48x1xf32>
    %11 = arith.divf %9, %10 : vector<48x1xf32>
    %12 = vector.broadcast %11 : vector<48x1xf32> to vector<48x32xf32>
    %13 = arith.subf %3, %12 : vector<48x32xf32>
    %14 = arith.mulf %13, %13 : vector<48x32xf32>
    %cst_9 = arith.constant dense<0.000000e+00> : vector<48xf32>
    %15 = vector.multi_reduction <add>, %14, %cst_9 [1] : vector<48x32xf32> to vector<48xf32>
    %16 = vector.shape_cast %15 : vector<48xf32> to vector<48x1xf32>
    %cst_10 = arith.constant 3.200000e+01 : f32
    %17 = vector.broadcast %cst_10 : f32 to vector<48x1xf32>
    %18 = arith.divf %16, %17 : vector<48x1xf32>
    %19 = vector.broadcast %11 : vector<48x1xf32> to vector<48x32xf32>
    %20 = arith.subf %3, %19 : vector<48x32xf32>
    %cst_11 = arith.constant 9.99999974E-6 : f32
    %21 = vector.broadcast %cst_11 : f32 to vector<48x1xf32>
    %22 = arith.addf %18, %21 : vector<48x1xf32>
    %23 = math.rsqrt %22 : vector<48x1xf32>
    %24 = vector.broadcast %23 : vector<48x1xf32> to vector<48x32xf32>
    %25 = arith.mulf %20, %24 : vector<48x32xf32>
    %26 = vector.broadcast %5 : vector<1x32xf32> to vector<48x32xf32>
    %27 = arith.mulf %25, %26 : vector<48x32xf32>
    %28 = vector.broadcast %7 : vector<1x32xf32> to vector<48x32xf32>
    %29 = arith.addf %27, %28 : vector<48x32xf32>
    %30 = arith.truncf %29 : vector<48x32xf32> to vector<48x32xbf16>
    %c0_12 = arith.constant 0 : index
    %c0_13 = arith.constant 0 : index
    %c0_14 = arith.constant 0 : index
    %31 = vector.load %arg12[%c0_12, %c0_13, %c0_14] : memref<1x32x96xbf16, #tpu.memory_space<vmem>>, vector<1x32x96xbf16>
    %32 = vector.shape_cast %31 : vector<1x32x96xbf16> to vector<32x96xbf16>
    %cst_15 = arith.constant dense<0.000000e+00> : vector<48x96xf32>
    %33 = tpu.matmul %30, %32, %cst_15 {dimension_numbers = #tpu.dot_dimension_numbers<[1], [0], [0], [1], [0, 0, 1, 1], [], []>} : vector<48x32xbf16>, vector<32x96xbf16>, vector<48x96xf32> -> vector<48x96xf32>
    %c0_16 = arith.constant 0 : index
    %c0_17 = arith.constant 0 : index
    %c0_18 = arith.constant 0 : index
    %34 = vector.load %arg13[%c0_16, %c0_17, %c0_18] : memref<1x1x96xf32, #tpu.memory_space<vmem>>, vector<1x1x96xf32>
    %35 = vector.shape_cast %34 : vector<1x1x96xf32> to vector<1x96xf32>
    %36 = vector.broadcast %35 : vector<1x96xf32> to vector<48x96xf32>
    %37 = arith.addf %33, %36 : vector<48x96xf32>
    %38 = tpu.iota {dimensions = array<i32: 2>} : vector<1x1x24xi32>
    %c17_i32 = arith.constant 17 : i32
    %39 = vector.broadcast %c17_i32 : i32 to vector<1x1x24xi32>
    %40 = arith.cmpi slt, %38, %39 : vector<1x1x24xi32>
    %cst_19 = arith.constant 0.000000e+00 : f32
    %cst_20 = arith.constant -1.000000e+30 : f32
    %41 = vector.broadcast %cst_19 : f32 to vector<1x1x24xf32>
    %42 = vector.broadcast %cst_20 : f32 to vector<1x1x24xf32>
    %43 = arith.select %40, %41, %42 : vector<1x1x24xi1>, vector<1x1x24xf32>
    %44 = vector.extract_strided_slice %37 {offsets = [0, 0], sizes = [48, 8], strides = [1, 1]} : vector<48x96xf32> to vector<48x8xf32>
    %45 = vector.shape_cast %44 : vector<48x8xf32> to vector<2x24x8xf32>
    %46 = vector.extract_strided_slice %37 {offsets = [0, 32], sizes = [48, 8], strides = [1, 1]} : vector<48x96xf32> to vector<48x8xf32>
    %47 = vector.shape_cast %46 : vector<48x8xf32> to vector<2x24x8xf32>
    %48 = vector.extract_strided_slice %37 {offsets = [0, 64], sizes = [48, 8], strides = [1, 1]} : vector<48x96xf32> to vector<48x8xf32>
    %49 = vector.shape_cast %48 : vector<48x8xf32> to vector<2x24x8xf32>
    %50 = arith.truncf %45 : vector<2x24x8xf32> to vector<2x24x8xbf16>
    %51 = arith.truncf %47 : vector<2x24x8xf32> to vector<2x24x8xbf16>
    "tpu.trace_start"() <{level = 10 : i32, message = "bqe,bke->bqk"}> : () -> ()
    %cst_21 = arith.constant dense<0.000000e+00> : vector<2x24x24xf32>
    %52 = tpu.matmul %50, %51, %cst_21 {dimension_numbers = #tpu.dot_dimension_numbers<[2], [2], [1], [1], [0, 0, 0, 1, 1, 1], [0], [0]>} : vector<2x24x8xbf16>, vector<2x24x8xbf16>, vector<2x24x24xf32> -> vector<2x24x24xf32>
    "tpu.trace_stop"() : () -> ()
    %cst_22 = arith.constant 0.353553385 : f32
    %53 = vector.broadcast %cst_22 : f32 to vector<2x24x24xf32>
    %54 = arith.mulf %52, %53 : vector<2x24x24xf32>
    %55 = vector.broadcast %43 : vector<1x1x24xf32> to vector<2x24x24xf32>
    %56 = arith.addf %54, %55 : vector<2x24x24xf32>
    %cst_23 = arith.constant dense<0xFF800000> : vector<2x24xf32>
    %57 = vector.multi_reduction <maximumf>, %56, %cst_23 [2] : vector<2x24x24xf32> to vector<2x24xf32>
    %58 = vector.shape_cast %57 : vector<2x24xf32> to vector<2x24x1xf32>
    %59 = vector.broadcast %58 : vector<2x24x1xf32> to vector<2x24x24xf32>
    %60 = arith.subf %56, %59 : vector<2x24x24xf32>
    %61 = math.exp %60 : vector<2x24x24xf32>
    %cst_24 = arith.constant dense<0.000000e+00> : vector<2x24xf32>
    %62 = vector.multi_reduction <add>, %61, %cst_24 [2] : vector<2x24x24xf32> to vector<2x24xf32>
    %63 = vector.shape_cast %62 : vector<2x24xf32> to vector<2x24x1xf32>
    %64 = vector.broadcast %63 : vector<2x24x1xf32> to vector<2x24x24xf32>
    %65 = arith.divf %61, %64 : vector<2x24x24xf32>
    %66 = arith.truncf %65 : vector<2x24x24xf32> to vector<2x24x24xbf16>
    %67 = arith.truncf %49 : vector<2x24x8xf32> to vector<2x24x8xbf16>
    "tpu.trace_start"() <{level = 10 : i32, message = "bqk,bke->bqe"}> : () -> ()
    %cst_25 = arith.constant dense<0.000000e+00> : vector<2x24x8xf32>
    %68 = tpu.matmul %66, %67, %cst_25 {dimension_numbers = #tpu.dot_dimension_numbers<[2], [1], [1], [2], [0, 0, 0, 1, 1, 2], [0], [0]>} : vector<2x24x24xbf16>, vector<2x24x8xbf16>, vector<2x24x8xf32> -> vector<2x24x8xf32>
    "tpu.trace_stop"() : () -> ()
    %69 = vector.shape_cast %68 : vector<2x24x8xf32> to vector<48x8xf32>
    %70 = vector.extract_strided_slice %37 {offsets = [0, 8], sizes = [48, 8], strides = [1, 1]} : vector<48x96xf32> to vector<48x8xf32>
    %71 = vector.shape_cast %70 : vector<48x8xf32> to vector<2x24x8xf32>
    %72 = vector.extract_strided_slice %37 {offsets = [0, 40], sizes = [48, 8], strides = [1, 1]} : vector<48x96xf32> to vector<48x8xf32>
    %73 = vector.shape_cast %72 : vector<48x8xf32> to vector<2x24x8xf32>
    %74 = vector.extract_strided_slice %37 {offsets = [0, 72], sizes = [48, 8], strides = [1, 1]} : vector<48x96xf32> to vector<48x8xf32>
    %75 = vector.shape_cast %74 : vector<48x8xf32> to vector<2x24x8xf32>
    %76 = arith.truncf %71 : vector<2x24x8xf32> to vector<2x24x8xbf16>
    %77 = arith.truncf %73 : vector<2x24x8xf32> to vector<2x24x8xbf16>
    "tpu.trace_start"() <{level = 10 : i32, message = "bqe,bke->bqk"}> : () -> ()
    %cst_26 = arith.constant dense<0.000000e+00> : vector<2x24x24xf32>
    %78 = tpu.matmul %76, %77, %cst_26 {dimension_numbers = #tpu.dot_dimension_numbers<[2], [2], [1], [1], [0, 0, 0, 1, 1, 1], [0], [0]>} : vector<2x24x8xbf16>, vector<2x24x8xbf16>, vector<2x24x24xf32> -> vector<2x24x24xf32>
    "tpu.trace_stop"() : () -> ()
    %cst_27 = arith.constant 0.353553385 : f32
    %79 = vector.broadcast %cst_27 : f32 to vector<2x24x24xf32>
    %80 = arith.mulf %78, %79 : vector<2x24x24xf32>
    %81 = vector.broadcast %43 : vector<1x1x24xf32> to vector<2x24x24xf32>
    %82 = arith.addf %80, %81 : vector<2x24x24xf32>
    %cst_28 = arith.constant dense<0xFF800000> : vector<2x24xf32>
    %83 = vector.multi_reduction <maximumf>, %82, %cst_28 [2] : vector<2x24x24xf32> to vector<2x24xf32>
    %84 = vector.shape_cast %83 : vector<2x24xf32> to vector<2x24x1xf32>
    %85 = vector.broadcast %84 : vector<2x24x1xf32> to vector<2x24x24xf32>
    %86 = arith.subf %82, %85 : vector<2x24x24xf32>
    %87 = math.exp %86 : vector<2x24x24xf32>
    %cst_29 = arith.constant dense<0.000000e+00> : vector<2x24xf32>
    %88 = vector.multi_reduction <add>, %87, %cst_29 [2] : vector<2x24x24xf32> to vector<2x24xf32>
    %89 = vector.shape_cast %88 : vector<2x24xf32> to vector<2x24x1xf32>
    %90 = vector.broadcast %89 : vector<2x24x1xf32> to vector<2x24x24xf32>
    %91 = arith.divf %87, %90 : vector<2x24x24xf32>
    %92 = arith.truncf %91 : vector<2x24x24xf32> to vector<2x24x24xbf16>
    %93 = arith.truncf %75 : vector<2x24x8xf32> to vector<2x24x8xbf16>
    "tpu.trace_start"() <{level = 10 : i32, message = "bqk,bke->bqe"}> : () -> ()
    %cst_30 = arith.constant dense<0.000000e+00> : vector<2x24x8xf32>
    %94 = tpu.matmul %92, %93, %cst_30 {dimension_numbers = #tpu.dot_dimension_numbers<[2], [1], [1], [2], [0, 0, 0, 1, 1, 2], [0], [0]>} : vector<2x24x24xbf16>, vector<2x24x8xbf16>, vector<2x24x8xf32> -> vector<2x24x8xf32>
    "tpu.trace_stop"() : () -> ()
    %95 = vector.shape_cast %94 : vector<2x24x8xf32> to vector<48x8xf32>
    %96 = vector.extract_strided_slice %37 {offsets = [0, 16], sizes = [48, 8], strides = [1, 1]} : vector<48x96xf32> to vector<48x8xf32>
    %97 = vector.shape_cast %96 : vector<48x8xf32> to vector<2x24x8xf32>
    %98 = vector.extract_strided_slice %37 {offsets = [0, 48], sizes = [48, 8], strides = [1, 1]} : vector<48x96xf32> to vector<48x8xf32>
    %99 = vector.shape_cast %98 : vector<48x8xf32> to vector<2x24x8xf32>
    %100 = vector.extract_strided_slice %37 {offsets = [0, 80], sizes = [48, 8], strides = [1, 1]} : vector<48x96xf32> to vector<48x8xf32>
    %101 = vector.shape_cast %100 : vector<48x8xf32> to vector<2x24x8xf32>
    %102 = arith.truncf %97 : vector<2x24x8xf32> to vector<2x24x8xbf16>
    %103 = arith.truncf %99 : vector<2x24x8xf32> to vector<2x24x8xbf16>
    "tpu.trace_start"() <{level = 10 : i32, message = "bqe,bke->bqk"}> : () -> ()
    %cst_31 = arith.constant dense<0.000000e+00> : vector<2x24x24xf32>
    %104 = tpu.matmul %102, %103, %cst_31 {dimension_numbers = #tpu.dot_dimension_numbers<[2], [2], [1], [1], [0, 0, 0, 1, 1, 1], [0], [0]>} : vector<2x24x8xbf16>, vector<2x24x8xbf16>, vector<2x24x24xf32> -> vector<2x24x24xf32>
    "tpu.trace_stop"() : () -> ()
    %cst_32 = arith.constant 0.353553385 : f32
    %105 = vector.broadcast %cst_32 : f32 to vector<2x24x24xf32>
    %106 = arith.mulf %104, %105 : vector<2x24x24xf32>
    %107 = vector.broadcast %43 : vector<1x1x24xf32> to vector<2x24x24xf32>
    %108 = arith.addf %106, %107 : vector<2x24x24xf32>
    %cst_33 = arith.constant dense<0xFF800000> : vector<2x24xf32>
    %109 = vector.multi_reduction <maximumf>, %108, %cst_33 [2] : vector<2x24x24xf32> to vector<2x24xf32>
    %110 = vector.shape_cast %109 : vector<2x24xf32> to vector<2x24x1xf32>
    %111 = vector.broadcast %110 : vector<2x24x1xf32> to vector<2x24x24xf32>
    %112 = arith.subf %108, %111 : vector<2x24x24xf32>
    %113 = math.exp %112 : vector<2x24x24xf32>
    %cst_34 = arith.constant dense<0.000000e+00> : vector<2x24xf32>
    %114 = vector.multi_reduction <add>, %113, %cst_34 [2] : vector<2x24x24xf32> to vector<2x24xf32>
    %115 = vector.shape_cast %114 : vector<2x24xf32> to vector<2x24x1xf32>
    %116 = vector.broadcast %115 : vector<2x24x1xf32> to vector<2x24x24xf32>
    %117 = arith.divf %113, %116 : vector<2x24x24xf32>
    %118 = arith.truncf %117 : vector<2x24x24xf32> to vector<2x24x24xbf16>
    %119 = arith.truncf %101 : vector<2x24x8xf32> to vector<2x24x8xbf16>
    "tpu.trace_start"() <{level = 10 : i32, message = "bqk,bke->bqe"}> : () -> ()
    %cst_35 = arith.constant dense<0.000000e+00> : vector<2x24x8xf32>
    %120 = tpu.matmul %118, %119, %cst_35 {dimension_numbers = #tpu.dot_dimension_numbers<[2], [1], [1], [2], [0, 0, 0, 1, 1, 2], [0], [0]>} : vector<2x24x24xbf16>, vector<2x24x8xbf16>, vector<2x24x8xf32> -> vector<2x24x8xf32>
    "tpu.trace_stop"() : () -> ()
    %121 = vector.shape_cast %120 : vector<2x24x8xf32> to vector<48x8xf32>
    %122 = vector.extract_strided_slice %37 {offsets = [0, 24], sizes = [48, 8], strides = [1, 1]} : vector<48x96xf32> to vector<48x8xf32>
    %123 = vector.shape_cast %122 : vector<48x8xf32> to vector<2x24x8xf32>
    %124 = vector.extract_strided_slice %37 {offsets = [0, 56], sizes = [48, 8], strides = [1, 1]} : vector<48x96xf32> to vector<48x8xf32>
    %125 = vector.shape_cast %124 : vector<48x8xf32> to vector<2x24x8xf32>
    %126 = vector.extract_strided_slice %37 {offsets = [0, 88], sizes = [48, 8], strides = [1, 1]} : vector<48x96xf32> to vector<48x8xf32>
    %127 = vector.shape_cast %126 : vector<48x8xf32> to vector<2x24x8xf32>
    %128 = arith.truncf %123 : vector<2x24x8xf32> to vector<2x24x8xbf16>
    %129 = arith.truncf %125 : vector<2x24x8xf32> to vector<2x24x8xbf16>
    "tpu.trace_start"() <{level = 10 : i32, message = "bqe,bke->bqk"}> : () -> ()
    %cst_36 = arith.constant dense<0.000000e+00> : vector<2x24x24xf32>
    %130 = tpu.matmul %128, %129, %cst_36 {dimension_numbers = #tpu.dot_dimension_numbers<[2], [2], [1], [1], [0, 0, 0, 1, 1, 1], [0], [0]>} : vector<2x24x8xbf16>, vector<2x24x8xbf16>, vector<2x24x24xf32> -> vector<2x24x24xf32>
    "tpu.trace_stop"() : () -> ()
    %cst_37 = arith.constant 0.353553385 : f32
    %131 = vector.broadcast %cst_37 : f32 to vector<2x24x24xf32>
    %132 = arith.mulf %130, %131 : vector<2x24x24xf32>
    %133 = vector.broadcast %43 : vector<1x1x24xf32> to vector<2x24x24xf32>
    %134 = arith.addf %132, %133 : vector<2x24x24xf32>
    %cst_38 = arith.constant dense<0xFF800000> : vector<2x24xf32>
    %135 = vector.multi_reduction <maximumf>, %134, %cst_38 [2] : vector<2x24x24xf32> to vector<2x24xf32>
    %136 = vector.shape_cast %135 : vector<2x24xf32> to vector<2x24x1xf32>
    %137 = vector.broadcast %136 : vector<2x24x1xf32> to vector<2x24x24xf32>
    %138 = arith.subf %134, %137 : vector<2x24x24xf32>
    %139 = math.exp %138 : vector<2x24x24xf32>
    %cst_39 = arith.constant dense<0.000000e+00> : vector<2x24xf32>
    %140 = vector.multi_reduction <add>, %139, %cst_39 [2] : vector<2x24x24xf32> to vector<2x24xf32>
    %141 = vector.shape_cast %140 : vector<2x24xf32> to vector<2x24x1xf32>
    %142 = vector.broadcast %141 : vector<2x24x1xf32> to vector<2x24x24xf32>
    %143 = arith.divf %139, %142 : vector<2x24x24xf32>
    %144 = arith.truncf %143 : vector<2x24x24xf32> to vector<2x24x24xbf16>
    %145 = arith.truncf %127 : vector<2x24x8xf32> to vector<2x24x8xbf16>
    "tpu.trace_start"() <{level = 10 : i32, message = "bqk,bke->bqe"}> : () -> ()
    %cst_40 = arith.constant dense<0.000000e+00> : vector<2x24x8xf32>
    %146 = tpu.matmul %144, %145, %cst_40 {dimension_numbers = #tpu.dot_dimension_numbers<[2], [1], [1], [2], [0, 0, 0, 1, 1, 2], [0], [0]>} : vector<2x24x24xbf16>, vector<2x24x8xbf16>, vector<2x24x8xf32> -> vector<2x24x8xf32>
    "tpu.trace_stop"() : () -> ()
    %147 = vector.shape_cast %146 : vector<2x24x8xf32> to vector<48x8xf32>
    %148 = tpu.concatenate %69, %95, %121, %147 in 1 : vector<48x8xf32>, vector<48x8xf32>, vector<48x8xf32>, vector<48x8xf32> -> vector<48x32xf32>
    %149 = arith.truncf %148 : vector<48x32xf32> to vector<48x32xbf16>
    %c0_41 = arith.constant 0 : index
    %c0_42 = arith.constant 0 : index
    %c0_43 = arith.constant 0 : index
    %150 = vector.load %arg14[%c0_41, %c0_42, %c0_43] : memref<1x32x32xbf16, #tpu.memory_space<vmem>>, vector<1x32x32xbf16>
    %151 = vector.shape_cast %150 : vector<1x32x32xbf16> to vector<32x32xbf16>
    %cst_44 = arith.constant dense<0.000000e+00> : vector<48x32xf32>
    %152 = tpu.matmul %149, %151, %cst_44 {dimension_numbers = #tpu.dot_dimension_numbers<[1], [0], [0], [1], [0, 0, 1, 1], [], []>} : vector<48x32xbf16>, vector<32x32xbf16>, vector<48x32xf32> -> vector<48x32xf32>
    %c0_45 = arith.constant 0 : index
    %c0_46 = arith.constant 0 : index
    %c0_47 = arith.constant 0 : index
    %153 = vector.load %arg15[%c0_45, %c0_46, %c0_47] : memref<1x1x32xf32, #tpu.memory_space<vmem>>, vector<1x1x32xf32>
    %154 = vector.shape_cast %153 : vector<1x1x32xf32> to vector<1x32xf32>
    %155 = vector.broadcast %154 : vector<1x32xf32> to vector<48x32xf32>
    %156 = arith.addf %152, %155 : vector<48x32xf32>
    %157 = arith.addf %3, %156 : vector<48x32xf32>
    %c0_48 = arith.constant 0 : index
    %c0_49 = arith.constant 0 : index
    %c0_50 = arith.constant 0 : index
    %158 = vector.load %arg16[%c0_48, %c0_49, %c0_50] : memref<1x1x32xf32, #tpu.memory_space<vmem>>, vector<1x1x32xf32>
    %159 = vector.shape_cast %158 : vector<1x1x32xf32> to vector<1x32xf32>
    %c0_51 = arith.constant 0 : index
    %c0_52 = arith.constant 0 : index
    %c0_53 = arith.constant 0 : index
    %160 = vector.load %arg17[%c0_51, %c0_52, %c0_53] : memref<1x1x32xf32, #tpu.memory_space<vmem>>, vector<1x1x32xf32>
    %161 = vector.shape_cast %160 : vector<1x1x32xf32> to vector<1x32xf32>
    %cst_54 = arith.constant dense<0.000000e+00> : vector<48xf32>
    %162 = vector.multi_reduction <add>, %157, %cst_54 [1] : vector<48x32xf32> to vector<48xf32>
    %163 = vector.shape_cast %162 : vector<48xf32> to vector<48x1xf32>
    %cst_55 = arith.constant 3.200000e+01 : f32
    %164 = vector.broadcast %cst_55 : f32 to vector<48x1xf32>
    %165 = arith.divf %163, %164 : vector<48x1xf32>
    %166 = vector.broadcast %165 : vector<48x1xf32> to vector<48x32xf32>
    %167 = arith.subf %157, %166 : vector<48x32xf32>
    %168 = arith.mulf %167, %167 : vector<48x32xf32>
    %cst_56 = arith.constant dense<0.000000e+00> : vector<48xf32>
    %169 = vector.multi_reduction <add>, %168, %cst_56 [1] : vector<48x32xf32> to vector<48xf32>
    %170 = vector.shape_cast %169 : vector<48xf32> to vector<48x1xf32>
    %cst_57 = arith.constant 3.200000e+01 : f32
    %171 = vector.broadcast %cst_57 : f32 to vector<48x1xf32>
    %172 = arith.divf %170, %171 : vector<48x1xf32>
    %173 = vector.broadcast %165 : vector<48x1xf32> to vector<48x32xf32>
    %174 = arith.subf %157, %173 : vector<48x32xf32>
    %cst_58 = arith.constant 9.99999974E-6 : f32
    %175 = vector.broadcast %cst_58 : f32 to vector<48x1xf32>
    %176 = arith.addf %172, %175 : vector<48x1xf32>
    %177 = math.rsqrt %176 : vector<48x1xf32>
    %178 = vector.broadcast %177 : vector<48x1xf32> to vector<48x32xf32>
    %179 = arith.mulf %174, %178 : vector<48x32xf32>
    %180 = vector.broadcast %159 : vector<1x32xf32> to vector<48x32xf32>
    %181 = arith.mulf %179, %180 : vector<48x32xf32>
    %182 = vector.broadcast %161 : vector<1x32xf32> to vector<48x32xf32>
    %183 = arith.addf %181, %182 : vector<48x32xf32>
    %184 = arith.truncf %183 : vector<48x32xf32> to vector<48x32xbf16>
    %c0_59 = arith.constant 0 : index
    %c0_60 = arith.constant 0 : index
    %c0_61 = arith.constant 0 : index
    %185 = vector.load %arg18[%c0_59, %c0_60, %c0_61] : memref<1x32x128xbf16, #tpu.memory_space<vmem>>, vector<1x32x128xbf16>
    %186 = vector.shape_cast %185 : vector<1x32x128xbf16> to vector<32x128xbf16>
    %cst_62 = arith.constant dense<0.000000e+00> : vector<48x128xf32>
    %187 = tpu.matmul %184, %186, %cst_62 {dimension_numbers = #tpu.dot_dimension_numbers<[1], [0], [0], [1], [0, 0, 1, 1], [], []>} : vector<48x32xbf16>, vector<32x128xbf16>, vector<48x128xf32> -> vector<48x128xf32>
    %c0_63 = arith.constant 0 : index
    %c0_64 = arith.constant 0 : index
    %c0_65 = arith.constant 0 : index
    %188 = vector.load %arg19[%c0_63, %c0_64, %c0_65] : memref<1x1x128xf32, #tpu.memory_space<vmem>>, vector<1x1x128xf32>
    %189 = vector.shape_cast %188 : vector<1x1x128xf32> to vector<1x128xf32>
    %190 = vector.broadcast %189 : vector<1x128xf32> to vector<48x128xf32>
    %191 = arith.addf %187, %190 : vector<48x128xf32>
    %cst_66 = arith.constant -1.702000e+00 : f32
    %192 = vector.broadcast %cst_66 : f32 to vector<48x128xf32>
    %193 = arith.mulf %192, %191 : vector<48x128xf32>
    %194 = math.exp %193 : vector<48x128xf32>
    %cst_67 = arith.constant 1.000000e+00 : f32
    %195 = vector.broadcast %cst_67 : f32 to vector<48x128xf32>
    %196 = arith.addf %195, %194 : vector<48x128xf32>
    %cst_68 = arith.constant 1.000000e+00 : f32
    %197 = vector.broadcast %cst_68 : f32 to vector<48x128xf32>
    %198 = arith.divf %197, %196 : vector<48x128xf32>
    %199 = arith.mulf %191, %198 : vector<48x128xf32>
    %200 = arith.truncf %199 : vector<48x128xf32> to vector<48x128xbf16>
    %c0_69 = arith.constant 0 : index
    %c0_70 = arith.constant 0 : index
    %c0_71 = arith.constant 0 : index
    %201 = vector.load %arg20[%c0_69, %c0_70, %c0_71] : memref<1x128x32xbf16, #tpu.memory_space<vmem>>, vector<1x128x32xbf16>
    %202 = vector.shape_cast %201 : vector<1x128x32xbf16> to vector<128x32xbf16>
    %cst_72 = arith.constant dense<0.000000e+00> : vector<48x32xf32>
    %203 = tpu.matmul %200, %202, %cst_72 {dimension_numbers = #tpu.dot_dimension_numbers<[1], [0], [0], [1], [0, 0, 1, 1], [], []>} : vector<48x128xbf16>, vector<128x32xbf16>, vector<48x32xf32> -> vector<48x32xf32>
    %204 = arith.addf %157, %203 : vector<48x32xf32>
    %c0_73 = arith.constant 0 : index
    %c0_74 = arith.constant 0 : index
    %c0_75 = arith.constant 0 : index
    %205 = vector.load %arg21[%c0_73, %c0_74, %c0_75] : memref<1x1x32xf32, #tpu.memory_space<vmem>>, vector<1x1x32xf32>
    %206 = vector.shape_cast %205 : vector<1x1x32xf32> to vector<1x32xf32>
    %207 = vector.broadcast %206 : vector<1x32xf32> to vector<48x32xf32>
    %208 = arith.addf %204, %207 : vector<48x32xf32>
    %c0_76 = arith.constant 0 : index
    %c0_77 = arith.constant 0 : index
    %209 = vector.load %arg26[%c0_76, %c0_77] : memref<48x32xf32, #tpu.memory_space<vmem>>, vector<48x32xf32>
    tpu.vector_store %arg26[%c0_76, %c0_77], %208 {strides = array<i32>} : memref<48x32xf32, #tpu.memory_space<vmem>>, vector<48x32xf32>,
    %c1_i32 = arith.constant 1 : i32
    %210 = arith.cmpi eq, %arg0, %c1_i32 : i32
    %211 = arith.extui %210 : i1 to i32
    %c0_i32_78 = arith.constant 0 : i32
    %212 = arith.cmpi ne, %211, %c0_i32_78 : i32
    scf.if %212 {
      %213 = vector.shape_cast %208 : vector<48x32xf32> to vector<2x24x32xf32>
      %214 = vector.extract_strided_slice %213 {offsets = [0, 0, 0], sizes = [2, 1, 32], strides = [1, 1, 1]} : vector<2x24x32xf32> to vector<2x1x32xf32>
      %215 = vector.shape_cast %214 : vector<2x1x32xf32> to vector<2x32xf32>
      %c0_79 = arith.constant 0 : index
      %c0_80 = arith.constant 0 : index
      %216 = vector.load %arg22[%c0_79, %c0_80] : memref<1x32xf32, #tpu.memory_space<vmem>>, vector<1x32xf32>
      %c0_81 = arith.constant 0 : index
      %c0_82 = arith.constant 0 : index
      %217 = vector.load %arg23[%c0_81, %c0_82] : memref<1x32xf32, #tpu.memory_space<vmem>>, vector<1x32xf32>
      %cst_83 = arith.constant dense<0.000000e+00> : vector<2xf32>
      %218 = vector.multi_reduction <add>, %215, %cst_83 [1] : vector<2x32xf32> to vector<2xf32>
      %219 = vector.shape_cast %218 : vector<2xf32> to vector<2x1xf32>
      %cst_84 = arith.constant 3.200000e+01 : f32
      %220 = vector.broadcast %cst_84 : f32 to vector<2x1xf32>
      %221 = arith.divf %219, %220 : vector<2x1xf32>
      %222 = vector.broadcast %221 : vector<2x1xf32> to vector<2x32xf32>
      %223 = arith.subf %215, %222 : vector<2x32xf32>
      %224 = arith.mulf %223, %223 : vector<2x32xf32>
      %cst_85 = arith.constant dense<0.000000e+00> : vector<2xf32>
      %225 = vector.multi_reduction <add>, %224, %cst_85 [1] : vector<2x32xf32> to vector<2xf32>
      %226 = vector.shape_cast %225 : vector<2xf32> to vector<2x1xf32>
      %cst_86 = arith.constant 3.200000e+01 : f32
      %227 = vector.broadcast %cst_86 : f32 to vector<2x1xf32>
      %228 = arith.divf %226, %227 : vector<2x1xf32>
      %229 = vector.broadcast %221 : vector<2x1xf32> to vector<2x32xf32>
      %230 = arith.subf %215, %229 : vector<2x32xf32>
      %cst_87 = arith.constant 9.99999974E-6 : f32
      %231 = vector.broadcast %cst_87 : f32 to vector<2x1xf32>
      %232 = arith.addf %228, %231 : vector<2x1xf32>
      %233 = math.rsqrt %232 : vector<2x1xf32>
      %234 = vector.broadcast %233 : vector<2x1xf32> to vector<2x32xf32>
      %235 = arith.mulf %230, %234 : vector<2x32xf32>
      %236 = vector.broadcast %216 : vector<1x32xf32> to vector<2x32xf32>
      %237 = arith.mulf %235, %236 : vector<2x32xf32>
      %238 = vector.broadcast %217 : vector<1x32xf32> to vector<2x32xf32>
      %239 = arith.addf %237, %238 : vector<2x32xf32>
      %240 = arith.truncf %239 : vector<2x32xf32> to vector<2x32xbf16>
      %c0_88 = arith.constant 0 : index
      %c0_89 = arith.constant 0 : index
      %241 = vector.load %arg24[%c0_88, %c0_89] : memref<32x16xbf16, #tpu.memory_space<vmem>>, vector<32x16xbf16>
      %cst_90 = arith.constant dense<0.000000e+00> : vector<2x16xf32>
      %242 = tpu.matmul %240, %241, %cst_90 {dimension_numbers = #tpu.dot_dimension_numbers<[1], [0], [0], [1], [0, 0, 1, 1], [], []>} : vector<2x32xbf16>, vector<32x16xbf16>, vector<2x16xf32> -> vector<2x16xf32>
      %c0_91 = arith.constant 0 : index
      %c0_92 = arith.constant 0 : index
      %243 = vector.load %arg25[%c0_91, %c0_92] : memref<2x16xf32, #tpu.memory_space<vmem>>, vector<2x16xf32>
      tpu.vector_store %arg25[%c0_91, %c0_92], %242 {strides = array<i32>} : memref<2x16xf32, #tpu.memory_space<vmem>>, vector<2x16xf32>,
    } else {
    }
    return
  }
  func.func @transform_0(%arg0: i32) -> (i32, i32, i32) {
    %c0_i32 = arith.constant 0 : i32
    %c0_i32_0 = arith.constant 0 : i32
    %c0_i32_1 = arith.constant 0 : i32
    %c0_i32_2 = arith.constant 0 : i32
    return %c0_i32, %c0_i32_0, %c0_i32_1 : i32, i32, i32
  }
  func.func @transform_1(%arg0: i32) -> (i32, i32) {
    %c0_i32 = arith.constant 0 : i32
    %c0_i32_0 = arith.constant 0 : i32
    %c0_i32_1 = arith.constant 0 : i32
    return %c0_i32, %c0_i32_0 : i32, i32
  }
  func.func @transform_2(%arg0: i32) -> (i32, i32) {
    %c0_i32 = arith.constant 0 : i32
    %c0_i32_0 = arith.constant 0 : i32
    %c0_i32_1 = arith.constant 0 : i32
    return %c0_i32, %c0_i32_0 : i32, i32
  }
  func.func @transform_3(%arg0: i32) -> (i32, i32) {
    %c0_i32 = arith.constant 0 : i32
    %c0_i32_0 = arith.constant 0 : i32
    %c0_i32_1 = arith.constant 0 : i32
    return %c0_i32, %c0_i32_0 : i32, i32
  }
  func.func @transform_4(%arg0: i32) -> (i32, i32) {
    %c0_i32 = arith.constant 0 : i32
    %c0_i32_0 = arith.constant 0 : i32
    %c0_i32_1 = arith.constant 0 : i32
    return %c0_i32, %c0_i32_0 : i32, i32
  }
  func.func @transform_5(%arg0: i32) -> (i32, i32) {
    %c0_i32 = arith.constant 0 : i32
    %c0_i32_0 = arith.constant 0 : i32
    %c0_i32_1 = arith.constant 0 : i32
    return %c0_i32, %c0_i32_0 : i32, i32
  }
  func.func @transform_6(%arg0: i32) -> (i32, i32) {
    %c0_i32 = arith.constant 0 : i32
    %c0_i32_0 = arith.constant 0 : i32
    %c0_i32_1 = arith.constant 0 : i32
    return %c0_i32, %c0_i32_0 : i32, i32
  }
  func.func @transform_7(%arg0: i32) -> (i32, i32) {
    %c0_i32 = arith.constant 0 : i32
    %c0_i32_0 = arith.constant 0 : i32
    %c0_i32_1 = arith.constant 0 : i32
    return %c0_i32, %c0_i32_0 : i32, i32
  }
  func.func @transform_8(%arg0: i32) -> (i32, i32) {
    %c0_i32 = arith.constant 0 : i32
    %c0_i32_0 = arith.constant 0 : i32
    %c0_i32_1 = arith.constant 0 : i32
    return %c0_i32, %c0_i32_0 : i32, i32
  }
  func.func @transform_9(%arg0: i32) -> (i32, i32, i32) {
    %c0_i32 = arith.constant 0 : i32
    %c0_i32_0 = arith.constant 0 : i32
    %c0_i32_1 = arith.constant 0 : i32
    return %arg0, %c0_i32, %c0_i32_0 : i32, i32, i32
  }
  func.func @transform_10(%arg0: i32) -> (i32, i32, i32) {
    %c0_i32 = arith.constant 0 : i32
    %c0_i32_0 = arith.constant 0 : i32
    %c0_i32_1 = arith.constant 0 : i32
    return %arg0, %c0_i32, %c0_i32_0 : i32, i32, i32
  }
  func.func @transform_11(%arg0: i32) -> (i32, i32, i32) {
    %c0_i32 = arith.constant 0 : i32
    %c0_i32_0 = arith.constant 0 : i32
    %c0_i32_1 = arith.constant 0 : i32
    return %arg0, %c0_i32, %c0_i32_0 : i32, i32, i32
  }
  func.func @transform_12(%arg0: i32) -> (i32, i32, i32) {
    %c0_i32 = arith.constant 0 : i32
    %c0_i32_0 = arith.constant 0 : i32
    %c0_i32_1 = arith.constant 0 : i32
    return %arg0, %c0_i32, %c0_i32_0 : i32, i32, i32
  }
  func.func @transform_13(%arg0: i32) -> (i32, i32, i32) {
    %c0_i32 = arith.constant 0 : i32
    %c0_i32_0 = arith.constant 0 : i32
    %c0_i32_1 = arith.constant 0 : i32
    return %arg0, %c0_i32, %c0_i32_0 : i32, i32, i32
  }
  func.func @transform_14(%arg0: i32) -> (i32, i32, i32) {
    %c0_i32 = arith.constant 0 : i32
    %c0_i32_0 = arith.constant 0 : i32
    %c0_i32_1 = arith.constant 0 : i32
    return %arg0, %c0_i32, %c0_i32_0 : i32, i32, i32
  }
  func.func @transform_15(%arg0: i32) -> (i32, i32, i32) {
    %c0_i32 = arith.constant 0 : i32
    %c0_i32_0 = arith.constant 0 : i32
    %c0_i32_1 = arith.constant 0 : i32
    return %arg0, %c0_i32, %c0_i32_0 : i32, i32, i32
  }
  func.func @transform_16(%arg0: i32) -> (i32, i32, i32) {
    %c0_i32 = arith.constant 0 : i32
    %c0_i32_0 = arith.constant 0 : i32
    %c0_i32_1 = arith.constant 0 : i32
    return %arg0, %c0_i32, %c0_i32_0 : i32, i32, i32
  }
  func.func @transform_17(%arg0: i32) -> (i32, i32, i32) {
    %c0_i32 = arith.constant 0 : i32
    %c0_i32_0 = arith.constant 0 : i32
    %c0_i32_1 = arith.constant 0 : i32
    return %arg0, %c0_i32, %c0_i32_0 : i32, i32, i32
  }
  func.func @transform_18(%arg0: i32) -> (i32, i32, i32) {
    %c0_i32 = arith.constant 0 : i32
    %c0_i32_0 = arith.constant 0 : i32
    %c0_i32_1 = arith.constant 0 : i32
    return %arg0, %c0_i32, %c0_i32_0 : i32, i32, i32
  }
  func.func @transform_19(%arg0: i32) -> (i32, i32, i32) {
    %c0_i32 = arith.constant 0 : i32
    %c0_i32_0 = arith.constant 0 : i32
    %c0_i32_1 = arith.constant 0 : i32
    return %arg0, %c0_i32, %c0_i32_0 : i32, i32, i32
  }
  func.func @transform_20(%arg0: i32) -> (i32, i32, i32) {
    %c0_i32 = arith.constant 0 : i32
    %c0_i32_0 = arith.constant 0 : i32
    %c0_i32_1 = arith.constant 0 : i32
    return %arg0, %c0_i32, %c0_i32_0 : i32, i32, i32
  }
  func.func @transform_21(%arg0: i32) -> (i32, i32) {
    %c0_i32 = arith.constant 0 : i32
    %c0_i32_0 = arith.constant 0 : i32
    %c0_i32_1 = arith.constant 0 : i32
    return %c0_i32, %c0_i32_0 : i32, i32
  }
  func.func @transform_22(%arg0: i32) -> (i32, i32) {
    %c0_i32 = arith.constant 0 : i32
    %c0_i32_0 = arith.constant 0 : i32
    %c0_i32_1 = arith.constant 0 : i32
    return %c0_i32, %c0_i32_0 : i32, i32
  }
  func.func @transform_23(%arg0: i32) -> (i32, i32) {
    %c0_i32 = arith.constant 0 : i32
    %c0_i32_0 = arith.constant 0 : i32
    %c0_i32_1 = arith.constant 0 : i32
    return %c0_i32, %c0_i32_0 : i32, i32
  }
  func.func @transform_24(%arg0: i32) -> (i32, i32) {
    %c0_i32 = arith.constant 0 : i32
    %c0_i32_0 = arith.constant 0 : i32
    %c0_i32_1 = arith.constant 0 : i32
    return %c0_i32, %c0_i32_0 : i32, i32
  }
}

</mosaic_0001>

<llo_original>
// kernel: clip_vision_forward.1
$region0: #{clip_vision_forward.1}
  #allocation0 [shape = 'u32[]', space=smem, size = 0x4, offset = 0x4, fixed_abs, tag = 'smem constant byte address 0x4 - core index']
  #allocation1 [shape = 'u32[144,128]{1,0:T(1,128)}', space=vmem, size = 0x12000, scoped, tag = 'internal scratch']
  #allocation2 [shape = 'f32[48,32]{1,0:T(8,128)}', space=vmem, size = 0x6000, scoped, tag = 'scratch operand']
  %s0 = inlined_call_operand.vmem [shape: f32[2,16,48], index: 0, kind: input, shape index: {}]
  %s1 = inlined_call_operand.vmem [shape: f32[1,48], index: 1, kind: input, shape index: {}]
  %s2 = inlined_call_operand.vmem [shape: f32[1,48], index: 2, kind: input, shape index: {}]
  %s3 = inlined_call_operand.vmem [shape: bf16[48,32], index: 3, kind: input, shape index: {}]
  %s4 = inlined_call_operand.vmem [shape: f32[1,32], index: 4, kind: input, shape index: {}]
  %s5 = inlined_call_operand.vmem [shape: f32[1,32], index: 5, kind: input, shape index: {}]
  %s6 = inlined_call_operand.vmem [shape: f32[24,32], index: 6, kind: input, shape index: {}]
  %s7 = inlined_call_operand.vmem [shape: f32[1,32], index: 7, kind: input, shape index: {}]
  %s8 = inlined_call_operand.vmem [shape: f32[1,32], index: 8, kind: input, shape index: {}]
  %s9 = inlined_call_operand.vmem [shape: f32[2,1,32], index: 9, kind: input, shape index: {}]
  %s10 = inlined_call_operand.vmem [shape: f32[2,1,32], index: 10, kind: input, shape index: {}]
  %s11 = inlined_call_operand.vmem [shape: bf16[2,32,96], index: 11, kind: input, shape index: {}]
  %s12 = inlined_call_operand.vmem [shape: f32[2,1,96], index: 12, kind: input, shape index: {}]
  %s13 = inlined_call_operand.vmem [shape: bf16[2,32,32], index: 13, kind: input, shape index: {}]
  %s14 = inlined_call_operand.vmem [shape: f32[2,1,32], index: 14, kind: input, shape index: {}]
  %s15 = inlined_call_operand.vmem [shape: f32[2,1,32], index: 15, kind: input, shape index: {}]
  %s16 = inlined_call_operand.vmem [shape: f32[2,1,32], index: 16, kind: input, shape index: {}]
  %s17 = inlined_call_operand.vmem [shape: bf16[2,32,128], index: 17, kind: input, shape index: {}]
  %s18 = inlined_call_operand.vmem [shape: f32[2,1,128], index: 18, kind: input, shape index: {}]
  %s19 = inlined_call_operand.vmem [shape: bf16[2,128,32], index: 19, kind: input, shape index: {}]
  %s20 = inlined_call_operand.vmem [shape: f32[2,1,32], index: 20, kind: input, shape index: {}]
  %s21 = inlined_call_operand.vmem [shape: f32[1,32], index: 21, kind: input, shape index: {}]
  %s22 = inlined_call_operand.vmem [shape: f32[1,32], index: 22, kind: input, shape index: {}]
  %s23 = inlined_call_operand.vmem [shape: bf16[32,16], index: 23, kind: input, shape index: {}]
  %s24 = inlined_call_operand.hbm [shape: f32[2,16], index: 24, kind: output, shape index: {}]
  %s25 = sld [smem:[#allocation0]]
  $region137: #{clip_vision_forward.1} parent=0
    _
  %s27 = ssub.s32 1, %s25
  %s28 = scalar_select 0, %s27, %s25
  $region1: #{clip_vision_forward.1} parent=0
    #allocation3 [shape = 'u8[1024]{0}', space=vmem, size = 0x400, scoped, tag = 'output window, operand 0, single buffered']
    #allocation4 [shape = 's32[2]{0}', space=sflag, size = 0x8, scoped, tag = 'scoped memory for clip_vision_forward.1']
    %29 = vsyncpa [#allocation4], 0
    loop: start=0, step=1, limit=4
    $region2: #{clip_vision_forward.1} parent=1 // loop_pre_header
      _
    $region3: #{clip_vision_forward.1} parent=1 // loop_header
      %s31 = sphi 0, %s35
      %p32 = scmp.ge.s32.totalorder %s31, 4
      %s39 = sphi 0, %s39
      %s41 = sphi 0, %s39
      %s42 = sphi 0, %s41
      %s56 = sphi 0, %s42
      %s60 = sphi 0, %s60
      %s62 = sphi 0, %s60
      %s63 = sphi 0, %s62
      %s77 = sphi 0, %s63
      %s81 = sphi 0, %s81
      %s83 = sphi 0, %s81
      %s84 = sphi 0, %s83
      %s98 = sphi 0, %s84
      %s102 = sphi 0, %s102
      %s104 = sphi 0, %s102
      %s105 = sphi 0, %s104
      %s119 = sphi 0, %s105
      %s123 = sphi 0, %s123
      %s125 = sphi 0, %s123
      %s126 = sphi 0, %s125
      %s140 = sphi 0, %s126
      %s144 = sphi 0, %s144
      %s146 = sphi 0, %s144
      %s147 = sphi 0, %s146
      %s161 = sphi 0, %s147
      %s165 = sphi 0, %s165
      %s167 = sphi 0, %s165
      %s168 = sphi 0, %s167
      %s182 = sphi 0, %s168
      %s186 = sphi 0, %s186
      %s188 = sphi 0, %s186
      %s189 = sphi 0, %s188
      %s203 = sphi 0, %s189
      %s207 = sphi 0, %s207
      %s209 = sphi 0, %s207
      %s210 = sphi 0, %s209
      %s224 = sphi 0, %s210
      %s230 = sphi 0, %s232
      %s233 = sphi 0, %s230
      %s234 = sphi 0, %s233
      %s250 = sphi 0, %s234
      %s256 = sphi 0, %s258
      %s259 = sphi 0, %s256
      %s260 = sphi 0, %s259
      %s276 = sphi 0, %s260
      %s282 = sphi 0, %s284
      %s285 = sphi 0, %s282
      %s286 = sphi 0, %s285
      %s302 = sphi 0, %s286
      %s308 = sphi 0, %s310
      %s311 = sphi 0, %s308
      %s312 = sphi 0, %s311
      %s328 = sphi 0, %s312
      %s334 = sphi 0, %s336
      %s337 = sphi 0, %s334
      %s338 = sphi 0, %s337
      %s354 = sphi 0, %s338
      %s360 = sphi 0, %s362
      %s363 = sphi 0, %s360
      %s364 = sphi 0, %s363
      %s380 = sphi 0, %s364
      %s386 = sphi 0, %s388
      %s389 = sphi 0, %s386
      %s390 = sphi 0, %s389
      %s406 = sphi 0, %s390
      %s412 = sphi 0, %s414
      %s415 = sphi 0, %s412
      %s416 = sphi 0, %s415
      %s432 = sphi 0, %s416
      %s438 = sphi 0, %s440
      %s441 = sphi 0, %s438
      %s442 = sphi 0, %s441
      %s458 = sphi 0, %s442
      %s464 = sphi 0, %s466
      %s467 = sphi 0, %s464
      %s468 = sphi 0, %s467
      %s484 = sphi 0, %s468
      %s490 = sphi 0, %s492
      %s493 = sphi 0, %s490
      %s494 = sphi 0, %s493
      %s510 = sphi 0, %s494
      %s516 = sphi 0, %s518
      %s519 = sphi 0, %s516
      %s520 = sphi 0, %s519
      %s536 = sphi 0, %s520
      %s540 = sphi 0, %s540
      %s542 = sphi 0, %s540
      %s543 = sphi 0, %s542
      %s557 = sphi 0, %s543
      %s561 = sphi 0, %s561
      %s563 = sphi 0, %s561
      %s564 = sphi 0, %s563
      %s578 = sphi 0, %s564
      %s582 = sphi 0, %s582
      %s584 = sphi 0, %s582
      %s585 = sphi 0, %s584
      %s599 = sphi 0, %s585
      %s603 = sphi 0, %s603
      %s605 = sphi 0, %s603
      %s606 = sphi 0, %s605
      %s620 = sphi 0, %s606
    $region4: #{clip_vision_forward.1} parent=1 // loop_header_branch
      %34 = sbr.rel (%p32) target = $region8
    $region5: #{clip_vision_forward.1} parent=1 // loop_body
      %s36 = ssub.s32 %s31, 1
      %s37 = ssub.s32 %s31, 2
      %s38 = sadd.s32 %s31, 1
      %s40 = sadd.s32 %s39, 1
      %p43 = scmp.eq.s32.totalorder %s31, 1
      %p44 = scmp.ne.s32.totalorder %s39, %s41
      %p45 = scmp.eq.s32.totalorder %s31, 0
      %p46 = por %p44, %p45
      %p47 = scmp.ne.s32.totalorder %s39, %s41
      %p48 = scmp.eq.s32.totalorder %s36, 1
      %p49 = por %p47, %p48
      %p50 = scmp.ne.s32.totalorder %s41, %s42
      %p51 = scmp.eq.s32.totalorder %s36, 0
      %p52 = por %p50, %p51
      %p53 = scmp.ne.s32.totalorder %s41, %s42
      %p54 = scmp.eq.s32.totalorder %s37, 1
      %p55 = por %p53, %p54
      %p57 = scmp.ne.s32.totalorder %s42, %s56
      %p58 = scmp.eq.s32.totalorder %s37, 0
      %p59 = por %p57, %p58
      %s61 = sadd.s32 %s60, 1
      %p64 = scmp.eq.s32.totalorder %s31, 1
      %p65 = scmp.ne.s32.totalorder %s60, %s62
      %p66 = scmp.eq.s32.totalorder %s31, 0
      %p67 = por %p65, %p66
      %p68 = scmp.ne.s32.totalorder %s60, %s62
      %p69 = scmp.eq.s32.totalorder %s36, 1
      %p70 = por %p68, %p69
      %p71 = scmp.ne.s32.totalorder %s62, %s63
      %p72 = scmp.eq.s32.totalorder %s36, 0
      %p73 = por %p71, %p72
      %p74 = scmp.ne.s32.totalorder %s62, %s63
      %p75 = scmp.eq.s32.totalorder %s37, 1
      %p76 = por %p74, %p75
      %p78 = scmp.ne.s32.totalorder %s63, %s77
      %p79 = scmp.eq.s32.totalorder %s37, 0
      %p80 = por %p78, %p79
      %s82 = sadd.s32 %s81, 1
      %p85 = scmp.eq.s32.totalorder %s31, 1
      %p86 = scmp.ne.s32.totalorder %s81, %s83
      %p87 = scmp.eq.s32.totalorder %s31, 0
      %p88 = por %p86, %p87
      %p89 = scmp.ne.s32.totalorder %s81, %s83
      %p90 = scmp.eq.s32.totalorder %s36, 1
      %p91 = por %p89, %p90
      %p92 = scmp.ne.s32.totalorder %s83, %s84
      %p93 = scmp.eq.s32.totalorder %s36, 0
      %p94 = por %p92, %p93
      %p95 = scmp.ne.s32.totalorder %s83, %s84
      %p96 = scmp.eq.s32.totalorder %s37, 1
      %p97 = por %p95, %p96
      %p99 = scmp.ne.s32.totalorder %s84, %s98
      %p100 = scmp.eq.s32.totalorder %s37, 0
      %p101 = por %p99, %p100
      %s103 = sadd.s32 %s102, 1
      %p106 = scmp.eq.s32.totalorder %s31, 1
      %p107 = scmp.ne.s32.totalorder %s102, %s104
      %p108 = scmp.eq.s32.totalorder %s31, 0
      %p109 = por %p107, %p108
      %p110 = scmp.ne.s32.totalorder %s102, %s104
      %p111 = scmp.eq.s32.totalorder %s36, 1
      %p112 = por %p110, %p111
      %p113 = scmp.ne.s32.totalorder %s104, %s105
      %p114 = scmp.eq.s32.totalorder %s36, 0
      %p115 = por %p113, %p114
      %p116 = scmp.ne.s32.totalorder %s104, %s105
      %p117 = scmp.eq.s32.totalorder %s37, 1
      %p118 = por %p116, %p117
      %p120 = scmp.ne.s32.totalorder %s105, %s119
      %p121 = scmp.eq.s32.totalorder %s37, 0
      %p122 = por %p120, %p121
      %s124 = sadd.s32 %s123, 1
      %p127 = scmp.eq.s32.totalorder %s31, 1
      %p128 = scmp.ne.s32.totalorder %s123, %s125
      %p129 = scmp.eq.s32.totalorder %s31, 0
      %p130 = por %p128, %p129
      %p131 = scmp.ne.s32.totalorder %s123, %s125
      %p132 = scmp.eq.s32.totalorder %s36, 1
      %p133 = por %p131, %p132
      %p134 = scmp.ne.s32.totalorder %s125, %s126
      %p135 = scmp.eq.s32.totalorder %s36, 0
      %p136 = por %p134, %p135
      %p137 = scmp.ne.s32.totalorder %s125, %s126
      %p138 = scmp.eq.s32.totalorder %s37, 1
      %p139 = por %p137, %p138
      %p141 = scmp.ne.s32.totalorder %s126, %s140
      %p142 = scmp.eq.s32.totalorder %s37, 0
      %p143 = por %p141, %p142
      %s145 = sadd.s32 %s144, 1
      %p148 = scmp.eq.s32.totalorder %s31, 1
      %p149 = scmp.ne.s32.totalorder %s144, %s146
      %p150 = scmp.eq.s32.totalorder %s31, 0
      %p151 = por %p149, %p150
      %p152 = scmp.ne.s32.totalorder %s144, %s146
      %p153 = scmp.eq.s32.totalorder %s36, 1
      %p154 = por %p152, %p153
      %p155 = scmp.ne.s32.totalorder %s146, %s147
      %p156 = scmp.eq.s32.totalorder %s36, 0
      %p157 = por %p155, %p156
      %p158 = scmp.ne.s32.totalorder %s146, %s147
      %p159 = scmp.eq.s32.totalorder %s37, 1
      %p160 = por %p158, %p159
      %p162 = scmp.ne.s32.totalorder %s147, %s161
      %p163 = scmp.eq.s32.totalorder %s37, 0
      %p164 = por %p162, %p163
      %s166 = sadd.s32 %s165, 1
      %p169 = scmp.eq.s32.totalorder %s31, 1
      %p170 = scmp.ne.s32.totalorder %s165, %s167
      %p171 = scmp.eq.s32.totalorder %s31, 0
      %p172 = por %p170, %p171
      %p173 = scmp.ne.s32.totalorder %s165, %s167
      %p174 = scmp.eq.s32.totalorder %s36, 1
      %p175 = por %p173, %p174
      %p176 = scmp.ne.s32.totalorder %s167, %s168
      %p177 = scmp.eq.s32.totalorder %s36, 0
      %p178 = por %p176, %p177
      %p179 = scmp.ne.s32.totalorder %s167, %s168
      %p180 = scmp.eq.s32.totalorder %s37, 1
      %p181 = por %p179, %p180
      %p183 = scmp.ne.s32.totalorder %s168, %s182
      %p184 = scmp.eq.s32.totalorder %s37, 0
      %p185 = por %p183, %p184
      %s187 = sadd.s32 %s186, 1
      %p190 = scmp.eq.s32.totalorder %s31, 1
      %p191 = scmp.ne.s32.totalorder %s186, %s188
      %p192 = scmp.eq.s32.totalorder %s31, 0
      %p193 = por %p191, %p192
      %p194 = scmp.ne.s32.totalorder %s186, %s188
      %p195 = scmp.eq.s32.totalorder %s36, 1
      %p196 = por %p194, %p195
      %p197 = scmp.ne.s32.totalorder %s188, %s189
      %p198 = scmp.eq.s32.totalorder %s36, 0
      %p199 = por %p197, %p198
      %p200 = scmp.ne.s32.totalorder %s188, %s189
      %p201 = scmp.eq.s32.totalorder %s37, 1
      %p202 = por %p200, %p201
      %p204 = scmp.ne.s32.totalorder %s189, %s203
      %p205 = scmp.eq.s32.totalorder %s37, 0
      %p206 = por %p204, %p205
      %s208 = sadd.s32 %s207, 1
      %p211 = scmp.eq.s32.totalorder %s31, 1
      %p212 = scmp.ne.s32.totalorder %s207, %s209
      %p213 = scmp.eq.s32.totalorder %s31, 0
      %p214 = por %p212, %p213
      %p215 = scmp.ne.s32.totalorder %s207, %s209
      %p216 = scmp.eq.s32.totalorder %s36, 1
      %p217 = por %p215, %p216
      %p218 = scmp.ne.s32.totalorder %s209, %s210
      %p219 = scmp.eq.s32.totalorder %s36, 0
      %p220 = por %p218, %p219
      %p221 = scmp.ne.s32.totalorder %s209, %s210
      %p222 = scmp.eq.s32.totalorder %s37, 1
      %p223 = por %p221, %p222
      %p225 = scmp.ne.s32.totalorder %s210, %s224
      %p226 = scmp.eq.s32.totalorder %s37, 0
      %p227 = por %p225, %p226
      %s228 = ssub.s32 %s31, %s38
      %p229 = scmp.eq.s32.totalorder %s228, 0
      %s231 = sadd.s32 %s230, 1
      %s232 = scalar_select %p229, %s230, %s231
      %p235 = pneg %p229
      %p236 = scmp.eq.s32.totalorder %s31, 1
      %p237 = por %p235, %p236
      %p238 = scmp.ne.s32.totalorder %s230, %s233
      %p239 = scmp.eq.s32.totalorder %s31, 0
      %p240 = por %p238, %p239
      %p241 = scmp.ne.s32.totalorder %s230, %s233
      %p242 = scmp.eq.s32.totalorder %s36, 1
      %p243 = por %p241, %p242
      %p244 = scmp.ne.s32.totalorder %s233, %s234
      %p245 = scmp.eq.s32.totalorder %s36, 0
      %p246 = por %p244, %p245
      %p247 = scmp.ne.s32.totalorder %s233, %s234
      %p248 = scmp.eq.s32.totalorder %s37, 1
      %p249 = por %p247, %p248
      %p251 = scmp.ne.s32.totalorder %s234, %s250
      %p252 = scmp.eq.s32.totalorder %s37, 0
      %p253 = por %p251, %p252
      %s254 = ssub.s32 %s31, %s38
      %p255 = scmp.eq.s32.totalorder %s254, 0
      %s257 = sadd.s32 %s256, 1
      %s258 = scalar_select %p255, %s256, %s257
      %p261 = pneg %p255
      %p262 = scmp.eq.s32.totalorder %s31, 1
      %p263 = por %p261, %p262
      %p264 = scmp.ne.s32.totalorder %s256, %s259
      %p265 = scmp.eq.s32.totalorder %s31, 0
      %p266 = por %p264, %p265
      %p267 = scmp.ne.s32.totalorder %s256, %s259
      %p268 = scmp.eq.s32.totalorder %s36, 1
      %p269 = por %p267, %p268
      %p270 = scmp.ne.s32.totalorder %s259, %s260
      %p271 = scmp.eq.s32.totalorder %s36, 0
      %p272 = por %p270, %p271
      %p273 = scmp.ne.s32.totalorder %s259, %s260
      %p274 = scmp.eq.s32.totalorder %s37, 1
      %p275 = por %p273, %p274
      %p277 = scmp.ne.s32.totalorder %s260, %s276
      %p278 = scmp.eq.s32.totalorder %s37, 0
      %p279 = por %p277, %p278
      %s280 = ssub.s32 %s31, %s38
      %p281 = scmp.eq.s32.totalorder %s280, 0
      %s283 = sadd.s32 %s282, 1
      %s284 = scalar_select %p281, %s282, %s283
      %p287 = pneg %p281
      %p288 = scmp.eq.s32.totalorder %s31, 1
      %p289 = por %p287, %p288
      %p290 = scmp.ne.s32.totalorder %s282, %s285
      %p291 = scmp.eq.s32.totalorder %s31, 0
      %p292 = por %p290, %p291
      %p293 = scmp.ne.s32.totalorder %s282, %s285
      %p294 = scmp.eq.s32.totalorder %s36, 1
      %p295 = por %p293, %p294
      %p296 = scmp.ne.s32.totalorder %s285, %s286
      %p297 = scmp.eq.s32.totalorder %s36, 0
      %p298 = por %p296, %p297
      %p299 = scmp.ne.s32.totalorder %s285, %s286
      %p300 = scmp.eq.s32.totalorder %s37, 1
      %p301 = por %p299, %p300
      %p303 = scmp.ne.s32.totalorder %s286, %s302
      %p304 = scmp.eq.s32.totalorder %s37, 0
      %p305 = por %p303, %p304
      %s306 = ssub.s32 %s31, %s38
      %p307 = scmp.eq.s32.totalorder %s306, 0
      %s309 = sadd.s32 %s308, 1
      %s310 = scalar_select %p307, %s308, %s309
      %p313 = pneg %p307
      %p314 = scmp.eq.s32.totalorder %s31, 1
      %p315 = por %p313, %p314
      %p316 = scmp.ne.s32.totalorder %s308, %s311
      %p317 = scmp.eq.s32.totalorder %s31, 0
      %p318 = por %p316, %p317
      %p319 = scmp.ne.s32.totalorder %s308, %s311
      %p320 = scmp.eq.s32.totalorder %s36, 1
      %p321 = por %p319, %p320
      %p322 = scmp.ne.s32.totalorder %s311, %s312
      %p323 = scmp.eq.s32.totalorder %s36, 0
      %p324 = por %p322, %p323
      %p325 = scmp.ne.s32.totalorder %s311, %s312
      %p326 = scmp.eq.s32.totalorder %s37, 1
      %p327 = por %p325, %p326
      %p329 = scmp.ne.s32.totalorder %s312, %s328
      %p330 = scmp.eq.s32.totalorder %s37, 0
      %p331 = por %p329, %p330
      %s332 = ssub.s32 %s31, %s38
      %p333 = scmp.eq.s32.totalorder %s332, 0
      %s335 = sadd.s32 %s334, 1
      %s336 = scalar_select %p333, %s334, %s335
      %p339 = pneg %p333
      %p340 = scmp.eq.s32.totalorder %s31, 1
      %p341 = por %p339, %p340
      %p342 = scmp.ne.s32.totalorder %s334, %s337
      %p343 = scmp.eq.s32.totalorder %s31, 0
      %p344 = por %p342, %p343
      %p345 = scmp.ne.s32.totalorder %s334, %s337
      %p346 = scmp.eq.s32.totalorder %s36, 1
      %p347 = por %p345, %p346
      %p348 = scmp.ne.s32.totalorder %s337, %s338
      %p349 = scmp.eq.s32.totalorder %s36, 0
      %p350 = por %p348, %p349
      %p351 = scmp.ne.s32.totalorder %s337, %s338
      %p352 = scmp.eq.s32.totalorder %s37, 1
      %p353 = por %p351, %p352
      %p355 = scmp.ne.s32.totalorder %s338, %s354
      %p356 = scmp.eq.s32.totalorder %s37, 0
      %p357 = por %p355, %p356
      %s358 = ssub.s32 %s31, %s38
      %p359 = scmp.eq.s32.totalorder %s358, 0
      %s361 = sadd.s32 %s360, 1
      %s362 = scalar_select %p359, %s360, %s361
      %p365 = pneg %p359
      %p366 = scmp.eq.s32.totalorder %s31, 1
      %p367 = por %p365, %p366
      %p368 = scmp.ne.s32.totalorder %s360, %s363
      %p369 = scmp.eq.s32.totalorder %s31, 0
      %p370 = por %p368, %p369
      %p371 = scmp.ne.s32.totalorder %s360, %s363
      %p372 = scmp.eq.s32.totalorder %s36, 1
      %p373 = por %p371, %p372
      %p374 = scmp.ne.s32.totalorder %s363, %s364
      %p375 = scmp.eq.s32.totalorder %s36, 0
      %p376 = por %p374, %p375
      %p377 = scmp.ne.s32.totalorder %s363, %s364
      %p378 = scmp.eq.s32.totalorder %s37, 1
      %p379 = por %p377, %p378
      %p381 = scmp.ne.s32.totalorder %s364, %s380
      %p382 = scmp.eq.s32.totalorder %s37, 0
      %p383 = por %p381, %p382
      %s384 = ssub.s32 %s31, %s38
      %p385 = scmp.eq.s32.totalorder %s384, 0
      %s387 = sadd.s32 %s386, 1
      %s388 = scalar_select %p385, %s386, %s387
      %p391 = pneg %p385
      %p392 = scmp.eq.s32.totalorder %s31, 1
      %p393 = por %p391, %p392
      %p394 = scmp.ne.s32.totalorder %s386, %s389
      %p395 = scmp.eq.s32.totalorder %s31, 0
      %p396 = por %p394, %p395
      %p397 = scmp.ne.s32.totalorder %s386, %s389
      %p398 = scmp.eq.s32.totalorder %s36, 1
      %p399 = por %p397, %p398
      %p400 = scmp.ne.s32.totalorder %s389, %s390
      %p401 = scmp.eq.s32.totalorder %s36, 0
      %p402 = por %p400, %p401
      %p403 = scmp.ne.s32.totalorder %s389, %s390
      %p404 = scmp.eq.s32.totalorder %s37, 1
      %p405 = por %p403, %p404
      %p407 = scmp.ne.s32.totalorder %s390, %s406
      %p408 = scmp.eq.s32.totalorder %s37, 0
      %p409 = por %p407, %p408
      %s410 = ssub.s32 %s31, %s38
      %p411 = scmp.eq.s32.totalorder %s410, 0
      %s413 = sadd.s32 %s412, 1
      %s414 = scalar_select %p411, %s412, %s413
      %p417 = pneg %p411
      %p418 = scmp.eq.s32.totalorder %s31, 1
      %p419 = por %p417, %p418
      %p420 = scmp.ne.s32.totalorder %s412, %s415
      %p421 = scmp.eq.s32.totalorder %s31, 0
      %p422 = por %p420, %p421
      %p423 = scmp.ne.s32.totalorder %s412, %s415
      %p424 = scmp.eq.s32.totalorder %s36, 1
      %p425 = por %p423, %p424
      %p426 = scmp.ne.s32.totalorder %s415, %s416
      %p427 = scmp.eq.s32.totalorder %s36, 0
      %p428 = por %p426, %p427
      %p429 = scmp.ne.s32.totalorder %s415, %s416
      %p430 = scmp.eq.s32.totalorder %s37, 1
      %p431 = por %p429, %p430
      %p433 = scmp.ne.s32.totalorder %s416, %s432
      %p434 = scmp.eq.s32.totalorder %s37, 0
      %p435 = por %p433, %p434
      %s436 = ssub.s32 %s31, %s38
      %p437 = scmp.eq.s32.totalorder %s436, 0
      %s439 = sadd.s32 %s438, 1
      %s440 = scalar_select %p437, %s438, %s439
      %p443 = pneg %p437
      %p444 = scmp.eq.s32.totalorder %s31, 1
      %p445 = por %p443, %p444
      %p446 = scmp.ne.s32.totalorder %s438, %s441
      %p447 = scmp.eq.s32.totalorder %s31, 0
      %p448 = por %p446, %p447
      %p449 = scmp.ne.s32.totalorder %s438, %s441
      %p450 = scmp.eq.s32.totalorder %s36, 1
      %p451 = por %p449, %p450
      %p452 = scmp.ne.s32.totalorder %s441, %s442
      %p453 = scmp.eq.s32.totalorder %s36, 0
      %p454 = por %p452, %p453
      %p455 = scmp.ne.s32.totalorder %s441, %s442
      %p456 = scmp.eq.s32.totalorder %s37, 1
      %p457 = por %p455, %p456
      %p459 = scmp.ne.s32.totalorder %s442, %s458
      %p460 = scmp.eq.s32.totalorder %s37, 0
      %p461 = por %p459, %p460
      %s462 = ssub.s32 %s31, %s38
      %p463 = scmp.eq.s32.totalorder %s462, 0
      %s465 = sadd.s32 %s464, 1
      %s466 = scalar_select %p463, %s464, %s465
      %p469 = pneg %p463
      %p470 = scmp.eq.s32.totalorder %s31, 1
      %p471 = por %p469, %p470
      %p472 = scmp.ne.s32.totalorder %s464, %s467
      %p473 = scmp.eq.s32.totalorder %s31, 0
      %p474 = por %p472, %p473
      %p475 = scmp.ne.s32.totalorder %s464, %s467
      %p476 = scmp.eq.s32.totalorder %s36, 1
      %p477 = por %p475, %p476
      %p478 = scmp.ne.s32.totalorder %s467, %s468
      %p479 = scmp.eq.s32.totalorder %s36, 0
      %p480 = por %p478, %p479
      %p481 = scmp.ne.s32.totalorder %s467, %s468
      %p482 = scmp.eq.s32.totalorder %s37, 1
      %p483 = por %p481, %p482
      %p485 = scmp.ne.s32.totalorder %s468, %s484
      %p486 = scmp.eq.s32.totalorder %s37, 0
      %p487 = por %p485, %p486
      %s488 = ssub.s32 %s31, %s38
      %p489 = scmp.eq.s32.totalorder %s488, 0
      %s491 = sadd.s32 %s490, 1
      %s492 = scalar_select %p489, %s490, %s491
      %p495 = pneg %p489
      %p496 = scmp.eq.s32.totalorder %s31, 1
      %p497 = por %p495, %p496
      %p498 = scmp.ne.s32.totalorder %s490, %s493
      %p499 = scmp.eq.s32.totalorder %s31, 0
      %p500 = por %p498, %p499
      %p501 = scmp.ne.s32.totalorder %s490, %s493
      %p502 = scmp.eq.s32.totalorder %s36, 1
      %p503 = por %p501, %p502
      %p504 = scmp.ne.s32.totalorder %s493, %s494
      %p505 = scmp.eq.s32.totalorder %s36, 0
      %p506 = por %p504, %p505
      %p507 = scmp.ne.s32.totalorder %s493, %s494
      %p508 = scmp.eq.s32.totalorder %s37, 1
      %p509 = por %p507, %p508
      %p511 = scmp.ne.s32.totalorder %s494, %s510
      %p512 = scmp.eq.s32.totalorder %s37, 0
      %p513 = por %p511, %p512
      %s514 = ssub.s32 %s31, %s38
      %p515 = scmp.eq.s32.totalorder %s514, 0
      %s517 = sadd.s32 %s516, 1
      %s518 = scalar_select %p515, %s516, %s517
      %p521 = pneg %p515
      %p522 = scmp.eq.s32.totalorder %s31, 1
      %p523 = por %p521, %p522
      %p524 = scmp.ne.s32.totalorder %s516, %s519
      %p525 = scmp.eq.s32.totalorder %s31, 0
      %p526 = por %p524, %p525
      %p527 = scmp.ne.s32.totalorder %s516, %s519
      %p528 = scmp.eq.s32.totalorder %s36, 1
      %p529 = por %p527, %p528
      %p530 = scmp.ne.s32.totalorder %s519, %s520
      %p531 = scmp.eq.s32.totalorder %s36, 0
      %p532 = por %p530, %p531
      %p533 = scmp.ne.s32.totalorder %s519, %s520
      %p534 = scmp.eq.s32.totalorder %s37, 1
      %p535 = por %p533, %p534
      %p537 = scmp.ne.s32.totalorder %s520, %s536
      %p538 = scmp.eq.s32.totalorder %s37, 0
      %p539 = por %p537, %p538
      %s541 = sadd.s32 %s540, 1
      %p544 = scmp.eq.s32.totalorder %s31, 1
      %p545 = scmp.ne.s32.totalorder %s540, %s542
      %p546 = scmp.eq.s32.totalorder %s31, 0
      %p547 = por %p545, %p546
      %p548 = scmp.ne.s32.totalorder %s540, %s542
      %p549 = scmp.eq.s32.totalorder %s36, 1
      %p550 = por %p548, %p549
      %p551 = scmp.ne.s32.totalorder %s542, %s543
      %p552 = scmp.eq.s32.totalorder %s36, 0
      %p553 = por %p551, %p552
      %p554 = scmp.ne.s32.totalorder %s542, %s543
      %p555 = scmp.eq.s32.totalorder %s37, 1
      %p556 = por %p554, %p555
      %p558 = scmp.ne.s32.totalorder %s543, %s557
      %p559 = scmp.eq.s32.totalorder %s37, 0
      %p560 = por %p558, %p559
      %s562 = sadd.s32 %s561, 1
      %p565 = scmp.eq.s32.totalorder %s31, 1
      %p566 = scmp.ne.s32.totalorder %s561, %s563
      %p567 = scmp.eq.s32.totalorder %s31, 0
      %p568 = por %p566, %p567
      %p569 = scmp.ne.s32.totalorder %s561, %s563
      %p570 = scmp.eq.s32.totalorder %s36, 1
      %p571 = por %p569, %p570
      %p572 = scmp.ne.s32.totalorder %s563, %s564
      %p573 = scmp.eq.s32.totalorder %s36, 0
      %p574 = por %p572, %p573
      %p575 = scmp.ne.s32.totalorder %s563, %s564
      %p576 = scmp.eq.s32.totalorder %s37, 1
      %p577 = por %p575, %p576
      %p579 = scmp.ne.s32.totalorder %s564, %s578
      %p580 = scmp.eq.s32.totalorder %s37, 0
      %p581 = por %p579, %p580
      %s583 = sadd.s32 %s582, 1
      %p586 = scmp.eq.s32.totalorder %s31, 1
      %p587 = scmp.ne.s32.totalorder %s582, %s584
      %p588 = scmp.eq.s32.totalorder %s31, 0
      %p589 = por %p587, %p588
      %p590 = scmp.ne.s32.totalorder %s582, %s584
      %p591 = scmp.eq.s32.totalorder %s36, 1
      %p592 = por %p590, %p591
      %p593 = scmp.ne.s32.totalorder %s584, %s585
      %p594 = scmp.eq.s32.totalorder %s36, 0
      %p595 = por %p593, %p594
      %p596 = scmp.ne.s32.totalorder %s584, %s585
      %p597 = scmp.eq.s32.totalorder %s37, 1
      %p598 = por %p596, %p597
      %p600 = scmp.ne.s32.totalorder %s585, %s599
      %p601 = scmp.eq.s32.totalorder %s37, 0
      %p602 = por %p600, %p601
      %s604 = sadd.s32 %s603, 1
      %p607 = scmp.eq.s32.totalorder %s31, 1
      %p608 = scmp.ne.s32.totalorder %s603, %s605
      %p609 = scmp.eq.s32.totalorder %s31, 0
      %p610 = por %p608, %p609
      %p611 = scmp.ne.s32.totalorder %s603, %s605
      %p612 = scmp.eq.s32.totalorder %s36, 1
      %p613 = por %p611, %p612
      %p614 = scmp.ne.s32.totalorder %s605, %s606
      %p615 = scmp.eq.s32.totalorder %s36, 0
      %p616 = por %p614, %p615
      %p617 = scmp.ne.s32.totalorder %s605, %s606
      %p618 = scmp.eq.s32.totalorder %s37, 1
      %p619 = por %p617, %p618
      %p621 = scmp.ne.s32.totalorder %s606, %s620
      %p622 = scmp.eq.s32.totalorder %s37, 0
      %p623 = por %p621, %p622
      %p624 = scmp.le.s32.totalorder 1, %s31
      %p625 = scmp.lt.s32.totalorder %s31, 3
      %p626 = pnand %p624, %p625
      %p627 = pneg %p626
      // Predicated region
      $region9: #{clip_vision_forward.1} parent=5 // pred_check
        _
      $region10: #{clip_vision_forward.1} parent=5 // pred_check_branch
        %629 = sbr.rel (%p626) target = $region12
      $region11: #{clip_vision_forward.1} parent=5 // pred_region
        %s630 = ssub.s32 %s31, 1
        // Predicated region
        $region13: #{clip_vision_forward.1} parent=11 // pred_check
          %p631 = pneg %p52
        $region14: #{clip_vision_forward.1} parent=11 // pred_check_branch
          %633 = sbr.rel (%p631) target = $region16
        $region15: #{clip_vision_forward.1} parent=11 // pred_region
          _
        $region16: #{clip_vision_forward.1} parent=11 // pred_fallthru
          _
        // Predicated region
        $region17: #{clip_vision_forward.1} parent=11 // pred_check
          %p634 = pneg %p73
        $region18: #{clip_vision_forward.1} parent=11 // pred_check_branch
          %636 = sbr.rel (%p634) target = $region20
        $region19: #{clip_vision_forward.1} parent=11 // pred_region
          _
        $region20: #{clip_vision_forward.1} parent=11 // pred_fallthru
          _
        // Predicated region
        $region21: #{clip_vision_forward.1} parent=11 // pred_check
          %p637 = pneg %p94
        $region22: #{clip_vision_forward.1} parent=11 // pred_check_branch
          %639 = sbr.rel (%p637) target = $region24
        $region23: #{clip_vision_forward.1} parent=11 // pred_region
          _
        $region24: #{clip_vision_forward.1} parent=11 // pred_fallthru
          _
        // Predicated region
        $region25: #{clip_vision_forward.1} parent=11 // pred_check
          %p640 = pneg %p115
        $region26: #{clip_vision_forward.1} parent=11 // pred_check_branch
          %642 = sbr.rel (%p640) target = $region28
        $region27: #{clip_vision_forward.1} parent=11 // pred_region
          _
        $region28: #{clip_vision_forward.1} parent=11 // pred_fallthru
          _
        // Predicated region
        $region29: #{clip_vision_forward.1} parent=11 // pred_check
          %p643 = pneg %p136
        $region30: #{clip_vision_forward.1} parent=11 // pred_check_branch
          %645 = sbr.rel (%p643) target = $region32
        $region31: #{clip_vision_forward.1} parent=11 // pred_region
          _
        $region32: #{clip_vision_forward.1} parent=11 // pred_fallthru
          _
        // Predicated region
        $region33: #{clip_vision_forward.1} parent=11 // pred_check
          %p646 = pneg %p157
        $region34: #{clip_vision_forward.1} parent=11 // pred_check_branch
          %648 = sbr.rel (%p646) target = $region36
        $region35: #{clip_vision_forward.1} parent=11 // pred_region
          _
        $region36: #{clip_vision_forward.1} parent=11 // pred_fallthru
          _
        // Predicated region
        $region37: #{clip_vision_forward.1} parent=11 // pred_check
          %p649 = pneg %p178
        $region38: #{clip_vision_forward.1} parent=11 // pred_check_branch
          %651 = sbr.rel (%p649) target = $region40
        $region39: #{clip_vision_forward.1} parent=11 // pred_region
          _
        $region40: #{clip_vision_forward.1} parent=11 // pred_fallthru
          _
        // Predicated region
        $region41: #{clip_vision_forward.1} parent=11 // pred_check
          %p652 = pneg %p199
        $region42: #{clip_vision_forward.1} parent=11 // pred_check_branch
          %654 = sbr.rel (%p652) target = $region44
        $region43: #{clip_vision_forward.1} parent=11 // pred_region
          _
        $region44: #{clip_vision_forward.1} parent=11 // pred_fallthru
          _
        // Predicated region
        $region45: #{clip_vision_forward.1} parent=11 // pred_check
          %p655 = pneg %p220
        $region46: #{clip_vision_forward.1} parent=11 // pred_check_branch
          %657 = sbr.rel (%p655) target = $region48
        $region47: #{clip_vision_forward.1} parent=11 // pred_region
          _
        $region48: #{clip_vision_forward.1} parent=11 // pred_fallthru
          _
        // Predicated region
        $region49: #{clip_vision_forward.1} parent=11 // pred_check
          %p658 = pneg %p553
        $region50: #{clip_vision_forward.1} parent=11 // pred_check_branch
          %660 = sbr.rel (%p658) target = $region52
        $region51: #{clip_vision_forward.1} parent=11 // pred_region
          _
        $region52: #{clip_vision_forward.1} parent=11 // pred_fallthru
          _
        // Predicated region
        $region53: #{clip_vision_forward.1} parent=11 // pred_check
          %p661 = pneg %p574
        $region54: #{clip_vision_forward.1} parent=11 // pred_check_branch
          %663 = sbr.rel (%p661) target = $region56
        $region55: #{clip_vision_forward.1} parent=11 // pred_region
          _
        $region56: #{clip_vision_forward.1} parent=11 // pred_fallthru
          _
        // Predicated region
        $region57: #{clip_vision_forward.1} parent=11 // pred_check
          %p664 = pneg %p595
        $region58: #{clip_vision_forward.1} parent=11 // pred_check_branch
          %666 = sbr.rel (%p664) target = $region60
        $region59: #{clip_vision_forward.1} parent=11 // pred_region
          _
        $region60: #{clip_vision_forward.1} parent=11 // pred_fallthru
          _
      $region12: #{clip_vision_forward.1} parent=5 // pred_fallthru
        _
      %p667 = scmp.lt.s32.totalorder %s31, 2
      // Predicated region
      $region61: #{clip_vision_forward.1} parent=5 // pred_check
        %p668 = pneg %p667
      $region62: #{clip_vision_forward.1} parent=5 // pred_check_branch
        %670 = sbr.rel (%p668) target = $region64
      $region63: #{clip_vision_forward.1} parent=5 // pred_region
        // Predicated region
        $region65: #{clip_vision_forward.1} parent=63 // pred_check
          %p671 = pneg %p240
        $region66: #{clip_vision_forward.1} parent=63 // pred_check_branch
          %673 = sbr.rel (%p671) target = $region68
        $region67: #{clip_vision_forward.1} parent=63 // pred_region
          %p674 = scmp.lt.s32.totalorder %s31, 1
          %s675 = scalar_select %p674, %s31, 1
          %s676 = scalar_lea.vmem %s9, %s675
        $region68: #{clip_vision_forward.1} parent=63 // pred_fallthru
          _
        // Predicated region
        $region69: #{clip_vision_forward.1} parent=63 // pred_check
          %p677 = pneg %p266
        $region70: #{clip_vision_forward.1} parent=63 // pred_check_branch
          %679 = sbr.rel (%p677) target = $region72
        $region71: #{clip_vision_forward.1} parent=63 // pred_region
          %p680 = scmp.lt.s32.totalorder %s31, 1
          %s681 = scalar_select %p680, %s31, 1
          %s682 = scalar_lea.vmem %s10, %s681
        $region72: #{clip_vision_forward.1} parent=63 // pred_fallthru
          _
        // Predicated region
        $region73: #{clip_vision_forward.1} parent=63 // pred_check
          %p683 = pneg %p292
        $region74: #{clip_vision_forward.1} parent=63 // pred_check_branch
          %685 = sbr.rel (%p683) target = $region76
        $region75: #{clip_vision_forward.1} parent=63 // pred_region
          %p686 = scmp.lt.s32.totalorder %s31, 1
          %s687 = scalar_select %p686, %s31, 1
          %s688 = smul.addr %s687, 4
          %s689 = smul.addr %s688, 4
          %s690 = scalar_lea.vmem %s11, %s689
        $region76: #{clip_vision_forward.1} parent=63 // pred_fallthru
          _
        // Predicated region
        $region77: #{clip_vision_forward.1} parent=63 // pred_check
          %p691 = pneg %p318
        $region78: #{clip_vision_forward.1} parent=63 // pred_check_branch
          %693 = sbr.rel (%p691) target = $region80
        $region79: #{clip_vision_forward.1} parent=63 // pred_region
          %p694 = scmp.lt.s32.totalorder %s31, 1
          %s695 = scalar_select %p694, %s31, 1
          %s696 = scalar_lea.vmem %s12, %s695
        $region80: #{clip_vision_forward.1} parent=63 // pred_fallthru
          _
        // Predicated region
        $region81: #{clip_vision_forward.1} parent=63 // pred_check
          %p697 = pneg %p344
        $region82: #{clip_vision_forward.1} parent=63 // pred_check_branch
          %699 = sbr.rel (%p697) target = $region84
        $region83: #{clip_vision_forward.1} parent=63 // pred_region
          %p700 = scmp.lt.s32.totalorder %s31, 1
          %s701 = scalar_select %p700, %s31, 1
          %s702 = smul.addr %s701, 4
          %s703 = smul.addr %s702, 4
          %s704 = scalar_lea.vmem %s13, %s703
        $region84: #{clip_vision_forward.1} parent=63 // pred_fallthru
          _
        // Predicated region
        $region85: #{clip_vision_forward.1} parent=63 // pred_check
          %p705 = pneg %p370
        $region86: #{clip_vision_forward.1} parent=63 // pred_check_branch
          %707 = sbr.rel (%p705) target = $region88
        $region87: #{clip_vision_forward.1} parent=63 // pred_region
          %p708 = scmp.lt.s32.totalorder %s31, 1
          %s709 = scalar_select %p708, %s31, 1
          %s710 = scalar_lea.vmem %s14, %s709
        $region88: #{clip_vision_forward.1} parent=63 // pred_fallthru
          _
        // Predicated region
        $region89: #{clip_vision_forward.1} parent=63 // pred_check
          %p711 = pneg %p396
        $region90: #{clip_vision_forward.1} parent=63 // pred_check_branch
          %713 = sbr.rel (%p711) target = $region92
        $region91: #{clip_vision_forward.1} parent=63 // pred_region
          %p714 = scmp.lt.s32.totalorder %s31, 1
          %s715 = scalar_select %p714, %s31, 1
          %s716 = scalar_lea.vmem %s15, %s715
        $region92: #{clip_vision_forward.1} parent=63 // pred_fallthru
          _
        // Predicated region
        $region93: #{clip_vision_forward.1} parent=63 // pred_check
          %p717 = pneg %p422
        $region94: #{clip_vision_forward.1} parent=63 // pred_check_branch
          %719 = sbr.rel (%p717) target = $region96
        $region95: #{clip_vision_forward.1} parent=63 // pred_region
          %p720 = scmp.lt.s32.totalorder %s31, 1
          %s721 = scalar_select %p720, %s31, 1
          %s722 = scalar_lea.vmem %s16, %s721
        $region96: #{clip_vision_forward.1} parent=63 // pred_fallthru
          _
        // Predicated region
        $region97: #{clip_vision_forward.1} parent=63 // pred_check
          %p723 = pneg %p448
        $region98: #{clip_vision_forward.1} parent=63 // pred_check_branch
          %725 = sbr.rel (%p723) target = $region100
        $region99: #{clip_vision_forward.1} parent=63 // pred_region
          %p726 = scmp.lt.s32.totalorder %s31, 1
          %s727 = scalar_select %p726, %s31, 1
          %s728 = smul.addr %s727, 4
          %s729 = smul.addr %s728, 4
          %s730 = scalar_lea.vmem %s17, %s729
        $region100: #{clip_vision_forward.1} parent=63 // pred_fallthru
          _
        // Predicated region
        $region101: #{clip_vision_forward.1} parent=63 // pred_check
          %p731 = pneg %p474
        $region102: #{clip_vision_forward.1} parent=63 // pred_check_branch
          %733 = sbr.rel (%p731) target = $region104
        $region103: #{clip_vision_forward.1} parent=63 // pred_region
          %p734 = scmp.lt.s32.totalorder %s31, 1
          %s735 = scalar_select %p734, %s31, 1
          %s736 = scalar_lea.vmem %s18, %s735
        $region104: #{clip_vision_forward.1} parent=63 // pred_fallthru
          _
        // Predicated region
        $region105: #{clip_vision_forward.1} parent=63 // pred_check
          %p737 = pneg %p500
        $region106: #{clip_vision_forward.1} parent=63 // pred_check_branch
          %739 = sbr.rel (%p737) target = $region108
        $region107: #{clip_vision_forward.1} parent=63 // pred_region
          %p740 = scmp.lt.s32.totalorder %s31, 1
          %s741 = scalar_select %p740, %s31, 1
          %s742 = smul.addr %s741, 16
          %s743 = smul.addr %s742, 4
          %s744 = scalar_lea.vmem %s19, %s743
        $region108: #{clip_vision_forward.1} parent=63 // pred_fallthru
          _
        // Predicated region
        $region109: #{clip_vision_forward.1} parent=63 // pred_check
          %p745 = pneg %p526
        $region110: #{clip_vision_forward.1} parent=63 // pred_check_branch
          %747 = sbr.rel (%p745) target = $region112
        $region111: #{clip_vision_forward.1} parent=63 // pred_region
          %p748 = scmp.lt.s32.totalorder %s31, 1
          %s749 = scalar_select %p748, %s31, 1
          %s750 = scalar_lea.vmem %s20, %s749
        $region112: #{clip_vision_forward.1} parent=63 // pred_fallthru
          _
      $region64: #{clip_vision_forward.1} parent=5 // pred_fallthru
        _
      %p751 = scmp.le.s32.totalorder 1, %s31
      %p752 = scmp.lt.s32.totalorder %s31, 3
      %p753 = pnand %p751, %p752
      %p754 = pneg %p753
      // Predicated region
      $region113: #{clip_vision_forward.1} parent=5 // pred_check
        _
      $region114: #{clip_vision_forward.1} parent=5 // pred_check_branch
        %756 = sbr.rel (%p753) target = $region116
      $region115: #{clip_vision_forward.1} parent=5 // pred_region
        %s757 = ssub.s32 %s31, 1
        %p758 = pneg %p52
        %p759 = pneg %p49
        %p760 = pneg %p73
        %p761 = pneg %p70
        %p762 = pneg %p94
        %p763 = pneg %p91
        %p764 = pneg %p115
        %p765 = pneg %p112
        %p766 = pneg %p136
        %p767 = pneg %p133
        %p768 = pneg %p157
        %p769 = pneg %p154
        %p770 = pneg %p178
        %p771 = pneg %p175
        %p772 = pneg %p199
        %p773 = pneg %p196
        %p774 = pneg %p220
        %p775 = pneg %p217
        %p776 = scmp.lt.s32.totalorder %s36, 1
        %s777 = scalar_select %p776, %s36, 1
        %s778 = scalar_lea.vmem %s9, %s777
        %p779 = pneg %p246
        %p780 = pneg %p243
        %p781 = scmp.lt.s32.totalorder %s36, 1
        %s782 = scalar_select %p781, %s36, 1
        %s783 = scalar_lea.vmem %s10, %s782
        %p784 = pneg %p272
        %p785 = pneg %p269
        %p786 = scmp.lt.s32.totalorder %s36, 1
        %s787 = scalar_select %p786, %s36, 1
        %s788 = smul.addr %s787, 4
        %s789 = smul.addr %s788, 4
        %s790 = scalar_lea.vmem %s11, %s789
        %p791 = pneg %p298
        %p792 = pneg %p295
        %p793 = scmp.lt.s32.totalorder %s36, 1
        %s794 = scalar_select %p793, %s36, 1
        %s795 = scalar_lea.vmem %s12, %s794
        %p796 = pneg %p324
        %p797 = pneg %p321
        %p798 = scmp.lt.s32.totalorder %s36, 1
        %s799 = scalar_select %p798, %s36, 1
        %s800 = smul.addr %s799, 4
        %s801 = smul.addr %s800, 4
        %s802 = scalar_lea.vmem %s13, %s801
        %p803 = pneg %p350
        %p804 = pneg %p347
        %p805 = scmp.lt.s32.totalorder %s36, 1
        %s806 = scalar_select %p805, %s36, 1
        %s807 = scalar_lea.vmem %s14, %s806
        %p808 = pneg %p376
        %p809 = pneg %p373
        %p810 = scmp.lt.s32.totalorder %s36, 1
        %s811 = scalar_select %p810, %s36, 1
        %s812 = scalar_lea.vmem %s15, %s811
        %p813 = pneg %p402
        %p814 = pneg %p399
        %p815 = scmp.lt.s32.totalorder %s36, 1
        %s816 = scalar_select %p815, %s36, 1
        %s817 = scalar_lea.vmem %s16, %s816
        %p818 = pneg %p428
        %p819 = pneg %p425
        %p820 = scmp.lt.s32.totalorder %s36, 1
        %s821 = scalar_select %p820, %s36, 1
        %s822 = smul.addr %s821, 4
        %s823 = smul.addr %s822, 4
        %s824 = scalar_lea.vmem %s17, %s823
        %p825 = pneg %p454
        %p826 = pneg %p451
        %p827 = scmp.lt.s32.totalorder %s36, 1
        %s828 = scalar_select %p827, %s36, 1
        %s829 = scalar_lea.vmem %s18, %s828
        %p830 = pneg %p480
        %p831 = pneg %p477
        %p832 = scmp.lt.s32.totalorder %s36, 1
        %s833 = scalar_select %p832, %s36, 1
        %s834 = smul.addr %s833, 16
        %s835 = smul.addr %s834, 4
        %s836 = scalar_lea.vmem %s19, %s835
        %p837 = pneg %p506
        %p838 = pneg %p503
        %p839 = scmp.lt.s32.totalorder %s36, 1
        %s840 = scalar_select %p839, %s36, 1
        %s841 = scalar_lea.vmem %s20, %s840
        %p842 = pneg %p532
        %p843 = pneg %p529
        %p844 = pneg %p553
        %p845 = pneg %p550
        %p846 = pneg %p574
        %p847 = pneg %p571
        %p848 = pneg %p595
        %p849 = pneg %p592
        %p850 = pneg %p616
        %p851 = pneg %p613
        %p852 = scmp.lt.s32.totalorder %s36, 1
        %s853 = scalar_select %p852, %s36, 1
        %s854 = scalar_lea.vmem %s9, %s853
        %p855 = scmp.lt.s32.totalorder %s36, 1
        %s856 = scalar_select %p855, %s36, 1
        %s857 = scalar_lea.vmem %s10, %s856
        %p858 = scmp.lt.s32.totalorder %s36, 1
        %s859 = scalar_select %p858, %s36, 1
        %s860 = smul.addr %s859, 4
        %s861 = smul.addr %s860, 4
        %s862 = scalar_lea.vmem %s11, %s861
        %p863 = scmp.lt.s32.totalorder %s36, 1
        %s864 = scalar_select %p863, %s36, 1
        %s865 = scalar_lea.vmem %s12, %s864
        %p866 = scmp.lt.s32.totalorder %s36, 1
        %s867 = scalar_select %p866, %s36, 1
        %s868 = smul.addr %s867, 4
        %s869 = smul.addr %s868, 4
        %s870 = scalar_lea.vmem %s13, %s869
        %p871 = scmp.lt.s32.totalorder %s36, 1
        %s872 = scalar_select %p871, %s36, 1
        %s873 = scalar_lea.vmem %s14, %s872
        %p874 = scmp.lt.s32.totalorder %s36, 1
        %s875 = scalar_select %p874, %s36, 1
        %s876 = scalar_lea.vmem %s15, %s875
        %p877 = scmp.lt.s32.totalorder %s36, 1
        %s878 = scalar_select %p877, %s36, 1
        %s879 = scalar_lea.vmem %s16, %s878
        %p880 = scmp.lt.s32.totalorder %s36, 1
        %s881 = scalar_select %p880, %s36, 1
        %s882 = smul.addr %s881, 4
        %s883 = smul.addr %s882, 4
        %s884 = scalar_lea.vmem %s17, %s883
        %p885 = scmp.lt.s32.totalorder %s36, 1
        %s886 = scalar_select %p885, %s36, 1
        %s887 = scalar_lea.vmem %s18, %s886
        %p888 = scmp.lt.s32.totalorder %s36, 1
        %s889 = scalar_select %p888, %s36, 1
        %s890 = smul.addr %s889, 16
        %s891 = smul.addr %s890, 4
        %s892 = scalar_lea.vmem %s19, %s891
        %p893 = scmp.lt.s32.totalorder %s36, 1
        %s894 = scalar_select %p893, %s36, 1
        %s895 = scalar_lea.vmem %s20, %s894
        %p897 = scmp.eq.s32.totalorder %s36, 0
        // Predicated region
        $region117: #{clip_vision_forward.1} parent=115 // pred_check
          %p898 = pneg %p897
        $region118: #{clip_vision_forward.1} parent=115 // pred_check_branch
          %900 = sbr.rel (%p898) target = $region120
        $region119: #{clip_vision_forward.1} parent=115 // pred_region
          %v901 = vld [vmem:[%s0] sm:$0xff]
          %v902 = vld [vmem:[%s0 + $0x8] sm:$0xff]
          %v903 = vld [vmem:[%s0 + $0x10] sm:$0xff]
          %v904 = vld [vmem:[%s0 + $0x18] sm:$0xff]
          %v905 = vld [vmem:[%s1] sm:$0x1]
          %v907 = vlaneseq
          %v908 = vshrl.u32 %v907, 7
          %v909 = vsub.s32 0, %v908
          %v910 = vrot.slane %v905, %v909
          %v912 = vsub.f32 %v901, %v910
          %v913 = vsub.f32 %v902, %v910
          %v914 = vsub.f32 %v903, %v910
          %v915 = vsub.f32 %v904, %v910
          %v916 = vld [vmem:[%s2] sm:$0x1]
          %v918 = vlaneseq
          %v919 = vshrl.u32 %v918, 7
          %v920 = vsub.s32 0, %v919
          %v921 = vrot.slane %v916, %v920
          %v923 = vmul.f32 %v912, %v921
          %v924 = vmul.f32 %v913, %v921
          %v925 = vmul.f32 %v914, %v921
          %v926 = vmul.f32 %v915, %v921
          %v927 = vpack.c.bf16 %v924, %v923
          %v928 = vpack.c.bf16 %v926, %v925
          %v929 = vld [vmem:[%s3] sm:$0xf]
          %v930 = vld [vmem:[%s3 + $0x4] sm:$0xf]
          %v931 = vld [vmem:[%s3 + $0x8] sm:$0xf]
          %v932 = vld [vmem:[%s3 + $0xc] sm:$0xf]
          %v933 = vld [vmem:[%s3 + $0x10] sm:$0xf]
          %v934 = vld [vmem:[%s3 + $0x14] sm:$0xf]
          %v935 = vld [vmem:[%s4] sm:$0x1]
          %v937 = vlaneseq
          %v938 = vshrl.u32 %v937, 7
          %v939 = vsub.s32 0, %v938
          %v940 = vrot.slane %v935, %v939
          %v948 = vunpack.c.l.b16 %v929
          %v949 = vunpack.c.l.b16 %v930
          %v950 = vunpack.c.l.b16 %v931
          %v951 = vunpack.c.l.b16 %v932
          %v952 = vunpack.c.l.b16 %v933
          %v953 = vunpack.c.l.b16 %v934
          %v954 = vpack.c.b16 %v949, %v948
          %v955 = vpack.c.b16 %v951, %v950
          %v956 = vpack.c.b16 %v953, %v952
          %vm960 = vcmask 392192
          %v962 = vsel %vm960, %v927, 0
          %v965 = vsel %vm960, %v928, 0
          %967 = vmatprep.subr.bf16.mxu0 0
          %968 = vmatpush1.bf16.msra.mxu0 %v954
          %969 = vmatprep.subr.bf16.mxu0 0
          %970 = vmatpush1.bf16.msra.mxu0 %v955
          %971 = vmatprep.subr.bf16.mxu0 0
          %972 = vmatpush1.bf16.msra.mxu0 %v956
          %973 = vmatprep.subr.bf16.mxu0 0
          %974 = vmatpush1.bf16.msra.mxu0 0
          %975 = vmatprep.subr.bf16.mxu0 0
          %976 = vmatpush1.bf16.msra.mxu0 0
          %977 = vmatprep.subr.bf16.mxu0 0
          %978 = vmatpush1.bf16.msra.mxu0 0
          %979 = vmatprep.subr.bf16.mxu0 0
          %980 = vmatpush1.bf16.msra.mxu0 0
          %981 = vmatprep.subr.bf16.mxu0 0
          %982 = vmatpush1.bf16.msra.mxu0 0
          %983 = vmatprep.subr.bf16.mxu0 0
          %984 = vmatpush1.bf16.msra.mxu0 0
          %985 = vmatprep.subr.bf16.mxu0 0
          %986 = vmatpush1.bf16.msra.mxu0 0
          %987 = vmatprep.subr.bf16.mxu0 0
          %988 = vmatpush1.bf16.msra.mxu0 0
          %989 = vmatprep.subr.bf16.mxu0 0
          %990 = vmatpush1.bf16.msra.mxu0 0
          %991 = vmatprep.subr.bf16.mxu0 0
          %992 = vmatpush1.bf16.msra.mxu0 0
          %993 = vmatprep.subr.bf16.mxu0 0
          %994 = vmatpush1.bf16.msra.mxu0 0
          %995 = vmatprep.subr.bf16.mxu0 0
          %996 = vmatpush1.bf16.msra.mxu0 0
          %997 = vmatprep.subr.bf16.mxu0 0
          %998 = vmatpush1.bf16.msra.mxu0 0
          %999 = vmatprep.mubr.bf16.mxu0 0
          %1000 = vmatmul.mubr.bf16.gmra.mrb[0].mxu0 %v962
          %v1001 = vpop.f32.mrb[0].mxu0
          %v1002 = vadd.f32 %v940, %v1001
          %v1003 = vpop.f32.mrb[0].mxu0
          %v1004 = vpop.f32.mrb[0].mxu0
          %v1005 = vadd.f32 %v940, %v1004
          %v1006 = vpop.f32.mrb[0].mxu0
          %1007 = vmatprep.mubr.bf16.mxu0 0
          %1008 = vmatmul.mubr.bf16.gmra.mrb[0].mxu0 %v965
          %v1009 = vpop.f32.mrb[0].mxu0
          %v1010 = vadd.f32 %v940, %v1009
          %v1011 = vpop.f32.mrb[0].mxu0
          %v1012 = vpop.f32.mrb[0].mxu0
          %v1013 = vadd.f32 %v940, %v1012
          %v1014 = vpop.f32.mrb[0].mxu0
          %1015 = vdwg.mxu0
          %v1016 = vld [vmem:[%s5] sm:$0x1]
          %vm1021 = vcmask 1040384
          %v1022 = vrot.slane %v1002, 7
          %v1023 = vrot.slane %v1005, 7
          %v1024 = vsel %vm1021, %v1022, %v1023
          %v1025 = vrot.slane %v1010, 7
          %v1026 = vrot.slane %v1013, 7
          %v1027 = vsel %vm1021, %v1025, %v1026
          %v1034 = vsel %vm1021, %v1016, %v1022
          %v1035 = vsel %vm1021, %v1016, %v1025
          %v1036 = vsel %vm1021, %v1023, 0.0
          %v1037 = vsel %vm1021, %v1026, 0.0
          %v1038 = vld [vmem:[%s6] sm:$0xff]
          %v1039 = vld [vmem:[%s6 + $0x8] sm:$0xff]
          %v1040 = vld [vmem:[%s6 + $0x10] sm:$0xff]
          %v1041 = vadd.f32 %v1034, %v1038
          %v1042 = vadd.f32 %v1024, %v1039
          %v1043 = vadd.f32 %v1036, %v1040
          %v1044 = vadd.f32 %v1035, %v1038
          %v1045 = vadd.f32 %v1027, %v1039
          %v1046 = vadd.f32 %v1037, %v1040
          %v1047 = vld [vmem:[%s7] sm:$0x1]
          %v1048 = vld [vmem:[%s8] sm:$0x1]
          %vm1049 = vcmask 261120
          %v1050 = vsel %vm1049, %v1041, 0.0
          %1051 = vadd.xlane.f32.xlu0 %v1050
          %v1052 = vpop.xlane.xlu0 %1051
          %v1053 = vsel %vm1049, %v1042, 0.0
          %1054 = vadd.xlane.f32.xlu0 %v1053
          %v1055 = vpop.xlane.xlu0 %1054
          %v1056 = vsel %vm1049, %v1043, 0.0
          %1057 = vadd.xlane.f32.xlu0 %v1056
          %v1058 = vpop.xlane.xlu0 %1057
          %v1059 = vsel %vm1049, %v1044, 0.0
          %1060 = vadd.xlane.f32.xlu0 %v1059
          %v1061 = vpop.xlane.xlu0 %1060
          %v1062 = vsel %vm1049, %v1045, 0.0
          %1063 = vadd.xlane.f32.xlu0 %v1062
          %v1064 = vpop.xlane.xlu0 %1063
          %v1065 = vsel %vm1049, %v1046, 0.0
          %1066 = vadd.xlane.f32.xlu0 %v1065
          %v1067 = vpop.xlane.xlu0 %1066
          %v1068 = vrcp.pop 32.0
          %v1069 = vmul.f32 %v1052, %v1068
          %v1070 = vmul.f32 %v1055, %v1068
          %v1071 = vmul.f32 %v1058, %v1068
          %v1072 = vmul.f32 %v1061, %v1068
          %v1073 = vmul.f32 %v1064, %v1068
          %v1074 = vmul.f32 %v1067, %v1068
          %v1075 = vsub.f32 %v1041, %v1069
          %v1076 = vsub.f32 %v1042, %v1070
          %v1077 = vsub.f32 %v1043, %v1071
          %v1078 = vsub.f32 %v1044, %v1072
          %v1079 = vsub.f32 %v1045, %v1073
          %v1080 = vsub.f32 %v1046, %v1074
          %v1081 = vmul.f32 %v1075, %v1075
          %v1082 = vmul.f32 %v1076, %v1076
          %v1083 = vmul.f32 %v1077, %v1077
          %v1084 = vmul.f32 %v1078, %v1078
          %v1085 = vmul.f32 %v1079, %v1079
          %v1086 = vmul.f32 %v1080, %v1080
          %v1087 = vsel %vm1049, %v1081, 0.0
          %1088 = vadd.xlane.f32.xlu0 %v1087
          %v1089 = vpop.xlane.xlu0 %1088
          %v1090 = vsel %vm1049, %v1082, 0.0
          %1091 = vadd.xlane.f32.xlu0 %v1090
          %v1092 = vpop.xlane.xlu0 %1091
          %v1093 = vsel %vm1049, %v1083, 0.0
          %1094 = vadd.xlane.f32.xlu0 %v1093
          %v1095 = vpop.xlane.xlu0 %1094
          %v1096 = vsel %vm1049, %v1084, 0.0
          %1097 = vadd.xlane.f32.xlu0 %v1096
          %v1098 = vpop.xlane.xlu0 %1097
          %v1099 = vsel %vm1049, %v1085, 0.0
          %1100 = vadd.xlane.f32.xlu0 %v1099
          %v1101 = vpop.xlane.xlu0 %1100
          %v1102 = vsel %vm1049, %v1086, 0.0
          %1103 = vadd.xlane.f32.xlu0 %v1102
          %v1104 = vpop.xlane.xlu0 %1103
          %v1105 = vmul.f32 %v1089, %v1068
          %v1106 = vmul.f32 %v1092, %v1068
          %v1107 = vmul.f32 %v1095, %v1068
          %v1108 = vmul.f32 %v1098, %v1068
          %v1109 = vmul.f32 %v1101, %v1068
          %v1110 = vmul.f32 %v1104, %v1068
          %v1111 = vadd.f32 %v1105, 1e-05
          %v1112 = vadd.f32 %v1106, 1e-05
          %v1113 = vadd.f32 %v1107, 1e-05
          %v1114 = vadd.f32 %v1108, 1e-05
          %v1115 = vadd.f32 %v1109, 1e-05
          %v1116 = vadd.f32 %v1110, 1e-05
          %v1117 = vrsqrt.pop %v1111
          %v1118 = vrsqrt.pop %v1112
          %v1119 = vrsqrt.pop %v1113
          %v1120 = vrsqrt.pop %v1114
          %v1121 = vrsqrt.pop %v1115
          %v1122 = vrsqrt.pop %v1116
          %v1123 = vmul.f32 %v1075, %v1117
          %v1124 = vmul.f32 %v1076, %v1118
          %v1125 = vmul.f32 %v1077, %v1119
          %v1126 = vmul.f32 %v1078, %v1120
          %v1127 = vmul.f32 %v1079, %v1121
          %v1128 = vmul.f32 %v1080, %v1122
          %v1130 = vlaneseq
          %v1131 = vshrl.u32 %v1130, 7
          %v1132 = vsub.s32 0, %v1131
          %v1133 = vrot.slane %v1047, %v1132
          %v1135 = vmul.f32 %v1123, %v1133
          %v1136 = vmul.f32 %v1124, %v1133
          %v1137 = vmul.f32 %v1125, %v1133
          %v1138 = vmul.f32 %v1126, %v1133
          %v1139 = vmul.f32 %v1127, %v1133
          %v1140 = vmul.f32 %v1128, %v1133
          %v1142 = vlaneseq
          %v1143 = vshrl.u32 %v1142, 7
          %v1144 = vsub.s32 0, %v1143
          %v1145 = vrot.slane %v1048, %v1144
          %v1147 = vadd.f32 %v1135, %v1145
          %v1148 = vadd.f32 %v1136, %v1145
          %v1149 = vadd.f32 %v1137, %v1145
          %v1150 = vadd.f32 %v1138, %v1145
          %v1151 = vadd.f32 %v1139, %v1145
          %v1152 = vadd.f32 %v1140, %v1145
          %1153 = vst.msk [vmem:[#allocation2] sm:$0xff] %vm1049, %v1147
          %1154 = vst.msk [vmem:[#allocation2 + $0x8] sm:$0xff] %vm1049, %v1148
          %1155 = vst.msk [vmem:[#allocation2 + $0x10] sm:$0xff] %vm1049, %v1149
          %1156 = vst.msk [vmem:[#allocation2 + $0x18] sm:$0xff] %vm1049, %v1150
          %1157 = vst.msk [vmem:[#allocation2 + $0x20] sm:$0xff] %vm1049, %v1151
          %1158 = vst.msk [vmem:[#allocation2 + $0x28] sm:$0xff] %vm1049, %v1152
        $region120: #{clip_vision_forward.1} parent=115 // pred_fallthru
          _
        %v1159 = vld [vmem:[#allocation2] sm:$0xff]
        %v1160 = vld [vmem:[#allocation2 + $0x8] sm:$0xff]
        %v1161 = vld [vmem:[#allocation2 + $0x10] sm:$0xff]
        %v1162 = vld [vmem:[#allocation2 + $0x18] sm:$0xff]
        %v1163 = vld [vmem:[#allocation2 + $0x20] sm:$0xff]
        %v1164 = vld [vmem:[#allocation2 + $0x28] sm:$0xff]
        %v1165 = vld [vmem:[%s854] sm:$0x1]
        %v1166 = vld [vmem:[%s857] sm:$0x1]
        %vm1167 = vcmask 261120
        %v1168 = vsel %vm1167, %v1159, 0.0
        %1169 = vadd.xlane.f32.xlu0 %v1168
        %v1170 = vpop.xlane.xlu0 %1169
        %v1171 = vsel %vm1167, %v1160, 0.0
        %1172 = vadd.xlane.f32.xlu0 %v1171
        %v1173 = vpop.xlane.xlu0 %1172
        %v1174 = vsel %vm1167, %v1161, 0.0
        %1175 = vadd.xlane.f32.xlu0 %v1174
        %v1176 = vpop.xlane.xlu0 %1175
        %v1177 = vsel %vm1167, %v1162, 0.0
        %1178 = vadd.xlane.f32.xlu0 %v1177
        %v1179 = vpop.xlane.xlu0 %1178
        %v1180 = vsel %vm1167, %v1163, 0.0
        %1181 = vadd.xlane.f32.xlu0 %v1180
        %v1182 = vpop.xlane.xlu0 %1181
        %v1183 = vsel %vm1167, %v1164, 0.0
        %1184 = vadd.xlane.f32.xlu0 %v1183
        %v1185 = vpop.xlane.xlu0 %1184
        %v1186 = vrcp.pop 32.0
        %v1187 = vmul.f32 %v1170, %v1186
        %v1188 = vmul.f32 %v1173, %v1186
        %v1189 = vmul.f32 %v1176, %v1186
        %v1190 = vmul.f32 %v1179, %v1186
        %v1191 = vmul.f32 %v1182, %v1186
        %v1192 = vmul.f32 %v1185, %v1186
        %v1193 = vsub.f32 %v1159, %v1187
        %v1194 = vsub.f32 %v1160, %v1188
        %v1195 = vsub.f32 %v1161, %v1189
        %v1196 = vsub.f32 %v1162, %v1190
        %v1197 = vsub.f32 %v1163, %v1191
        %v1198 = vsub.f32 %v1164, %v1192
        %v1199 = vmul.f32 %v1193, %v1193
        %v1200 = vmul.f32 %v1194, %v1194
        %v1201 = vmul.f32 %v1195, %v1195
        %v1202 = vmul.f32 %v1196, %v1196
        %v1203 = vmul.f32 %v1197, %v1197
        %v1204 = vmul.f32 %v1198, %v1198
        %v1205 = vsel %vm1167, %v1199, 0.0
        %1206 = vadd.xlane.f32.xlu0 %v1205
        %v1207 = vpop.xlane.xlu0 %1206
        %v1208 = vsel %vm1167, %v1200, 0.0
        %1209 = vadd.xlane.f32.xlu0 %v1208
        %v1210 = vpop.xlane.xlu0 %1209
        %v1211 = vsel %vm1167, %v1201, 0.0
        %1212 = vadd.xlane.f32.xlu0 %v1211
        %v1213 = vpop.xlane.xlu0 %1212
        %v1214 = vsel %vm1167, %v1202, 0.0
        %1215 = vadd.xlane.f32.xlu0 %v1214
        %v1216 = vpop.xlane.xlu0 %1215
        %v1217 = vsel %vm1167, %v1203, 0.0
        %1218 = vadd.xlane.f32.xlu0 %v1217
        %v1219 = vpop.xlane.xlu0 %1218
        %v1220 = vsel %vm1167, %v1204, 0.0
        %1221 = vadd.xlane.f32.xlu0 %v1220
        %v1222 = vpop.xlane.xlu0 %1221
        %v1223 = vmul.f32 %v1207, %v1186
        %v1224 = vmul.f32 %v1210, %v1186
        %v1225 = vmul.f32 %v1213, %v1186
        %v1226 = vmul.f32 %v1216, %v1186
        %v1227 = vmul.f32 %v1219, %v1186
        %v1228 = vmul.f32 %v1222, %v1186
        %v1229 = vadd.f32 %v1223, 1e-05
        %v1230 = vadd.f32 %v1224, 1e-05
        %v1231 = vadd.f32 %v1225, 1e-05
        %v1232 = vadd.f32 %v1226, 1e-05
        %v1233 = vadd.f32 %v1227, 1e-05
        %v1234 = vadd.f32 %v1228, 1e-05
        %v1235 = vrsqrt.pop %v1229
        %v1236 = vrsqrt.pop %v1230
        %v1237 = vrsqrt.pop %v1231
        %v1238 = vrsqrt.pop %v1232
        %v1239 = vrsqrt.pop %v1233
        %v1240 = vrsqrt.pop %v1234
        %v1241 = vmul.f32 %v1193, %v1235
        %v1242 = vmul.f32 %v1194, %v1236
        %v1243 = vmul.f32 %v1195, %v1237
        %v1244 = vmul.f32 %v1196, %v1238
        %v1245 = vmul.f32 %v1197, %v1239
        %v1246 = vmul.f32 %v1198, %v1240
        %v1248 = vlaneseq
        %v1249 = vshrl.u32 %v1248, 7
        %v1250 = vsub.s32 0, %v1249
        %v1251 = vrot.slane %v1165, %v1250
        %v1253 = vmul.f32 %v1241, %v1251
        %v1254 = vmul.f32 %v1242, %v1251
        %v1255 = vmul.f32 %v1243, %v1251
        %v1256 = vmul.f32 %v1244, %v1251
        %v1257 = vmul.f32 %v1245, %v1251
        %v1258 = vmul.f32 %v1246, %v1251
        %v1260 = vlaneseq
        %v1261 = vshrl.u32 %v1260, 7
        %v1262 = vsub.s32 0, %v1261
        %v1263 = vrot.slane %v1166, %v1262
        %v1265 = vadd.f32 %v1253, %v1263
        %v1266 = vadd.f32 %v1254, %v1263
        %v1267 = vadd.f32 %v1255, %v1263
        %v1268 = vadd.f32 %v1256, %v1263
        %v1269 = vadd.f32 %v1257, %v1263
        %v1270 = vadd.f32 %v1258, %v1263
        %v1271 = vpack.c.bf16 %v1266, %v1265
        %v1272 = vpack.c.bf16 %v1268, %v1267
        %v1273 = vpack.c.bf16 %v1270, %v1269
        %v1274 = vld [vmem:[%s862] sm:$0xf]
        %v1275 = vld [vmem:[%s862 + $0x4] sm:$0xf]
        %v1276 = vld [vmem:[%s862 + $0x8] sm:$0xf]
        %v1277 = vld [vmem:[%s862 + $0xc] sm:$0xf]
        %v1278 = vld [vmem:[%s865] sm:$0x1]
        %v1280 = vlaneseq
        %v1281 = vshrl.u32 %v1280, 7
        %v1282 = vsub.s32 0, %v1281
        %v1283 = vrot.slane %v1278, %v1282
        %v1289 = vunpack.c.l.b16 %v1274
        %v1290 = vunpack.c.l.b16 %v1275
        %v1291 = vunpack.c.l.b16 %v1276
        %v1292 = vunpack.c.l.b16 %v1277
        %v1293 = vpack.c.b16 %v1290, %v1289
        %v1294 = vpack.c.b16 %v1292, %v1291
        %v1298 = vsel %vm1167, %v1271, 0
        %v1301 = vsel %vm1167, %v1272, 0
        %v1304 = vsel %vm1167, %v1273, 0
        %1306 = vmatprep.subr.bf16.mxu0 0
        %1307 = vmatpush1.bf16.msra.mxu0 %v1293
        %1308 = vmatprep.subr.bf16.mxu0 0
        %1309 = vmatpush1.bf16.msra.mxu0 %v1294
        %1310 = vmatprep.subr.bf16.mxu0 0
        %1311 = vmatpush1.bf16.msra.mxu0 0
        %1312 = vmatprep.subr.bf16.mxu0 0
        %1313 = vmatpush1.bf16.msra.mxu0 0
        %1314 = vmatprep.subr.bf16.mxu0 0
        %1315 = vmatpush1.bf16.msra.mxu0 0
        %1316 = vmatprep.subr.bf16.mxu0 0
        %1317 = vmatpush1.bf16.msra.mxu0 0
        %1318 = vmatprep.subr.bf16.mxu0 0
        %1319 = vmatpush1.bf16.msra.mxu0 0
        %1320 = vmatprep.subr.bf16.mxu0 0
        %1321 = vmatpush1.bf16.msra.mxu0 0
        %1322 = vmatprep.subr.bf16.mxu0 0
        %1323 = vmatpush1.bf16.msra.mxu0 0
        %1324 = vmatprep.subr.bf16.mxu0 0
        %1325 = vmatpush1.bf16.msra.mxu0 0
        %1326 = vmatprep.subr.bf16.mxu0 0
        %1327 = vmatpush1.bf16.msra.mxu0 0
        %1328 = vmatprep.subr.bf16.mxu0 0
        %1329 = vmatpush1.bf16.msra.mxu0 0
        %1330 = vmatprep.subr.bf16.mxu0 0
        %1331 = vmatpush1.bf16.msra.mxu0 0
        %1332 = vmatprep.subr.bf16.mxu0 0
        %1333 = vmatpush1.bf16.msra.mxu0 0
        %1334 = vmatprep.subr.bf16.mxu0 0
        %1335 = vmatpush1.bf16.msra.mxu0 0
        %1336 = vmatprep.subr.bf16.mxu0 0
        %1337 = vmatpush1.bf16.msra.mxu0 0
        %1338 = vmatprep.mubr.bf16.mxu0 0
        %1339 = vmatmul.mubr.bf16.gmra.mrb[0].mxu0 %v1298
        %v1340 = vpop.f32.mrb[0].mxu0
        %v1341 = vadd.f32 %v1283, %v1340
        %v1342 = vpop.f32.mrb[0].mxu0
        %v1343 = vpop.f32.mrb[0].mxu0
        %v1344 = vadd.f32 %v1283, %v1343
        %v1345 = vpop.f32.mrb[0].mxu0
        %1346 = vmatprep.mubr.bf16.mxu0 0
        %1347 = vmatmul.mubr.bf16.gmra.mrb[0].mxu0 %v1301
        %v1348 = vpop.f32.mrb[0].mxu0
        %v1349 = vadd.f32 %v1283, %v1348
        %v1350 = vpop.f32.mrb[0].mxu0
        %v1351 = vpop.f32.mrb[0].mxu0
        %v1352 = vadd.f32 %v1283, %v1351
        %v1353 = vpop.f32.mrb[0].mxu0
        %1354 = vmatprep.mubr.bf16.mxu0 0
        %1355 = vmatmul.mubr.bf16.gmra.mrb[0].mxu0 %v1304
        %v1356 = vpop.f32.mrb[0].mxu0
        %v1357 = vadd.f32 %v1283, %v1356
        %v1358 = vpop.f32.mrb[0].mxu0
        %v1359 = vpop.f32.mrb[0].mxu0
        %v1360 = vadd.f32 %v1283, %v1359
        %v1361 = vpop.f32.mrb[0].mxu0
        %1362 = vdwg.mxu0
        %v1363 = vlaneseq
        %v1364 = vand.u32 %v1363, 127
        %vm1365 = vcmp.lt.s32.totalorder %v1364, 17
        %v1366 = vsel %vm1365, 0.0, -1e+30
        %v1367 = vpack.c.bf16 %v1344, %v1341
        %v1368 = vpack.c.bf16 %v1349, %v1349
        %v1369 = vpack.c.bf16 %v1357, %v1352
        %v1370 = vpack.c.bf16 %v1360, %v1360
        %1373 = vrot.lane.b32.xlu0 %v1367, 96
        %v1374 = vpop.permute.xlu0 %1373
        %1375 = vrot.lane.b32.xlu0 %v1368, 96
        %v1376 = vpop.permute.xlu0 %1375
        %vm1377 = vcmask 64512
        %v1379 = vsel %vm1377, %v1367, 0
        %v1382 = vsel %vm1377, %v1368, 0
        %v1385 = vsel %vm1377, %v1374, 0
        %v1388 = vsel %vm1377, %v1376, 0
        %1390 = vmatprep.subr.bf16.mxu0 0
        %1391 = vmatpush1.bf16.xpose.msra.mxu0 %v1385
        %1392 = vmatprep.subr.bf16.mxu0 0
        %1393 = vmatpush1.bf16.xpose.msra.mxu0 %v1388
        %1394 = vmatprep.subr.bf16.mxu0 0
        %1395 = vmatpush1.bf16.xpose.msra.mxu0 0
        %1396 = vmatprep.subr.bf16.mxu0 0
        %1397 = vmatpush1.bf16.xpose.msra.mxu0 0
        %1398 = vmatprep.subr.bf16.mxu0 0
        %1399 = vmatpush1.bf16.xpose.msra.mxu0 0
        %1400 = vmatprep.subr.bf16.mxu0 0
        %1401 = vmatpush1.bf16.xpose.msra.mxu0 0
        %1402 = vmatprep.subr.bf16.mxu0 0
        %1403 = vmatpush1.bf16.xpose.msra.mxu0 0
        %1404 = vmatprep.subr.bf16.mxu0 0
        %1405 = vmatpush1.bf16.xpose.msra.mxu0 0
        %1406 = vmatprep.subr.bf16.mxu0 0
        %1407 = vmatpush1.bf16.xpose.msra.mxu0 0
        %1408 = vmatprep.subr.bf16.mxu0 0
        %1409 = vmatpush1.bf16.xpose.msra.mxu0 0
        %1410 = vmatprep.subr.bf16.mxu0 0
        %1411 = vmatpush1.bf16.xpose.msra.mxu0 0
        %1412 = vmatprep.subr.bf16.mxu0 0
        %1413 = vmatpush1.bf16.xpose.msra.mxu0 0
        %1414 = vmatprep.subr.bf16.mxu0 0
        %1415 = vmatpush1.bf16.xpose.msra.mxu0 0
        %1416 = vmatprep.subr.bf16.mxu0 0
        %1417 = vmatpush1.bf16.xpose.msra.mxu0 0
        %1418 = vmatprep.subr.bf16.mxu0 0
        %1419 = vmatpush1.bf16.xpose.msra.mxu0 0
        %1420 = vmatprep.subr.bf16.mxu0 0
        %1421 = vmatpush1.bf16.xpose.msra.mxu0 0
        %1422 = vmatprep.mubr.bf16.mxu0 0
        %1423 = vmatmul.mubr.bf16.gmra.mrb[0].mxu0 %v1379
        %v1424 = vpop.f32.mrb[0].mxu0
        %v1425 = vadd.f32 0.0, %v1424
        %v1426 = vpop.f32.mrb[0].mxu0
        %v1427 = vpop.f32.mrb[0].mxu0
        %v1428 = vadd.f32 0.0, %v1427
        %v1429 = vpop.f32.mrb[0].mxu0
        %1430 = vmatprep.mubr.bf16.mxu0 0
        %1431 = vmatmul.mubr.bf16.gmra.mrb[0].mxu0 %v1382
        %v1432 = vpop.f32.mrb[0].mxu0
        %v1433 = vadd.f32 0.0, %v1432
        %v1434 = vpop.f32.mrb[0].mxu0
        %v1435 = vpop.f32.mrb[0].mxu0
        %v1436 = vpop.f32.mrb[0].mxu0
        %1437 = vdwg.mxu0
        %1440 = vrot.lane.b32.xlu0 %v1369, 96
        %v1441 = vpop.permute.xlu0 %1440
        %1442 = vrot.lane.b32.xlu0 %v1370, 96
        %v1443 = vpop.permute.xlu0 %1442
        %v1445 = vsel %vm1377, %v1369, 0
        %v1448 = vsel %vm1377, %v1370, 0
        %v1451 = vsel %vm1377, %v1441, 0
        %v1454 = vsel %vm1377, %v1443, 0
        %1456 = vmatprep.subr.bf16.mxu0 0
        %1457 = vmatpush1.bf16.xpose.msra.mxu0 %v1451
        %1458 = vmatprep.subr.bf16.mxu0 0
        %1459 = vmatpush1.bf16.xpose.msra.mxu0 %v1454
        %1460 = vmatprep.subr.bf16.mxu0 0
        %1461 = vmatpush1.bf16.xpose.msra.mxu0 0
        %1462 = vmatprep.subr.bf16.mxu0 0
        %1463 = vmatpush1.bf16.xpose.msra.mxu0 0
        %1464 = vmatprep.subr.bf16.mxu0 0
        %1465 = vmatpush1.bf16.xpose.msra.mxu0 0
        %1466 = vmatprep.subr.bf16.mxu0 0
        %1467 = vmatpush1.bf16.xpose.msra.mxu0 0
        %1468 = vmatprep.subr.bf16.mxu0 0
        %1469 = vmatpush1.bf16.xpose.msra.mxu0 0
        %1470 = vmatprep.subr.bf16.mxu0 0
        %1471 = vmatpush1.bf16.xpose.msra.mxu0 0
        %1472 = vmatprep.subr.bf16.mxu0 0
        %1473 = vmatpush1.bf16.xpose.msra.mxu0 0
        %1474 = vmatprep.subr.bf16.mxu0 0
        %1475 = vmatpush1.bf16.xpose.msra.mxu0 0
        %1476 = vmatprep.subr.bf16.mxu0 0
        %1477 = vmatpush1.bf16.xpose.msra.mxu0 0
        %1478 = vmatprep.subr.bf16.mxu0 0
        %1479 = vmatpush1.bf16.xpose.msra.mxu0 0
        %1480 = vmatprep.subr.bf16.mxu0 0
        %1481 = vmatpush1.bf16.xpose.msra.mxu0 0
        %1482 = vmatprep.subr.bf16.mxu0 0
        %1483 = vmatpush1.bf16.xpose.msra.mxu0 0
        %1484 = vmatprep.subr.bf16.mxu0 0
        %1485 = vmatpush1.bf16.xpose.msra.mxu0 0
        %1486 = vmatprep.subr.bf16.mxu0 0
        %1487 = vmatpush1.bf16.xpose.msra.mxu0 0
        %1488 = vmatprep.mubr.bf16.mxu0 0
        %1489 = vmatmul.mubr.bf16.gmra.mrb[0].mxu0 %v1445
        %v1490 = vpop.f32.mrb[0].mxu0
        %v1491 = vadd.f32 0.0, %v1490
        %v1492 = vpop.f32.mrb[0].mxu0
        %v1493 = vpop.f32.mrb[0].mxu0
        %v1494 = vadd.f32 0.0, %v1493
        %v1495 = vpop.f32.mrb[0].mxu0
        %1496 = vmatprep.mubr.bf16.mxu0 0
        %1497 = vmatmul.mubr.bf16.gmra.mrb[0].mxu0 %v1448
        %v1498 = vpop.f32.mrb[0].mxu0
        %v1499 = vadd.f32 0.0, %v1498
        %v1500 = vpop.f32.mrb[0].mxu0
        %v1501 = vpop.f32.mrb[0].mxu0
        %v1502 = vpop.f32.mrb[0].mxu0
        %1503 = vdwg.mxu0
        %v1504 = vmul.f32 %v1425, 0.35355338
        %v1505 = vmul.f32 %v1428, 0.35355338
        %v1506 = vmul.f32 %v1433, 0.35355338
        %v1507 = vmul.f32 %v1491, 0.35355338
        %v1508 = vmul.f32 %v1494, 0.35355338
        %v1509 = vmul.f32 %v1499, 0.35355338
        %v1510 = vadd.f32 %v1504, %v1366
        %v1511 = vadd.f32 %v1505, %v1366
        %v1512 = vadd.f32 %v1506, %v1366
        %v1513 = vadd.f32 %v1507, %v1366
        %v1514 = vadd.f32 %v1508, %v1366
        %v1515 = vadd.f32 %v1509, %v1366
        %vm1516 = vcmask 195584
        %v1517 = vsel %vm1516, %v1510, -inf
        %1518 = vmax.xlane.f32.xlu0 %v1517
        %v1519 = vpop.xlane.xlu0 %1518
        %v1520 = vsel %vm1516, %v1511, -inf
        %1521 = vmax.xlane.f32.xlu0 %v1520
        %v1522 = vpop.xlane.xlu0 %1521
        %v1523 = vsel %vm1516, %v1512, -inf
        %1524 = vmax.xlane.f32.xlu0 %v1523
        %v1525 = vpop.xlane.xlu0 %1524
        %v1526 = vsel %vm1516, %v1513, -inf
        %1527 = vmax.xlane.f32.xlu0 %v1526
        %v1528 = vpop.xlane.xlu0 %1527
        %v1529 = vsel %vm1516, %v1514, -inf
        %1530 = vmax.xlane.f32.xlu0 %v1529
        %v1531 = vpop.xlane.xlu0 %1530
        %v1532 = vsel %vm1516, %v1515, -inf
        %1533 = vmax.xlane.f32.xlu0 %v1532
        %v1534 = vpop.xlane.xlu0 %1533
        %v1535 = vsub.f32 %v1510, %v1519
        %v1536 = vsub.f32 %v1511, %v1522
        %v1537 = vsub.f32 %v1512, %v1525
        %v1538 = vsub.f32 %v1513, %v1528
        %v1539 = vsub.f32 %v1514, %v1531
        %v1540 = vsub.f32 %v1515, %v1534
        %v1541 = vmul.f32 %v1535, 1.442695
        %v1542 = vpow.pop %v1541
        %v1543 = vmul.f32 %v1536, 1.442695
        %v1544 = vpow.pop %v1543
        %v1545 = vmul.f32 %v1537, 1.442695
        %v1546 = vpow.pop %v1545
        %v1547 = vmul.f32 %v1538, 1.442695
        %v1548 = vpow.pop %v1547
        %v1549 = vmul.f32 %v1539, 1.442695
        %v1550 = vpow.pop %v1549
        %v1551 = vmul.f32 %v1540, 1.442695
        %v1552 = vpow.pop %v1551
        %v1553 = vsel %vm1516, %v1542, 0.0
        %1554 = vadd.xlane.f32.xlu0 %v1553
        %v1555 = vpop.xlane.xlu0 %1554
        %v1556 = vsel %vm1516, %v1544, 0.0
        %1557 = vadd.xlane.f32.xlu0 %v1556
        %v1558 = vpop.xlane.xlu0 %1557
        %v1559 = vsel %vm1516, %v1546, 0.0
        %1560 = vadd.xlane.f32.xlu0 %v1559
        %v1561 = vpop.xlane.xlu0 %1560
        %v1562 = vsel %vm1516, %v1548, 0.0
        %1563 = vadd.xlane.f32.xlu0 %v1562
        %v1564 = vpop.xlane.xlu0 %1563
        %v1565 = vsel %vm1516, %v1550, 0.0
        %1566 = vadd.xlane.f32.xlu0 %v1565
        %v1567 = vpop.xlane.xlu0 %1566
        %v1568 = vsel %vm1516, %v1552, 0.0
        %1569 = vadd.xlane.f32.xlu0 %v1568
        %v1570 = vpop.xlane.xlu0 %1569
        %v1571 = vrcp.pop %v1555
        %v1572 = vmul.f32 %v1542, %v1571
        %v1573 = vrcp.pop %v1558
        %v1574 = vmul.f32 %v1544, %v1573
        %v1575 = vrcp.pop %v1561
        %v1576 = vmul.f32 %v1546, %v1575
        %v1577 = vrcp.pop %v1564
        %v1578 = vmul.f32 %v1548, %v1577
        %v1579 = vrcp.pop %v1567
        %v1580 = vmul.f32 %v1550, %v1579
        %v1581 = vrcp.pop %v1570
        %v1582 = vmul.f32 %v1552, %v1581
        %v1583 = vpack.c.bf16 %v1574, %v1572
        %v1584 = vpack.c.bf16 %v1576, %v1576
        %v1585 = vpack.c.bf16 %v1580, %v1578
        %v1586 = vpack.c.bf16 %v1582, %v1582
        %1587 = vrot.lane.b32.xlu0 %v1367, 64
        %v1588 = vpop.permute.xlu0 %1587
        %1589 = vrot.lane.b32.xlu0 %v1368, 64
        %v1590 = vpop.permute.xlu0 %1589
        %v1593 = vsel %vm1516, %v1583, 0
        %v1596 = vsel %vm1516, %v1584, 0
        %vm1598 = vcmask 1043456
        %v1600 = vsel %vm1598, %v1590, 0
        %1602 = vmatprep.subr.bf16.mxu0 0
        %1603 = vmatpush1.bf16.msra.mxu0 %v1588
        %1604 = vmatprep.subr.bf16.mxu0 0
        %1605 = vmatpush1.bf16.msra.mxu0 %v1600
        %1606 = vmatprep.subr.bf16.mxu0 0
        %1607 = vmatpush1.bf16.msra.mxu0 0
        %1608 = vmatprep.subr.bf16.mxu0 0
        %1609 = vmatpush1.bf16.msra.mxu0 0
        %1610 = vmatprep.subr.bf16.mxu0 0
        %1611 = vmatpush1.bf16.msra.mxu0 0
        %1612 = vmatprep.subr.bf16.mxu0 0
        %1613 = vmatpush1.bf16.msra.mxu0 0
        %1614 = vmatprep.subr.bf16.mxu0 0
        %1615 = vmatpush1.bf16.msra.mxu0 0
        %1616 = vmatprep.subr.bf16.mxu0 0
        %1617 = vmatpush1.bf16.msra.mxu0 0
        %1618 = vmatprep.subr.bf16.mxu0 0
        %1619 = vmatpush1.bf16.msra.mxu0 0
        %1620 = vmatprep.subr.bf16.mxu0 0
        %1621 = vmatpush1.bf16.msra.mxu0 0
        %1622 = vmatprep.subr.bf16.mxu0 0
        %1623 = vmatpush1.bf16.msra.mxu0 0
        %1624 = vmatprep.subr.bf16.mxu0 0
        %1625 = vmatpush1.bf16.msra.mxu0 0
        %1626 = vmatprep.subr.bf16.mxu0 0
        %1627 = vmatpush1.bf16.msra.mxu0 0
        %1628 = vmatprep.subr.bf16.mxu0 0
        %1629 = vmatpush1.bf16.msra.mxu0 0
        %1630 = vmatprep.subr.bf16.mxu0 0
        %1631 = vmatpush1.bf16.msra.mxu0 0
        %1632 = vmatprep.subr.bf16.mxu0 0
        %1633 = vmatpush1.bf16.msra.mxu0 0
        %1634 = vmatprep.mubr.bf16.mxu0 0
        %1635 = vmatmul.mubr.bf16.gmra.mrb[0].mxu0 %v1593
        %v1636 = vpop.f32.mrb[0].mxu0
        %v1637 = vadd.f32 0.0, %v1636
        %v1638 = vpop.f32.mrb[0].mxu0
        %v1639 = vpop.f32.mrb[0].mxu0
        %v1640 = vadd.f32 0.0, %v1639
        %v1641 = vpop.f32.mrb[0].mxu0
        %1642 = vmatprep.mubr.bf16.mxu0 0
        %1643 = vmatmul.mubr.bf16.gmra.mrb[0].mxu0 %v1596
        %v1644 = vpop.f32.mrb[0].mxu0
        %v1645 = vadd.f32 0.0, %v1644
        %v1646 = vpop.f32.mrb[0].mxu0
        %v1647 = vpop.f32.mrb[0].mxu0
        %v1648 = vpop.f32.mrb[0].mxu0
        %1649 = vdwg.mxu0
        %1650 = vrot.lane.b32.xlu0 %v1369, 64
        %v1651 = vpop.permute.xlu0 %1650
        %1652 = vrot.lane.b32.xlu0 %v1370, 64
        %v1653 = vpop.permute.xlu0 %1652
        %v1656 = vsel %vm1516, %v1585, 0
        %v1659 = vsel %vm1516, %v1586, 0
        %v1662 = vsel %vm1598, %v1653, 0
        %1664 = vmatprep.subr.bf16.mxu0 0
        %1665 = vmatpush1.bf16.msra.mxu0 %v1651
        %1666 = vmatprep.subr.bf16.mxu0 0
        %1667 = vmatpush1.bf16.msra.mxu0 %v1662
        %1668 = vmatprep.subr.bf16.mxu0 0
        %1669 = vmatpush1.bf16.msra.mxu0 0
        %1670 = vmatprep.subr.bf16.mxu0 0
        %1671 = vmatpush1.bf16.msra.mxu0 0
        %1672 = vmatprep.subr.bf16.mxu0 0
        %1673 = vmatpush1.bf16.msra.mxu0 0
        %1674 = vmatprep.subr.bf16.mxu0 0
        %1675 = vmatpush1.bf16.msra.mxu0 0
        %1676 = vmatprep.subr.bf16.mxu0 0
        %1677 = vmatpush1.bf16.msra.mxu0 0
        %1678 = vmatprep.subr.bf16.mxu0 0
        %1679 = vmatpush1.bf16.msra.mxu0 0
        %1680 = vmatprep.subr.bf16.mxu0 0
        %1681 = vmatpush1.bf16.msra.mxu0 0
        %1682 = vmatprep.subr.bf16.mxu0 0
        %1683 = vmatpush1.bf16.msra.mxu0 0
        %1684 = vmatprep.subr.bf16.mxu0 0
        %1685 = vmatpush1.bf16.msra.mxu0 0
        %1686 = vmatprep.subr.bf16.mxu0 0
        %1687 = vmatpush1.bf16.msra.mxu0 0
        %1688 = vmatprep.subr.bf16.mxu0 0
        %1689 = vmatpush1.bf16.msra.mxu0 0
        %1690 = vmatprep.subr.bf16.mxu0 0
        %1691 = vmatpush1.bf16.msra.mxu0 0
        %1692 = vmatprep.subr.bf16.mxu0 0
        %1693 = vmatpush1.bf16.msra.mxu0 0
        %1694 = vmatprep.subr.bf16.mxu0 0
        %1695 = vmatpush1.bf16.msra.mxu0 0
        %1696 = vmatprep.mubr.bf16.mxu0 0
        %1697 = vmatmul.mubr.bf16.gmra.mrb[0].mxu0 %v1656
        %v1698 = vpop.f32.mrb[0].mxu0
        %v1699 = vadd.f32 0.0, %v1698
        %v1700 = vpop.f32.mrb[0].mxu0
        %v1701 = vpop.f32.mrb[0].mxu0
        %v1702 = vadd.f32 0.0, %v1701
        %v1703 = vpop.f32.mrb[0].mxu0
        %1704 = vmatprep.mubr.bf16.mxu0 0
        %1705 = vmatmul.mubr.bf16.gmra.mrb[0].mxu0 %v1659
        %v1706 = vpop.f32.mrb[0].mxu0
        %v1707 = vadd.f32 0.0, %v1706
        %v1708 = vpop.f32.mrb[0].mxu0
        %v1709 = vpop.f32.mrb[0].mxu0
        %v1710 = vpop.f32.mrb[0].mxu0
        %1711 = vdwg.mxu0
        %1712 = vrot.lane.b32.xlu0 %v1367, 120
        %v1713 = vpop.permute.xlu0 %1712
        %1714 = vrot.lane.b32.xlu0 %v1368, 120
        %v1715 = vpop.permute.xlu0 %1714
        %1716 = vrot.lane.b32.xlu0 %v1367, 88
        %v1717 = vpop.permute.xlu0 %1716
        %1718 = vrot.lane.b32.xlu0 %v1368, 88
        %v1719 = vpop.permute.xlu0 %1718
        %v1721 = vsel %vm1377, %v1713, 0
        %v1724 = vsel %vm1377, %v1715, 0
        %v1727 = vsel %vm1377, %v1717, 0
        %v1730 = vsel %vm1377, %v1719, 0
        %1732 = vmatprep.subr.bf16.mxu0 0
        %1733 = vmatpush1.bf16.xpose.msra.mxu0 %v1727
        %1734 = vmatprep.subr.bf16.mxu0 0
        %1735 = vmatpush1.bf16.xpose.msra.mxu0 %v1730
        %1736 = vmatprep.subr.bf16.mxu0 0
        %1737 = vmatpush1.bf16.xpose.msra.mxu0 0
        %1738 = vmatprep.subr.bf16.mxu0 0
        %1739 = vmatpush1.bf16.xpose.msra.mxu0 0
        %1740 = vmatprep.subr.bf16.mxu0 0
        %1741 = vmatpush1.bf16.xpose.msra.mxu0 0
        %1742 = vmatprep.subr.bf16.mxu0 0
        %1743 = vmatpush1.bf16.xpose.msra.mxu0 0
        %1744 = vmatprep.subr.bf16.mxu0 0
        %1745 = vmatpush1.bf16.xpose.msra.mxu0 0
        %1746 = vmatprep.subr.bf16.mxu0 0
        %1747 = vmatpush1.bf16.xpose.msra.mxu0 0
        %1748 = vmatprep.subr.bf16.mxu0 0
        %1749 = vmatpush1.bf16.xpose.msra.mxu0 0
        %1750 = vmatprep.subr.bf16.mxu0 0
        %1751 = vmatpush1.bf16.xpose.msra.mxu0 0
        %1752 = vmatprep.subr.bf16.mxu0 0
        %1753 = vmatpush1.bf16.xpose.msra.mxu0 0
        %1754 = vmatprep.subr.bf16.mxu0 0
        %1755 = vmatpush1.bf16.xpose.msra.mxu0 0
        %1756 = vmatprep.subr.bf16.mxu0 0
        %1757 = vmatpush1.bf16.xpose.msra.mxu0 0
        %1758 = vmatprep.subr.bf16.mxu0 0
        %1759 = vmatpush1.bf16.xpose.msra.mxu0 0
        %1760 = vmatprep.subr.bf16.mxu0 0
        %1761 = vmatpush1.bf16.xpose.msra.mxu0 0
        %1762 = vmatprep.subr.bf16.mxu0 0
        %1763 = vmatpush1.bf16.xpose.msra.mxu0 0
        %1764 = vmatprep.mubr.bf16.mxu0 0
        %1765 = vmatmul.mubr.bf16.gmra.mrb[0].mxu0 %v1721
        %v1766 = vpop.f32.mrb[0].mxu0
        %v1767 = vadd.f32 0.0, %v1766
        %v1768 = vpop.f32.mrb[0].mxu0
        %v1769 = vpop.f32.mrb[0].mxu0
        %v1770 = vadd.f32 0.0, %v1769
        %v1771 = vpop.f32.mrb[0].mxu0
        %1772 = vmatprep.mubr.bf16.mxu0 0
        %1773 = vmatmul.mubr.bf16.gmra.mrb[0].mxu0 %v1724
        %v1774 = vpop.f32.mrb[0].mxu0
        %v1775 = vadd.f32 0.0, %v1774
        %v1776 = vpop.f32.mrb[0].mxu0
        %v1777 = vpop.f32.mrb[0].mxu0
        %v1778 = vpop.f32.mrb[0].mxu0
        %1779 = vdwg.mxu0
        %1780 = vrot.lane.b32.xlu0 %v1369, 120
        %v1781 = vpop.permute.xlu0 %1780
        %1782 = vrot.lane.b32.xlu0 %v1370, 120
        %v1783 = vpop.permute.xlu0 %1782
        %1784 = vrot.lane.b32.xlu0 %v1369, 88
        %v1785 = vpop.permute.xlu0 %1784
        %1786 = vrot.lane.b32.xlu0 %v1370, 88
        %v1787 = vpop.permute.xlu0 %1786
        %v1789 = vsel %vm1377, %v1781, 0
        %v1792 = vsel %vm1377, %v1783, 0
        %v1795 = vsel %vm1377, %v1785, 0
        %v1798 = vsel %vm1377, %v1787, 0
        %1800 = vmatprep.subr.bf16.mxu0 0
        %1801 = vmatpush1.bf16.xpose.msra.mxu0 %v1795
        %1802 = vmatprep.subr.bf16.mxu0 0
        %1803 = vmatpush1.bf16.xpose.msra.mxu0 %v1798
        %1804 = vmatprep.subr.bf16.mxu0 0
        %1805 = vmatpush1.bf16.xpose.msra.mxu0 0
        %1806 = vmatprep.subr.bf16.mxu0 0
        %1807 = vmatpush1.bf16.xpose.msra.mxu0 0
        %1808 = vmatprep.subr.bf16.mxu0 0
        %1809 = vmatpush1.bf16.xpose.msra.mxu0 0
        %1810 = vmatprep.subr.bf16.mxu0 0
        %1811 = vmatpush1.bf16.xpose.msra.mxu0 0
        %1812 = vmatprep.subr.bf16.mxu0 0
        %1813 = vmatpush1.bf16.xpose.msra.mxu0 0
        %1814 = vmatprep.subr.bf16.mxu0 0
        %1815 = vmatpush1.bf16.xpose.msra.mxu0 0
        %1816 = vmatprep.subr.bf16.mxu0 0
        %1817 = vmatpush1.bf16.xpose.msra.mxu0 0
        %1818 = vmatprep.subr.bf16.mxu0 0
        %1819 = vmatpush1.bf16.xpose.msra.mxu0 0
        %1820 = vmatprep.subr.bf16.mxu0 0
        %1821 = vmatpush1.bf16.xpose.msra.mxu0 0
        %1822 = vmatprep.subr.bf16.mxu0 0
        %1823 = vmatpush1.bf16.xpose.msra.mxu0 0
        %1824 = vmatprep.subr.bf16.mxu0 0
        %1825 = vmatpush1.bf16.xpose.msra.mxu0 0
        %1826 = vmatprep.subr.bf16.mxu0 0
        %1827 = vmatpush1.bf16.xpose.msra.mxu0 0
        %1828 = vmatprep.subr.bf16.mxu0 0
        %1829 = vmatpush1.bf16.xpose.msra.mxu0 0
        %1830 = vmatprep.subr.bf16.mxu0 0
        %1831 = vmatpush1.bf16.xpose.msra.mxu0 0
        %1832 = vmatprep.mubr.bf16.mxu0 0
        %1833 = vmatmul.mubr.bf16.gmra.mrb[0].mxu0 %v1789
        %v1834 = vpop.f32.mrb[0].mxu0
        %v1835 = vadd.f32 0.0, %v1834
        %v1836 = vpop.f32.mrb[0].mxu0
        %v1837 = vpop.f32.mrb[0].mxu0
        %v1838 = vadd.f32 0.0, %v1837
        %v1839 = vpop.f32.mrb[0].mxu0
        %1840 = vmatprep.mubr.bf16.mxu0 0
        %1841 = vmatmul.mubr.bf16.gmra.mrb[0].mxu0 %v1792
        %v1842 = vpop.f32.mrb[0].mxu0
        %v1843 = vadd.f32 0.0, %v1842
        %v1844 = vpop.f32.mrb[0].mxu0
        %v1845 = vpop.f32.mrb[0].mxu0
        %v1846 = vpop.f32.mrb[0].mxu0
        %1847 = vdwg.mxu0
        %v1848 = vmul.f32 %v1767, 0.35355338
        %v1849 = vmul.f32 %v1770, 0.35355338
        %v1850 = vmul.f32 %v1775, 0.35355338
        %v1851 = vmul.f32 %v1835, 0.35355338
        %v1852 = vmul.f32 %v1838, 0.35355338
        %v1853 = vmul.f32 %v1843, 0.35355338
        %v1854 = vadd.f32 %v1848, %v1366
        %v1855 = vadd.f32 %v1849, %v1366
        %v1856 = vadd.f32 %v1850, %v1366
        %v1857 = vadd.f32 %v1851, %v1366
        %v1858 = vadd.f32 %v1852, %v1366
        %v1859 = vadd.f32 %v1853, %v1366
        %v1860 = vsel %vm1516, %v1854, -inf
        %1861 = vmax.xlane.f32.xlu0 %v1860
        %v1862 = vpop.xlane.xlu0 %1861
        %v1863 = vsel %vm1516, %v1855, -inf
        %1864 = vmax.xlane.f32.xlu0 %v1863
        %v1865 = vpop.xlane.xlu0 %1864
        %v1866 = vsel %vm1516, %v1856, -inf
        %1867 = vmax.xlane.f32.xlu0 %v1866
        %v1868 = vpop.xlane.xlu0 %1867
        %v1869 = vsel %vm1516, %v1857, -inf
        %1870 = vmax.xlane.f32.xlu0 %v1869
        %v1871 = vpop.xlane.xlu0 %1870
        %v1872 = vsel %vm1516, %v1858, -inf
        %1873 = vmax.xlane.f32.xlu0 %v1872
        %v1874 = vpop.xlane.xlu0 %1873
        %v1875 = vsel %vm1516, %v1859, -inf
        %1876 = vmax.xlane.f32.xlu0 %v1875
        %v1877 = vpop.xlane.xlu0 %1876
        %v1878 = vsub.f32 %v1854, %v1862
        %v1879 = vsub.f32 %v1855, %v1865
        %v1880 = vsub.f32 %v1856, %v1868
        %v1881 = vsub.f32 %v1857, %v1871
        %v1882 = vsub.f32 %v1858, %v1874
        %v1883 = vsub.f32 %v1859, %v1877
        %v1884 = vmul.f32 %v1878, 1.442695
        %v1885 = vpow.pop %v1884
        %v1886 = vmul.f32 %v1879, 1.442695
        %v1887 = vpow.pop %v1886
        %v1888 = vmul.f32 %v1880, 1.442695
        %v1889 = vpow.pop %v1888
        %v1890 = vmul.f32 %v1881, 1.442695
        %v1891 = vpow.pop %v1890
        %v1892 = vmul.f32 %v1882, 1.442695
        %v1893 = vpow.pop %v1892
        %v1894 = vmul.f32 %v1883, 1.442695
        %v1895 = vpow.pop %v1894
        %v1896 = vsel %vm1516, %v1885, 0.0
        %1897 = vadd.xlane.f32.xlu0 %v1896
        %v1898 = vpop.xlane.xlu0 %1897
        %v1899 = vsel %vm1516, %v1887, 0.0
        %1900 = vadd.xlane.f32.xlu0 %v1899
        %v1901 = vpop.xlane.xlu0 %1900
        %v1902 = vsel %vm1516, %v1889, 0.0
        %1903 = vadd.xlane.f32.xlu0 %v1902
        %v1904 = vpop.xlane.xlu0 %1903
        %v1905 = vsel %vm1516, %v1891, 0.0
        %1906 = vadd.xlane.f32.xlu0 %v1905
        %v1907 = vpop.xlane.xlu0 %1906
        %v1908 = vsel %vm1516, %v1893, 0.0
        %1909 = vadd.xlane.f32.xlu0 %v1908
        %v1910 = vpop.xlane.xlu0 %1909
        %v1911 = vsel %vm1516, %v1895, 0.0
        %1912 = vadd.xlane.f32.xlu0 %v1911
        %v1913 = vpop.xlane.xlu0 %1912
        %v1914 = vrcp.pop %v1898
        %v1915 = vmul.f32 %v1885, %v1914
        %v1916 = vrcp.pop %v1901
        %v1917 = vmul.f32 %v1887, %v1916
        %v1918 = vrcp.pop %v1904
        %v1919 = vmul.f32 %v1889, %v1918
        %v1920 = vrcp.pop %v1907
        %v1921 = vmul.f32 %v1891, %v1920
        %v1922 = vrcp.pop %v1910
        %v1923 = vmul.f32 %v1893, %v1922
        %v1924 = vrcp.pop %v1913
        %v1925 = vmul.f32 %v1895, %v1924
        %v1926 = vpack.c.bf16 %v1917, %v1915
        %v1927 = vpack.c.bf16 %v1919, %v1919
        %v1928 = vpack.c.bf16 %v1923, %v1921
        %v1929 = vpack.c.bf16 %v1925, %v1925
        %1930 = vrot.lane.b32.xlu0 %v1367, 56
        %v1931 = vpop.permute.xlu0 %1930
        %1932 = vrot.lane.b32.xlu0 %v1368, 56
        %v1933 = vpop.permute.xlu0 %1932
        %v1936 = vsel %vm1516, %v1926, 0
        %v1939 = vsel %vm1516, %v1927, 0
        %v1942 = vsel %vm1598, %v1933, 0
        %1944 = vmatprep.subr.bf16.mxu0 0
        %1945 = vmatpush1.bf16.msra.mxu0 %v1931
        %1946 = vmatprep.subr.bf16.mxu0 0
        %1947 = vmatpush1.bf16.msra.mxu0 %v1942
        %1948 = vmatprep.subr.bf16.mxu0 0
        %1949 = vmatpush1.bf16.msra.mxu0 0
        %1950 = vmatprep.subr.bf16.mxu0 0
        %1951 = vmatpush1.bf16.msra.mxu0 0
        %1952 = vmatprep.subr.bf16.mxu0 0
        %1953 = vmatpush1.bf16.msra.mxu0 0
        %1954 = vmatprep.subr.bf16.mxu0 0
        %1955 = vmatpush1.bf16.msra.mxu0 0
        %1956 = vmatprep.subr.bf16.mxu0 0
        %1957 = vmatpush1.bf16.msra.mxu0 0
        %1958 = vmatprep.subr.bf16.mxu0 0
        %1959 = vmatpush1.bf16.msra.mxu0 0
        %1960 = vmatprep.subr.bf16.mxu0 0
        %1961 = vmatpush1.bf16.msra.mxu0 0
        %1962 = vmatprep.subr.bf16.mxu0 0
        %1963 = vmatpush1.bf16.msra.mxu0 0
        %1964 = vmatprep.subr.bf16.mxu0 0
        %1965 = vmatpush1.bf16.msra.mxu0 0
        %1966 = vmatprep.subr.bf16.mxu0 0
        %1967 = vmatpush1.bf16.msra.mxu0 0
        %1968 = vmatprep.subr.bf16.mxu0 0
        %1969 = vmatpush1.bf16.msra.mxu0 0
        %1970 = vmatprep.subr.bf16.mxu0 0
        %1971 = vmatpush1.bf16.msra.mxu0 0
        %1972 = vmatprep.subr.bf16.mxu0 0
        %1973 = vmatpush1.bf16.msra.mxu0 0
        %1974 = vmatprep.subr.bf16.mxu0 0
        %1975 = vmatpush1.bf16.msra.mxu0 0
        %1976 = vmatprep.mubr.bf16.mxu0 0
        %1977 = vmatmul.mubr.bf16.gmra.mrb[0].mxu0 %v1936
        %v1978 = vpop.f32.mrb[0].mxu0
        %v1979 = vadd.f32 0.0, %v1978
        %v1980 = vpop.f32.mrb[0].mxu0
        %v1981 = vpop.f32.mrb[0].mxu0
        %v1982 = vadd.f32 0.0, %v1981
        %v1983 = vpop.f32.mrb[0].mxu0
        %1984 = vmatprep.mubr.bf16.mxu0 0
        %1985 = vmatmul.mubr.bf16.gmra.mrb[0].mxu0 %v1939
        %v1986 = vpop.f32.mrb[0].mxu0
        %v1987 = vadd.f32 0.0, %v1986
        %v1988 = vpop.f32.mrb[0].mxu0
        %v1989 = vpop.f32.mrb[0].mxu0
        %v1990 = vpop.f32.mrb[0].mxu0
        %1991 = vdwg.mxu0
        %1992 = vrot.lane.b32.xlu0 %v1369, 56
        %v1993 = vpop.permute.xlu0 %1992
        %1994 = vrot.lane.b32.xlu0 %v1370, 56
        %v1995 = vpop.permute.xlu0 %1994
        %v1998 = vsel %vm1516, %v1928, 0
        %v2001 = vsel %vm1516, %v1929, 0
        %v2004 = vsel %vm1598, %v1995, 0
        %2006 = vmatprep.subr.bf16.mxu0 0
        %2007 = vmatpush1.bf16.msra.mxu0 %v1993
        %2008 = vmatprep.subr.bf16.mxu0 0
        %2009 = vmatpush1.bf16.msra.mxu0 %v2004
        %2010 = vmatprep.subr.bf16.mxu0 0
        %2011 = vmatpush1.bf16.msra.mxu0 0
        %2012 = vmatprep.subr.bf16.mxu0 0
        %2013 = vmatpush1.bf16.msra.mxu0 0
        %2014 = vmatprep.subr.bf16.mxu0 0
        %2015 = vmatpush1.bf16.msra.mxu0 0
        %2016 = vmatprep.subr.bf16.mxu0 0
        %2017 = vmatpush1.bf16.msra.mxu0 0
        %2018 = vmatprep.subr.bf16.mxu0 0
        %2019 = vmatpush1.bf16.msra.mxu0 0
        %2020 = vmatprep.subr.bf16.mxu0 0
        %2021 = vmatpush1.bf16.msra.mxu0 0
        %2022 = vmatprep.subr.bf16.mxu0 0
        %2023 = vmatpush1.bf16.msra.mxu0 0
        %2024 = vmatprep.subr.bf16.mxu0 0
        %2025 = vmatpush1.bf16.msra.mxu0 0
        %2026 = vmatprep.subr.bf16.mxu0 0
        %2027 = vmatpush1.bf16.msra.mxu0 0
        %2028 = vmatprep.subr.bf16.mxu0 0
        %2029 = vmatpush1.bf16.msra.mxu0 0
        %2030 = vmatprep.subr.bf16.mxu0 0
        %2031 = vmatpush1.bf16.msra.mxu0 0
        %2032 = vmatprep.subr.bf16.mxu0 0
        %2033 = vmatpush1.bf16.msra.mxu0 0
        %2034 = vmatprep.subr.bf16.mxu0 0
        %2035 = vmatpush1.bf16.msra.mxu0 0
        %2036 = vmatprep.subr.bf16.mxu0 0
        %2037 = vmatpush1.bf16.msra.mxu0 0
        %2038 = vmatprep.mubr.bf16.mxu0 0
        %2039 = vmatmul.mubr.bf16.gmra.mrb[0].mxu0 %v1998
        %v2040 = vpop.f32.mrb[0].mxu0
        %v2041 = vadd.f32 0.0, %v2040
        %v2042 = vpop.f32.mrb[0].mxu0
        %v2043 = vpop.f32.mrb[0].mxu0
        %v2044 = vadd.f32 0.0, %v2043
        %v2045 = vpop.f32.mrb[0].mxu0
        %2046 = vmatprep.mubr.bf16.mxu0 0
        %2047 = vmatmul.mubr.bf16.gmra.mrb[0].mxu0 %v2001
        %v2048 = vpop.f32.mrb[0].mxu0
        %v2049 = vadd.f32 0.0, %v2048
        %v2050 = vpop.f32.mrb[0].mxu0
        %v2051 = vpop.f32.mrb[0].mxu0
        %v2052 = vpop.f32.mrb[0].mxu0
        %2053 = vdwg.mxu0
        %2054 = vrot.lane.b32.xlu0 %v1367, 112
        %v2055 = vpop.permute.xlu0 %2054
        %2056 = vrot.lane.b32.xlu0 %v1368, 112
        %v2057 = vpop.permute.xlu0 %2056
        %2058 = vrot.lane.b32.xlu0 %v1367, 80
        %v2059 = vpop.permute.xlu0 %2058
        %2060 = vrot.lane.b32.xlu0 %v1368, 80
        %v2061 = vpop.permute.xlu0 %2060
        %v2063 = vsel %vm1377, %v2055, 0
        %v2066 = vsel %vm1377, %v2057, 0
        %v2069 = vsel %vm1377, %v2059, 0
        %v2072 = vsel %vm1377, %v2061, 0
        %2074 = vmatprep.subr.bf16.mxu0 0
        %2075 = vmatpush1.bf16.xpose.msra.mxu0 %v2069
        %2076 = vmatprep.subr.bf16.mxu0 0
        %2077 = vmatpush1.bf16.xpose.msra.mxu0 %v2072
        %2078 = vmatprep.subr.bf16.mxu0 0
        %2079 = vmatpush1.bf16.xpose.msra.mxu0 0
        %2080 = vmatprep.subr.bf16.mxu0 0
        %2081 = vmatpush1.bf16.xpose.msra.mxu0 0
        %2082 = vmatprep.subr.bf16.mxu0 0
        %2083 = vmatpush1.bf16.xpose.msra.mxu0 0
        %2084 = vmatprep.subr.bf16.mxu0 0
        %2085 = vmatpush1.bf16.xpose.msra.mxu0 0
        %2086 = vmatprep.subr.bf16.mxu0 0
        %2087 = vmatpush1.bf16.xpose.msra.mxu0 0
        %2088 = vmatprep.subr.bf16.mxu0 0
        %2089 = vmatpush1.bf16.xpose.msra.mxu0 0
        %2090 = vmatprep.subr.bf16.mxu0 0
        %2091 = vmatpush1.bf16.xpose.msra.mxu0 0
        %2092 = vmatprep.subr.bf16.mxu0 0
        %2093 = vmatpush1.bf16.xpose.msra.mxu0 0
        %2094 = vmatprep.subr.bf16.mxu0 0
        %2095 = vmatpush1.bf16.xpose.msra.mxu0 0
        %2096 = vmatprep.subr.bf16.mxu0 0
        %2097 = vmatpush1.bf16.xpose.msra.mxu0 0
        %2098 = vmatprep.subr.bf16.mxu0 0
        %2099 = vmatpush1.bf16.xpose.msra.mxu0 0
        %2100 = vmatprep.subr.bf16.mxu0 0
        %2101 = vmatpush1.bf16.xpose.msra.mxu0 0
        %2102 = vmatprep.subr.bf16.mxu0 0
        %2103 = vmatpush1.bf16.xpose.msra.mxu0 0
        %2104 = vmatprep.subr.bf16.mxu0 0
        %2105 = vmatpush1.bf16.xpose.msra.mxu0 0
        %2106 = vmatprep.mubr.bf16.mxu0 0
        %2107 = vmatmul.mubr.bf16.gmra.mrb[0].mxu0 %v2063
        %v2108 = vpop.f32.mrb[0].mxu0
        %v2109 = vadd.f32 0.0, %v2108
        %v2110 = vpop.f32.mrb[0].mxu0
        %v2111 = vpop.f32.mrb[0].mxu0
        %v2112 = vadd.f32 0.0, %v2111
        %v2113 = vpop.f32.mrb[0].mxu0
        %2114 = vmatprep.mubr.bf16.mxu0 0
        %2115 = vmatmul.mubr.bf16.gmra.mrb[0].mxu0 %v2066
        %v2116 = vpop.f32.mrb[0].mxu0
        %v2117 = vadd.f32 0.0, %v2116
        %v2118 = vpop.f32.mrb[0].mxu0
        %v2119 = vpop.f32.mrb[0].mxu0
        %v2120 = vpop.f32.mrb[0].mxu0
        %2121 = vdwg.mxu0
        %2122 = vrot.lane.b32.xlu0 %v1369, 112
        %v2123 = vpop.permute.xlu0 %2122
        %2124 = vrot.lane.b32.xlu0 %v1370, 112
        %v2125 = vpop.permute.xlu0 %2124
        %2126 = vrot.lane.b32.xlu0 %v1369, 80
        %v2127 = vpop.permute.xlu0 %2126
        %2128 = vrot.lane.b32.xlu0 %v1370, 80
        %v2129 = vpop.permute.xlu0 %2128
        %v2131 = vsel %vm1377, %v2123, 0
        %v2134 = vsel %vm1377, %v2125, 0
        %v2137 = vsel %vm1377, %v2127, 0
        %v2140 = vsel %vm1377, %v2129, 0
        %2142 = vmatprep.subr.bf16.mxu0 0
        %2143 = vmatpush1.bf16.xpose.msra.mxu0 %v2137
        %2144 = vmatprep.subr.bf16.mxu0 0
        %2145 = vmatpush1.bf16.xpose.msra.mxu0 %v2140
        %2146 = vmatprep.subr.bf16.mxu0 0
        %2147 = vmatpush1.bf16.xpose.msra.mxu0 0
        %2148 = vmatprep.subr.bf16.mxu0 0
        %2149 = vmatpush1.bf16.xpose.msra.mxu0 0
        %2150 = vmatprep.subr.bf16.mxu0 0
        %2151 = vmatpush1.bf16.xpose.msra.mxu0 0
        %2152 = vmatprep.subr.bf16.mxu0 0
        %2153 = vmatpush1.bf16.xpose.msra.mxu0 0
        %2154 = vmatprep.subr.bf16.mxu0 0
        %2155 = vmatpush1.bf16.xpose.msra.mxu0 0
        %2156 = vmatprep.subr.bf16.mxu0 0
        %2157 = vmatpush1.bf16.xpose.msra.mxu0 0
        %2158 = vmatprep.subr.bf16.mxu0 0
        %2159 = vmatpush1.bf16.xpose.msra.mxu0 0
        %2160 = vmatprep.subr.bf16.mxu0 0
        %2161 = vmatpush1.bf16.xpose.msra.mxu0 0
        %2162 = vmatprep.subr.bf16.mxu0 0
        %2163 = vmatpush1.bf16.xpose.msra.mxu0 0
        %2164 = vmatprep.subr.bf16.mxu0 0
        %2165 = vmatpush1.bf16.xpose.msra.mxu0 0
        %2166 = vmatprep.subr.bf16.mxu0 0
        %2167 = vmatpush1.bf16.xpose.msra.mxu0 0
        %2168 = vmatprep.subr.bf16.mxu0 0
        %2169 = vmatpush1.bf16.xpose.msra.mxu0 0
        %2170 = vmatprep.subr.bf16.mxu0 0
        %2171 = vmatpush1.bf16.xpose.msra.mxu0 0
        %2172 = vmatprep.subr.bf16.mxu0 0
        %2173 = vmatpush1.bf16.xpose.msra.mxu0 0
        %2174 = vmatprep.mubr.bf16.mxu0 0
        %2175 = vmatmul.mubr.bf16.gmra.mrb[0].mxu0 %v2131
        %v2176 = vpop.f32.mrb[0].mxu0
        %v2177 = vadd.f32 0.0, %v2176
        %v2178 = vpop.f32.mrb[0].mxu0
        %v2179 = vpop.f32.mrb[0].mxu0
        %v2180 = vadd.f32 0.0, %v2179
        %v2181 = vpop.f32.mrb[0].mxu0
        %2182 = vmatprep.mubr.bf16.mxu0 0
        %2183 = vmatmul.mubr.bf16.gmra.mrb[0].mxu0 %v2134
        %v2184 = vpop.f32.mrb[0].mxu0
        %v2185 = vadd.f32 0.0, %v2184
        %v2186 = vpop.f32.mrb[0].mxu0
        %v2187 = vpop.f32.mrb[0].mxu0
        %v2188 = vpop.f32.mrb[0].mxu0
        %2189 = vdwg.mxu0
        %v2190 = vmul.f32 %v2109, 0.35355338
        %v2191 = vmul.f32 %v2112, 0.35355338
        %v2192 = vmul.f32 %v2117, 0.35355338
        %v2193 = vmul.f32 %v2177, 0.35355338
        %v2194 = vmul.f32 %v2180, 0.35355338
        %v2195 = vmul.f32 %v2185, 0.35355338
        %v2196 = vadd.f32 %v2190, %v1366
        %v2197 = vadd.f32 %v2191, %v1366
        %v2198 = vadd.f32 %v2192, %v1366
        %v2199 = vadd.f32 %v2193, %v1366
        %v2200 = vadd.f32 %v2194, %v1366
        %v2201 = vadd.f32 %v2195, %v1366
        %v2202 = vsel %vm1516, %v2196, -inf
        %2203 = vmax.xlane.f32.xlu0 %v2202
        %v2204 = vpop.xlane.xlu0 %2203
        %v2205 = vsel %vm1516, %v2197, -inf
        %2206 = vmax.xlane.f32.xlu0 %v2205
        %v2207 = vpop.xlane.xlu0 %2206
        %v2208 = vsel %vm1516, %v2198, -inf
        %2209 = vmax.xlane.f32.xlu0 %v2208
        %v2210 = vpop.xlane.xlu0 %2209
        %v2211 = vsel %vm1516, %v2199, -inf
        %2212 = vmax.xlane.f32.xlu0 %v2211
        %v2213 = vpop.xlane.xlu0 %2212
        %v2214 = vsel %vm1516, %v2200, -inf
        %2215 = vmax.xlane.f32.xlu0 %v2214
        %v2216 = vpop.xlane.xlu0 %2215
        %v2217 = vsel %vm1516, %v2201, -inf
        %2218 = vmax.xlane.f32.xlu0 %v2217
        %v2219 = vpop.xlane.xlu0 %2218
        %v2220 = vsub.f32 %v2196, %v2204
        %v2221 = vsub.f32 %v2197, %v2207
        %v2222 = vsub.f32 %v2198, %v2210
        %v2223 = vsub.f32 %v2199, %v2213
        %v2224 = vsub.f32 %v2200, %v2216
        %v2225 = vsub.f32 %v2201, %v2219
        %v2226 = vmul.f32 %v2220, 1.442695
        %v2227 = vpow.pop %v2226
        %v2228 = vmul.f32 %v2221, 1.442695
        %v2229 = vpow.pop %v2228
        %v2230 = vmul.f32 %v2222, 1.442695
        %v2231 = vpow.pop %v2230
        %v2232 = vmul.f32 %v2223, 1.442695
        %v2233 = vpow.pop %v2232
        %v2234 = vmul.f32 %v2224, 1.442695
        %v2235 = vpow.pop %v2234
        %v2236 = vmul.f32 %v2225, 1.442695
        %v2237 = vpow.pop %v2236
        %v2238 = vsel %vm1516, %v2227, 0.0
        %2239 = vadd.xlane.f32.xlu0 %v2238
        %v2240 = vpop.xlane.xlu0 %2239
        %v2241 = vsel %vm1516, %v2229, 0.0
        %2242 = vadd.xlane.f32.xlu0 %v2241
        %v2243 = vpop.xlane.xlu0 %2242
        %v2244 = vsel %vm1516, %v2231, 0.0
        %2245 = vadd.xlane.f32.xlu0 %v2244
        %v2246 = vpop.xlane.xlu0 %2245
        %v2247 = vsel %vm1516, %v2233, 0.0
        %2248 = vadd.xlane.f32.xlu0 %v2247
        %v2249 = vpop.xlane.xlu0 %2248
        %v2250 = vsel %vm1516, %v2235, 0.0
        %2251 = vadd.xlane.f32.xlu0 %v2250
        %v2252 = vpop.xlane.xlu0 %2251
        %v2253 = vsel %vm1516, %v2237, 0.0
        %2254 = vadd.xlane.f32.xlu0 %v2253
        %v2255 = vpop.xlane.xlu0 %2254
        %v2256 = vrcp.pop %v2240
        %v2257 = vmul.f32 %v2227, %v2256
        %v2258 = vrcp.pop %v2243
        %v2259 = vmul.f32 %v2229, %v2258
        %v2260 = vrcp.pop %v2246
        %v2261 = vmul.f32 %v2231, %v2260
        %v2262 = vrcp.pop %v2249
        %v2263 = vmul.f32 %v2233, %v2262
        %v2264 = vrcp.pop %v2252
        %v2265 = vmul.f32 %v2235, %v2264
        %v2266 = vrcp.pop %v2255
        %v2267 = vmul.f32 %v2237, %v2266
        %v2268 = vpack.c.bf16 %v2259, %v2257
        %v2269 = vpack.c.bf16 %v2261, %v2261
        %v2270 = vpack.c.bf16 %v2265, %v2263
        %v2271 = vpack.c.bf16 %v2267, %v2267
        %2272 = vrot.lane.b32.xlu0 %v1367, 48
        %v2273 = vpop.permute.xlu0 %2272
        %2274 = vrot.lane.b32.xlu0 %v1368, 48
        %v2275 = vpop.permute.xlu0 %2274
        %v2278 = vsel %vm1516, %v2268, 0
        %v2281 = vsel %vm1516, %v2269, 0
        %v2284 = vsel %vm1598, %v2275, 0
        %2286 = vmatprep.subr.bf16.mxu0 0
        %2287 = vmatpush1.bf16.msra.mxu0 %v2273
        %2288 = vmatprep.subr.bf16.mxu0 0
        %2289 = vmatpush1.bf16.msra.mxu0 %v2284
        %2290 = vmatprep.subr.bf16.mxu0 0
        %2291 = vmatpush1.bf16.msra.mxu0 0
        %2292 = vmatprep.subr.bf16.mxu0 0
        %2293 = vmatpush1.bf16.msra.mxu0 0
        %2294 = vmatprep.subr.bf16.mxu0 0
        %2295 = vmatpush1.bf16.msra.mxu0 0
        %2296 = vmatprep.subr.bf16.mxu0 0
        %2297 = vmatpush1.bf16.msra.mxu0 0
        %2298 = vmatprep.subr.bf16.mxu0 0
        %2299 = vmatpush1.bf16.msra.mxu0 0
        %2300 = vmatprep.subr.bf16.mxu0 0
        %2301 = vmatpush1.bf16.msra.mxu0 0
        %2302 = vmatprep.subr.bf16.mxu0 0
        %2303 = vmatpush1.bf16.msra.mxu0 0
        %2304 = vmatprep.subr.bf16.mxu0 0
        %2305 = vmatpush1.bf16.msra.mxu0 0
        %2306 = vmatprep.subr.bf16.mxu0 0
        %2307 = vmatpush1.bf16.msra.mxu0 0
        %2308 = vmatprep.subr.bf16.mxu0 0
        %2309 = vmatpush1.bf16.msra.mxu0 0
        %2310 = vmatprep.subr.bf16.mxu0 0
        %2311 = vmatpush1.bf16.msra.mxu0 0
        %2312 = vmatprep.subr.bf16.mxu0 0
        %2313 = vmatpush1.bf16.msra.mxu0 0
        %2314 = vmatprep.subr.bf16.mxu0 0
        %2315 = vmatpush1.bf16.msra.mxu0 0
        %2316 = vmatprep.subr.bf16.mxu0 0
        %2317 = vmatpush1.bf16.msra.mxu0 0
        %2318 = vmatprep.mubr.bf16.mxu0 0
        %2319 = vmatmul.mubr.bf16.gmra.mrb[0].mxu0 %v2278
        %v2320 = vpop.f32.mrb[0].mxu0
        %v2321 = vadd.f32 0.0, %v2320
        %v2322 = vpop.f32.mrb[0].mxu0
        %v2323 = vpop.f32.mrb[0].mxu0
        %v2324 = vadd.f32 0.0, %v2323
        %v2325 = vpop.f32.mrb[0].mxu0
        %2326 = vmatprep.mubr.bf16.mxu0 0
        %2327 = vmatmul.mubr.bf16.gmra.mrb[0].mxu0 %v2281
        %v2328 = vpop.f32.mrb[0].mxu0
        %v2329 = vadd.f32 0.0, %v2328
        %v2330 = vpop.f32.mrb[0].mxu0
        %v2331 = vpop.f32.mrb[0].mxu0
        %v2332 = vpop.f32.mrb[0].mxu0
        %2333 = vdwg.mxu0
        %2334 = vrot.lane.b32.xlu0 %v1369, 48
        %v2335 = vpop.permute.xlu0 %2334
        %2336 = vrot.lane.b32.xlu0 %v1370, 48
        %v2337 = vpop.permute.xlu0 %2336
        %v2340 = vsel %vm1516, %v2270, 0
        %v2343 = vsel %vm1516, %v2271, 0
        %v2346 = vsel %vm1598, %v2337, 0
        %2348 = vmatprep.subr.bf16.mxu0 0
        %2349 = vmatpush1.bf16.msra.mxu0 %v2335
        %2350 = vmatprep.subr.bf16.mxu0 0
        %2351 = vmatpush1.bf16.msra.mxu0 %v2346
        %2352 = vmatprep.subr.bf16.mxu0 0
        %2353 = vmatpush1.bf16.msra.mxu0 0
        %2354 = vmatprep.subr.bf16.mxu0 0
        %2355 = vmatpush1.bf16.msra.mxu0 0
        %2356 = vmatprep.subr.bf16.mxu0 0
        %2357 = vmatpush1.bf16.msra.mxu0 0
        %2358 = vmatprep.subr.bf16.mxu0 0
        %2359 = vmatpush1.bf16.msra.mxu0 0
        %2360 = vmatprep.subr.bf16.mxu0 0
        %2361 = vmatpush1.bf16.msra.mxu0 0
        %2362 = vmatprep.subr.bf16.mxu0 0
        %2363 = vmatpush1.bf16.msra.mxu0 0
        %2364 = vmatprep.subr.bf16.mxu0 0
        %2365 = vmatpush1.bf16.msra.mxu0 0
        %2366 = vmatprep.subr.bf16.mxu0 0
        %2367 = vmatpush1.bf16.msra.mxu0 0
        %2368 = vmatprep.subr.bf16.mxu0 0
        %2369 = vmatpush1.bf16.msra.mxu0 0
        %2370 = vmatprep.subr.bf16.mxu0 0
        %2371 = vmatpush1.bf16.msra.mxu0 0
        %2372 = vmatprep.subr.bf16.mxu0 0
        %2373 = vmatpush1.bf16.msra.mxu0 0
        %2374 = vmatprep.subr.bf16.mxu0 0
        %2375 = vmatpush1.bf16.msra.mxu0 0
        %2376 = vmatprep.subr.bf16.mxu0 0
        %2377 = vmatpush1.bf16.msra.mxu0 0
        %2378 = vmatprep.subr.bf16.mxu0 0
        %2379 = vmatpush1.bf16.msra.mxu0 0
        %2380 = vmatprep.mubr.bf16.mxu0 0
        %2381 = vmatmul.mubr.bf16.gmra.mrb[0].mxu0 %v2340
        %v2382 = vpop.f32.mrb[0].mxu0
        %v2383 = vadd.f32 0.0, %v2382
        %v2384 = vpop.f32.mrb[0].mxu0
        %v2385 = vpop.f32.mrb[0].mxu0
        %v2386 = vadd.f32 0.0, %v2385
        %v2387 = vpop.f32.mrb[0].mxu0
        %2388 = vmatprep.mubr.bf16.mxu0 0
        %2389 = vmatmul.mubr.bf16.gmra.mrb[0].mxu0 %v2343
        %v2390 = vpop.f32.mrb[0].mxu0
        %v2391 = vadd.f32 0.0, %v2390
        %v2392 = vpop.f32.mrb[0].mxu0
        %v2393 = vpop.f32.mrb[0].mxu0
        %v2394 = vpop.f32.mrb[0].mxu0
        %2395 = vdwg.mxu0
        %2396 = vrot.lane.b32.xlu0 %v1367, 104
        %v2397 = vpop.permute.xlu0 %2396
        %2398 = vrot.lane.b32.xlu0 %v1368, 104
        %v2399 = vpop.permute.xlu0 %2398
        %2400 = vrot.lane.b32.xlu0 %v1367, 72
        %v2401 = vpop.permute.xlu0 %2400
        %2402 = vrot.lane.b32.xlu0 %v1368, 72
        %v2403 = vpop.permute.xlu0 %2402
        %v2405 = vsel %vm1377, %v2397, 0
        %v2408 = vsel %vm1377, %v2399, 0
        %v2411 = vsel %vm1377, %v2401, 0
        %v2414 = vsel %vm1377, %v2403, 0
        %2416 = vmatprep.subr.bf16.mxu0 0
        %2417 = vmatpush1.bf16.xpose.msra.mxu0 %v2411
        %2418 = vmatprep.subr.bf16.mxu0 0
        %2419 = vmatpush1.bf16.xpose.msra.mxu0 %v2414
        %2420 = vmatprep.subr.bf16.mxu0 0
        %2421 = vmatpush1.bf16.xpose.msra.mxu0 0
        %2422 = vmatprep.subr.bf16.mxu0 0
        %2423 = vmatpush1.bf16.xpose.msra.mxu0 0
        %2424 = vmatprep.subr.bf16.mxu0 0
        %2425 = vmatpush1.bf16.xpose.msra.mxu0 0
        %2426 = vmatprep.subr.bf16.mxu0 0
        %2427 = vmatpush1.bf16.xpose.msra.mxu0 0
        %2428 = vmatprep.subr.bf16.mxu0 0
        %2429 = vmatpush1.bf16.xpose.msra.mxu0 0
        %2430 = vmatprep.subr.bf16.mxu0 0
        %2431 = vmatpush1.bf16.xpose.msra.mxu0 0
        %2432 = vmatprep.subr.bf16.mxu0 0
        %2433 = vmatpush1.bf16.xpose.msra.mxu0 0
        %2434 = vmatprep.subr.bf16.mxu0 0
        %2435 = vmatpush1.bf16.xpose.msra.mxu0 0
        %2436 = vmatprep.subr.bf16.mxu0 0
        %2437 = vmatpush1.bf16.xpose.msra.mxu0 0
        %2438 = vmatprep.subr.bf16.mxu0 0
        %2439 = vmatpush1.bf16.xpose.msra.mxu0 0
        %2440 = vmatprep.subr.bf16.mxu0 0
        %2441 = vmatpush1.bf16.xpose.msra.mxu0 0
        %2442 = vmatprep.subr.bf16.mxu0 0
        %2443 = vmatpush1.bf16.xpose.msra.mxu0 0
        %2444 = vmatprep.subr.bf16.mxu0 0
        %2445 = vmatpush1.bf16.xpose.msra.mxu0 0
        %2446 = vmatprep.subr.bf16.mxu0 0
        %2447 = vmatpush1.bf16.xpose.msra.mxu0 0
        %2448 = vmatprep.mubr.bf16.mxu0 0
        %2449 = vmatmul.mubr.bf16.gmra.mrb[0].mxu0 %v2405
        %v2450 = vpop.f32.mrb[0].mxu0
        %v2451 = vadd.f32 0.0, %v2450
        %v2452 = vpop.f32.mrb[0].mxu0
        %v2453 = vpop.f32.mrb[0].mxu0
        %v2454 = vadd.f32 0.0, %v2453
        %v2455 = vpop.f32.mrb[0].mxu0
        %2456 = vmatprep.mubr.bf16.mxu0 0
        %2457 = vmatmul.mubr.bf16.gmra.mrb[0].mxu0 %v2408
        %v2458 = vpop.f32.mrb[0].mxu0
        %v2459 = vadd.f32 0.0, %v2458
        %v2460 = vpop.f32.mrb[0].mxu0
        %v2461 = vpop.f32.mrb[0].mxu0
        %v2462 = vpop.f32.mrb[0].mxu0
        %2463 = vdwg.mxu0
        %2464 = vrot.lane.b32.xlu0 %v1369, 104
        %v2465 = vpop.permute.xlu0 %2464
        %2466 = vrot.lane.b32.xlu0 %v1370, 104
        %v2467 = vpop.permute.xlu0 %2466
        %2468 = vrot.lane.b32.xlu0 %v1369, 72
        %v2469 = vpop.permute.xlu0 %2468
        %2470 = vrot.lane.b32.xlu0 %v1370, 72
        %v2471 = vpop.permute.xlu0 %2470
        %v2473 = vsel %vm1377, %v2465, 0
        %v2476 = vsel %vm1377, %v2467, 0
        %v2479 = vsel %vm1377, %v2469, 0
        %v2482 = vsel %vm1377, %v2471, 0
        %2484 = vmatprep.subr.bf16.mxu0 0
        %2485 = vmatpush1.bf16.xpose.msra.mxu0 %v2479
        %2486 = vmatprep.subr.bf16.mxu0 0
        %2487 = vmatpush1.bf16.xpose.msra.mxu0 %v2482
        %2488 = vmatprep.subr.bf16.mxu0 0
        %2489 = vmatpush1.bf16.xpose.msra.mxu0 0
        %2490 = vmatprep.subr.bf16.mxu0 0
        %2491 = vmatpush1.bf16.xpose.msra.mxu0 0
        %2492 = vmatprep.subr.bf16.mxu0 0
        %2493 = vmatpush1.bf16.xpose.msra.mxu0 0
        %2494 = vmatprep.subr.bf16.mxu0 0
        %2495 = vmatpush1.bf16.xpose.msra.mxu0 0
        %2496 = vmatprep.subr.bf16.mxu0 0
        %2497 = vmatpush1.bf16.xpose.msra.mxu0 0
        %2498 = vmatprep.subr.bf16.mxu0 0
        %2499 = vmatpush1.bf16.xpose.msra.mxu0 0
        %2500 = vmatprep.subr.bf16.mxu0 0
        %2501 = vmatpush1.bf16.xpose.msra.mxu0 0
        %2502 = vmatprep.subr.bf16.mxu0 0
        %2503 = vmatpush1.bf16.xpose.msra.mxu0 0
        %2504 = vmatprep.subr.bf16.mxu0 0
        %2505 = vmatpush1.bf16.xpose.msra.mxu0 0
        %2506 = vmatprep.subr.bf16.mxu0 0
        %2507 = vmatpush1.bf16.xpose.msra.mxu0 0
        %2508 = vmatprep.subr.bf16.mxu0 0
        %2509 = vmatpush1.bf16.xpose.msra.mxu0 0
        %2510 = vmatprep.subr.bf16.mxu0 0
        %2511 = vmatpush1.bf16.xpose.msra.mxu0 0
        %2512 = vmatprep.subr.bf16.mxu0 0
        %2513 = vmatpush1.bf16.xpose.msra.mxu0 0
        %2514 = vmatprep.subr.bf16.mxu0 0
        %2515 = vmatpush1.bf16.xpose.msra.mxu0 0
        %2516 = vmatprep.mubr.bf16.mxu0 0
        %2517 = vmatmul.mubr.bf16.gmra.mrb[0].mxu0 %v2473
        %v2518 = vpop.f32.mrb[0].mxu0
        %v2519 = vadd.f32 0.0, %v2518
        %v2520 = vpop.f32.mrb[0].mxu0
        %v2521 = vpop.f32.mrb[0].mxu0
        %v2522 = vadd.f32 0.0, %v2521
        %v2523 = vpop.f32.mrb[0].mxu0
        %2524 = vmatprep.mubr.bf16.mxu0 0
        %2525 = vmatmul.mubr.bf16.gmra.mrb[0].mxu0 %v2476
        %v2526 = vpop.f32.mrb[0].mxu0
        %v2527 = vadd.f32 0.0, %v2526
        %v2528 = vpop.f32.mrb[0].mxu0
        %v2529 = vpop.f32.mrb[0].mxu0
        %v2530 = vpop.f32.mrb[0].mxu0
        %2531 = vdwg.mxu0
        %v2532 = vmul.f32 %v2451, 0.35355338
        %v2533 = vmul.f32 %v2454, 0.35355338
        %v2534 = vmul.f32 %v2459, 0.35355338
        %v2535 = vmul.f32 %v2519, 0.35355338
        %v2536 = vmul.f32 %v2522, 0.35355338
        %v2537 = vmul.f32 %v2527, 0.35355338
        %v2538 = vadd.f32 %v2532, %v1366
        %v2539 = vadd.f32 %v2533, %v1366
        %v2540 = vadd.f32 %v2534, %v1366
        %v2541 = vadd.f32 %v2535, %v1366
        %v2542 = vadd.f32 %v2536, %v1366
        %v2543 = vadd.f32 %v2537, %v1366
        %v2544 = vsel %vm1516, %v2538, -inf
        %2545 = vmax.xlane.f32.xlu0 %v2544
        %v2546 = vpop.xlane.xlu0 %2545
        %v2547 = vsel %vm1516, %v2539, -inf
        %2548 = vmax.xlane.f32.xlu0 %v2547
        %v2549 = vpop.xlane.xlu0 %2548
        %v2550 = vsel %vm1516, %v2540, -inf
        %2551 = vmax.xlane.f32.xlu0 %v2550
        %v2552 = vpop.xlane.xlu0 %2551
        %v2553 = vsel %vm1516, %v2541, -inf
        %2554 = vmax.xlane.f32.xlu0 %v2553
        %v2555 = vpop.xlane.xlu0 %2554
        %v2556 = vsel %vm1516, %v2542, -inf
        %2557 = vmax.xlane.f32.xlu0 %v2556
        %v2558 = vpop.xlane.xlu0 %2557
        %v2559 = vsel %vm1516, %v2543, -inf
        %2560 = vmax.xlane.f32.xlu0 %v2559
        %v2561 = vpop.xlane.xlu0 %2560
        %v2562 = vsub.f32 %v2538, %v2546
        %v2563 = vsub.f32 %v2539, %v2549
        %v2564 = vsub.f32 %v2540, %v2552
        %v2565 = vsub.f32 %v2541, %v2555
        %v2566 = vsub.f32 %v2542, %v2558
        %v2567 = vsub.f32 %v2543, %v2561
        %v2568 = vmul.f32 %v2562, 1.442695
        %v2569 = vpow.pop %v2568
        %v2570 = vmul.f32 %v2563, 1.442695
        %v2571 = vpow.pop %v2570
        %v2572 = vmul.f32 %v2564, 1.442695
        %v2573 = vpow.pop %v2572
        %v2574 = vmul.f32 %v2565, 1.442695
        %v2575 = vpow.pop %v2574
        %v2576 = vmul.f32 %v2566, 1.442695
        %v2577 = vpow.pop %v2576
        %v2578 = vmul.f32 %v2567, 1.442695
        %v2579 = vpow.pop %v2578
        %v2580 = vsel %vm1516, %v2569, 0.0
        %2581 = vadd.xlane.f32.xlu0 %v2580
        %v2582 = vpop.xlane.xlu0 %2581
        %v2583 = vsel %vm1516, %v2571, 0.0
        %2584 = vadd.xlane.f32.xlu0 %v2583
        %v2585 = vpop.xlane.xlu0 %2584
        %v2586 = vsel %vm1516, %v2573, 0.0
        %2587 = vadd.xlane.f32.xlu0 %v2586
        %v2588 = vpop.xlane.xlu0 %2587
        %v2589 = vsel %vm1516, %v2575, 0.0
        %2590 = vadd.xlane.f32.xlu0 %v2589
        %v2591 = vpop.xlane.xlu0 %2590
        %v2592 = vsel %vm1516, %v2577, 0.0
        %2593 = vadd.xlane.f32.xlu0 %v2592
        %v2594 = vpop.xlane.xlu0 %2593
        %v2595 = vsel %vm1516, %v2579, 0.0
        %2596 = vadd.xlane.f32.xlu0 %v2595
        %v2597 = vpop.xlane.xlu0 %2596
        %v2598 = vrcp.pop %v2582
        %v2599 = vmul.f32 %v2569, %v2598
        %v2600 = vrcp.pop %v2585
        %v2601 = vmul.f32 %v2571, %v2600
        %v2602 = vrcp.pop %v2588
        %v2603 = vmul.f32 %v2573, %v2602
        %v2604 = vrcp.pop %v2591
        %v2605 = vmul.f32 %v2575, %v2604
        %v2606 = vrcp.pop %v2594
        %v2607 = vmul.f32 %v2577, %v2606
        %v2608 = vrcp.pop %v2597
        %v2609 = vmul.f32 %v2579, %v2608
        %v2610 = vpack.c.bf16 %v2601, %v2599
        %v2611 = vpack.c.bf16 %v2603, %v2603
        %v2612 = vpack.c.bf16 %v2607, %v2605
        %v2613 = vpack.c.bf16 %v2609, %v2609
        %2614 = vrot.lane.b32.xlu0 %v1367, 40
        %v2615 = vpop.permute.xlu0 %2614
        %2616 = vrot.lane.b32.xlu0 %v1368, 40
        %v2617 = vpop.permute.xlu0 %2616
        %v2620 = vsel %vm1516, %v2610, 0
        %v2623 = vsel %vm1516, %v2611, 0
        %v2626 = vsel %vm1598, %v2617, 0
        %2628 = vmatprep.subr.bf16.mxu0 0
        %2629 = vmatpush1.bf16.msra.mxu0 %v2615
        %2630 = vmatprep.subr.bf16.mxu0 0
        %2631 = vmatpush1.bf16.msra.mxu0 %v2626
        %2632 = vmatprep.subr.bf16.mxu0 0
        %2633 = vmatpush1.bf16.msra.mxu0 0
        %2634 = vmatprep.subr.bf16.mxu0 0
        %2635 = vmatpush1.bf16.msra.mxu0 0
        %2636 = vmatprep.subr.bf16.mxu0 0
        %2637 = vmatpush1.bf16.msra.mxu0 0
        %2638 = vmatprep.subr.bf16.mxu0 0
        %2639 = vmatpush1.bf16.msra.mxu0 0
        %2640 = vmatprep.subr.bf16.mxu0 0
        %2641 = vmatpush1.bf16.msra.mxu0 0
        %2642 = vmatprep.subr.bf16.mxu0 0
        %2643 = vmatpush1.bf16.msra.mxu0 0
        %2644 = vmatprep.subr.bf16.mxu0 0
        %2645 = vmatpush1.bf16.msra.mxu0 0
        %2646 = vmatprep.subr.bf16.mxu0 0
        %2647 = vmatpush1.bf16.msra.mxu0 0
        %2648 = vmatprep.subr.bf16.mxu0 0
        %2649 = vmatpush1.bf16.msra.mxu0 0
        %2650 = vmatprep.subr.bf16.mxu0 0
        %2651 = vmatpush1.bf16.msra.mxu0 0
        %2652 = vmatprep.subr.bf16.mxu0 0
        %2653 = vmatpush1.bf16.msra.mxu0 0
        %2654 = vmatprep.subr.bf16.mxu0 0
        %2655 = vmatpush1.bf16.msra.mxu0 0
        %2656 = vmatprep.subr.bf16.mxu0 0
        %2657 = vmatpush1.bf16.msra.mxu0 0
        %2658 = vmatprep.subr.bf16.mxu0 0
        %2659 = vmatpush1.bf16.msra.mxu0 0
        %2660 = vmatprep.mubr.bf16.mxu0 0
        %2661 = vmatmul.mubr.bf16.gmra.mrb[0].mxu0 %v2620
        %v2662 = vpop.f32.mrb[0].mxu0
        %v2663 = vadd.f32 0.0, %v2662
        %v2664 = vpop.f32.mrb[0].mxu0
        %v2665 = vpop.f32.mrb[0].mxu0
        %v2666 = vadd.f32 0.0, %v2665
        %v2667 = vpop.f32.mrb[0].mxu0
        %2668 = vmatprep.mubr.bf16.mxu0 0
        %2669 = vmatmul.mubr.bf16.gmra.mrb[0].mxu0 %v2623
        %v2670 = vpop.f32.mrb[0].mxu0
        %v2671 = vadd.f32 0.0, %v2670
        %v2672 = vpop.f32.mrb[0].mxu0
        %v2673 = vpop.f32.mrb[0].mxu0
        %v2674 = vpop.f32.mrb[0].mxu0
        %2675 = vdwg.mxu0
        %2676 = vrot.lane.b32.xlu0 %v1369, 40
        %v2677 = vpop.permute.xlu0 %2676
        %2678 = vrot.lane.b32.xlu0 %v1370, 40
        %v2679 = vpop.permute.xlu0 %2678
        %v2682 = vsel %vm1516, %v2612, 0
        %v2685 = vsel %vm1516, %v2613, 0
        %v2688 = vsel %vm1598, %v2679, 0
        %2690 = vmatprep.subr.bf16.mxu0 0
        %2691 = vmatpush1.bf16.msra.mxu0 %v2677
        %2692 = vmatprep.subr.bf16.mxu0 0
        %2693 = vmatpush1.bf16.msra.mxu0 %v2688
        %2694 = vmatprep.subr.bf16.mxu0 0
        %2695 = vmatpush1.bf16.msra.mxu0 0
        %2696 = vmatprep.subr.bf16.mxu0 0
        %2697 = vmatpush1.bf16.msra.mxu0 0
        %2698 = vmatprep.subr.bf16.mxu0 0
        %2699 = vmatpush1.bf16.msra.mxu0 0
        %2700 = vmatprep.subr.bf16.mxu0 0
        %2701 = vmatpush1.bf16.msra.mxu0 0
        %2702 = vmatprep.subr.bf16.mxu0 0
        %2703 = vmatpush1.bf16.msra.mxu0 0
        %2704 = vmatprep.subr.bf16.mxu0 0
        %2705 = vmatpush1.bf16.msra.mxu0 0
        %2706 = vmatprep.subr.bf16.mxu0 0
        %2707 = vmatpush1.bf16.msra.mxu0 0
        %2708 = vmatprep.subr.bf16.mxu0 0
        %2709 = vmatpush1.bf16.msra.mxu0 0
        %2710 = vmatprep.subr.bf16.mxu0 0
        %2711 = vmatpush1.bf16.msra.mxu0 0
        %2712 = vmatprep.subr.bf16.mxu0 0
        %2713 = vmatpush1.bf16.msra.mxu0 0
        %2714 = vmatprep.subr.bf16.mxu0 0
        %2715 = vmatpush1.bf16.msra.mxu0 0
        %2716 = vmatprep.subr.bf16.mxu0 0
        %2717 = vmatpush1.bf16.msra.mxu0 0
        %2718 = vmatprep.subr.bf16.mxu0 0
        %2719 = vmatpush1.bf16.msra.mxu0 0
        %2720 = vmatprep.subr.bf16.mxu0 0
        %2721 = vmatpush1.bf16.msra.mxu0 0
        %2722 = vmatprep.mubr.bf16.mxu0 0
        %2723 = vmatmul.mubr.bf16.gmra.mrb[0].mxu0 %v2682
        %v2724 = vpop.f32.mrb[0].mxu0
        %v2725 = vadd.f32 0.0, %v2724
        %v2726 = vpop.f32.mrb[0].mxu0
        %v2727 = vpop.f32.mrb[0].mxu0
        %v2728 = vadd.f32 0.0, %v2727
        %v2729 = vpop.f32.mrb[0].mxu0
        %2730 = vmatprep.mubr.bf16.mxu0 0
        %2731 = vmatmul.mubr.bf16.gmra.mrb[0].mxu0 %v2685
        %v2732 = vpop.f32.mrb[0].mxu0
        %v2733 = vadd.f32 0.0, %v2732
        %v2734 = vpop.f32.mrb[0].mxu0
        %v2735 = vpop.f32.mrb[0].mxu0
        %v2736 = vpop.f32.mrb[0].mxu0
        %2737 = vdwg.mxu0
        %2744 = vrot.lane.b32.xlu0 %v1979, 8
        %v2745 = vpop.permute.xlu0 %2744
        %2746 = vrot.lane.b32.xlu0 %v1982, 8
        %v2747 = vpop.permute.xlu0 %2746
        %2748 = vrot.lane.b32.xlu0 %v1987, 8
        %v2749 = vpop.permute.xlu0 %2748
        %2750 = vrot.lane.b32.xlu0 %v2041, 8
        %v2751 = vpop.permute.xlu0 %2750
        %2752 = vrot.lane.b32.xlu0 %v2044, 8
        %v2753 = vpop.permute.xlu0 %2752
        %2754 = vrot.lane.b32.xlu0 %v2049, 8
        %v2755 = vpop.permute.xlu0 %2754
        %2768 = vrot.lane.b32.xlu0 %v2321, 16
        %v2769 = vpop.permute.xlu0 %2768
        %2770 = vrot.lane.b32.xlu0 %v2324, 16
        %v2771 = vpop.permute.xlu0 %2770
        %2772 = vrot.lane.b32.xlu0 %v2329, 16
        %v2773 = vpop.permute.xlu0 %2772
        %2774 = vrot.lane.b32.xlu0 %v2383, 16
        %v2775 = vpop.permute.xlu0 %2774
        %2776 = vrot.lane.b32.xlu0 %v2386, 16
        %v2777 = vpop.permute.xlu0 %2776
        %2778 = vrot.lane.b32.xlu0 %v2391, 16
        %v2779 = vpop.permute.xlu0 %2778
        %2792 = vrot.lane.b32.xlu0 %v2663, 24
        %v2793 = vpop.permute.xlu0 %2792
        %2794 = vrot.lane.b32.xlu0 %v2666, 24
        %v2795 = vpop.permute.xlu0 %2794
        %2796 = vrot.lane.b32.xlu0 %v2671, 24
        %v2797 = vpop.permute.xlu0 %2796
        %2798 = vrot.lane.b32.xlu0 %v2725, 24
        %v2799 = vpop.permute.xlu0 %2798
        %2800 = vrot.lane.b32.xlu0 %v2728, 24
        %v2801 = vpop.permute.xlu0 %2800
        %2802 = vrot.lane.b32.xlu0 %v2733, 24
        %v2803 = vpop.permute.xlu0 %2802
        %v2810 = vsel %vm1377, %v1637, %v2745
        %v2811 = vsel %vm1377, %v1640, %v2747
        %v2812 = vsel %vm1377, %v1645, %v2749
        %v2813 = vsel %vm1377, %v1699, %v2751
        %v2814 = vsel %vm1377, %v1702, %v2753
        %v2815 = vsel %vm1377, %v1707, %v2755
        %vm2816 = vcmask 130048
        %v2817 = vsel %vm2816, %v2810, %v2769
        %v2818 = vsel %vm2816, %v2811, %v2771
        %v2819 = vsel %vm2816, %v2812, %v2773
        %v2820 = vsel %vm2816, %v2813, %v2775
        %v2821 = vsel %vm2816, %v2814, %v2777
        %v2822 = vsel %vm2816, %v2815, %v2779
        %v2823 = vsel %vm1516, %v2817, %v2793
        %v2824 = vsel %vm1516, %v2818, %v2795
        %v2825 = vsel %vm1516, %v2819, %v2797
        %v2826 = vsel %vm1516, %v2820, %v2799
        %v2827 = vsel %vm1516, %v2821, %v2801
        %v2828 = vsel %vm1516, %v2822, %v2803
        %v2829 = vpack.c.bf16 %v2824, %v2823
        %v2830 = vpack.c.bf16 %v2826, %v2825
        %v2831 = vpack.c.bf16 %v2828, %v2827
        %v2832 = vld [vmem:[%s870] sm:$0xf]
        %v2833 = vld [vmem:[%s870 + $0x4] sm:$0xf]
        %v2834 = vld [vmem:[%s870 + $0x8] sm:$0xf]
        %v2835 = vld [vmem:[%s870 + $0xc] sm:$0xf]
        %v2836 = vld [vmem:[%s873] sm:$0x1]
        %v2838 = vlaneseq
        %v2839 = vshrl.u32 %v2838, 7
        %v2840 = vsub.s32 0, %v2839
        %v2841 = vrot.slane %v2836, %v2840
        %v2847 = vunpack.c.l.b16 %v2832
        %v2848 = vunpack.c.l.b16 %v2833
        %v2849 = vunpack.c.l.b16 %v2834
        %v2850 = vunpack.c.l.b16 %v2835
        %v2851 = vpack.c.b16 %v2848, %v2847
        %v2852 = vpack.c.b16 %v2850, %v2849
        %v2856 = vsel %vm1167, %v2829, 0
        %v2859 = vsel %vm1167, %v2830, 0
        %v2862 = vsel %vm1167, %v2831, 0
        %2864 = vmatprep.subr.bf16.mxu0 0
        %2865 = vmatpush1.bf16.msra.mxu0 %v2851
        %2866 = vmatprep.subr.bf16.mxu0 0
        %2867 = vmatpush1.bf16.msra.mxu0 %v2852
        %2868 = vmatprep.subr.bf16.mxu0 0
        %2869 = vmatpush1.bf16.msra.mxu0 0
        %2870 = vmatprep.subr.bf16.mxu0 0
        %2871 = vmatpush1.bf16.msra.mxu0 0
        %2872 = vmatprep.subr.bf16.mxu0 0
        %2873 = vmatpush1.bf16.msra.mxu0 0
        %2874 = vmatprep.subr.bf16.mxu0 0
        %2875 = vmatpush1.bf16.msra.mxu0 0
        %2876 = vmatprep.subr.bf16.mxu0 0
        %2877 = vmatpush1.bf16.msra.mxu0 0
        %2878 = vmatprep.subr.bf16.mxu0 0
        %2879 = vmatpush1.bf16.msra.mxu0 0
        %2880 = vmatprep.subr.bf16.mxu0 0
        %2881 = vmatpush1.bf16.msra.mxu0 0
        %2882 = vmatprep.subr.bf16.mxu0 0
        %2883 = vmatpush1.bf16.msra.mxu0 0
        %2884 = vmatprep.subr.bf16.mxu0 0
        %2885 = vmatpush1.bf16.msra.mxu0 0
        %2886 = vmatprep.subr.bf16.mxu0 0
        %2887 = vmatpush1.bf16.msra.mxu0 0
        %2888 = vmatprep.subr.bf16.mxu0 0
        %2889 = vmatpush1.bf16.msra.mxu0 0
        %2890 = vmatprep.subr.bf16.mxu0 0
        %2891 = vmatpush1.bf16.msra.mxu0 0
        %2892 = vmatprep.subr.bf16.mxu0 0
        %2893 = vmatpush1.bf16.msra.mxu0 0
        %2894 = vmatprep.subr.bf16.mxu0 0
        %2895 = vmatpush1.bf16.msra.mxu0 0
        %2896 = vmatprep.mubr.bf16.mxu0 0
        %2897 = vmatmul.mubr.bf16.gmra.mrb[0].mxu0 %v2856
        %v2898 = vpop.f32.mrb[0].mxu0
        %v2899 = vadd.f32 %v2841, %v2898
        %v2900 = vpop.f32.mrb[0].mxu0
        %v2901 = vpop.f32.mrb[0].mxu0
        %v2902 = vadd.f32 %v2841, %v2901
        %v2903 = vpop.f32.mrb[0].mxu0
        %2904 = vmatprep.mubr.bf16.mxu0 0
        %2905 = vmatmul.mubr.bf16.gmra.mrb[0].mxu0 %v2859
        %v2906 = vpop.f32.mrb[0].mxu0
        %v2907 = vadd.f32 %v2841, %v2906
        %v2908 = vpop.f32.mrb[0].mxu0
        %v2909 = vpop.f32.mrb[0].mxu0
        %v2910 = vadd.f32 %v2841, %v2909
        %v2911 = vpop.f32.mrb[0].mxu0
        %2912 = vmatprep.mubr.bf16.mxu0 0
        %2913 = vmatmul.mubr.bf16.gmra.mrb[0].mxu0 %v2862
        %v2914 = vpop.f32.mrb[0].mxu0
        %v2915 = vadd.f32 %v2841, %v2914
        %v2916 = vpop.f32.mrb[0].mxu0
        %v2917 = vpop.f32.mrb[0].mxu0
        %v2918 = vadd.f32 %v2841, %v2917
        %v2919 = vpop.f32.mrb[0].mxu0
        %2920 = vdwg.mxu0
        %v2921 = vadd.f32 %v1159, %v2899
        %v2922 = vadd.f32 %v1160, %v2902
        %v2923 = vadd.f32 %v1161, %v2907
        %v2924 = vadd.f32 %v1162, %v2910
        %v2925 = vadd.f32 %v1163, %v2915
        %v2926 = vadd.f32 %v1164, %v2918
        %v2927 = vld [vmem:[%s876] sm:$0x1]
        %v2928 = vld [vmem:[%s879] sm:$0x1]
        %v2929 = vsel %vm1167, %v2921, 0.0
        %2930 = vadd.xlane.f32.xlu0 %v2929
        %v2931 = vpop.xlane.xlu0 %2930
        %v2932 = vsel %vm1167, %v2922, 0.0
        %2933 = vadd.xlane.f32.xlu0 %v2932
        %v2934 = vpop.xlane.xlu0 %2933
        %v2935 = vsel %vm1167, %v2923, 0.0
        %2936 = vadd.xlane.f32.xlu0 %v2935
        %v2937 = vpop.xlane.xlu0 %2936
        %v2938 = vsel %vm1167, %v2924, 0.0
        %2939 = vadd.xlane.f32.xlu0 %v2938
        %v2940 = vpop.xlane.xlu0 %2939
        %v2941 = vsel %vm1167, %v2925, 0.0
        %2942 = vadd.xlane.f32.xlu0 %v2941
        %v2943 = vpop.xlane.xlu0 %2942
        %v2944 = vsel %vm1167, %v2926, 0.0
        %2945 = vadd.xlane.f32.xlu0 %v2944
        %v2946 = vpop.xlane.xlu0 %2945
        %v2947 = vmul.f32 %v2931, %v1186
        %v2948 = vmul.f32 %v2934, %v1186
        %v2949 = vmul.f32 %v2937, %v1186
        %v2950 = vmul.f32 %v2940, %v1186
        %v2951 = vmul.f32 %v2943, %v1186
        %v2952 = vmul.f32 %v2946, %v1186
        %v2953 = vsub.f32 %v2921, %v2947
        %v2954 = vsub.f32 %v2922, %v2948
        %v2955 = vsub.f32 %v2923, %v2949
        %v2956 = vsub.f32 %v2924, %v2950
        %v2957 = vsub.f32 %v2925, %v2951
        %v2958 = vsub.f32 %v2926, %v2952
        %v2959 = vmul.f32 %v2953, %v2953
        %v2960 = vmul.f32 %v2954, %v2954
        %v2961 = vmul.f32 %v2955, %v2955
        %v2962 = vmul.f32 %v2956, %v2956
        %v2963 = vmul.f32 %v2957, %v2957
        %v2964 = vmul.f32 %v2958, %v2958
        %v2965 = vsel %vm1167, %v2959, 0.0
        %2966 = vadd.xlane.f32.xlu0 %v2965
        %v2967 = vpop.xlane.xlu0 %2966
        %v2968 = vsel %vm1167, %v2960, 0.0
        %2969 = vadd.xlane.f32.xlu0 %v2968
        %v2970 = vpop.xlane.xlu0 %2969
        %v2971 = vsel %vm1167, %v2961, 0.0
        %2972 = vadd.xlane.f32.xlu0 %v2971
        %v2973 = vpop.xlane.xlu0 %2972
        %v2974 = vsel %vm1167, %v2962, 0.0
        %2975 = vadd.xlane.f32.xlu0 %v2974
        %v2976 = vpop.xlane.xlu0 %2975
        %v2977 = vsel %vm1167, %v2963, 0.0
        %2978 = vadd.xlane.f32.xlu0 %v2977
        %v2979 = vpop.xlane.xlu0 %2978
        %v2980 = vsel %vm1167, %v2964, 0.0
        %2981 = vadd.xlane.f32.xlu0 %v2980
        %v2982 = vpop.xlane.xlu0 %2981
        %v2983 = vmul.f32 %v2967, %v1186
        %v2984 = vmul.f32 %v2970, %v1186
        %v2985 = vmul.f32 %v2973, %v1186
        %v2986 = vmul.f32 %v2976, %v1186
        %v2987 = vmul.f32 %v2979, %v1186
        %v2988 = vmul.f32 %v2982, %v1186
        %v2989 = vadd.f32 %v2983, 1e-05
        %v2990 = vadd.f32 %v2984, 1e-05
        %v2991 = vadd.f32 %v2985, 1e-05
        %v2992 = vadd.f32 %v2986, 1e-05
        %v2993 = vadd.f32 %v2987, 1e-05
        %v2994 = vadd.f32 %v2988, 1e-05
        %v2995 = vrsqrt.pop %v2989
        %v2996 = vrsqrt.pop %v2990
        %v2997 = vrsqrt.pop %v2991
        %v2998 = vrsqrt.pop %v2992
        %v2999 = vrsqrt.pop %v2993
        %v3000 = vrsqrt.pop %v2994
        %v3001 = vmul.f32 %v2953, %v2995
        %v3002 = vmul.f32 %v2954, %v2996
        %v3003 = vmul.f32 %v2955, %v2997
        %v3004 = vmul.f32 %v2956, %v2998
        %v3005 = vmul.f32 %v2957, %v2999
        %v3006 = vmul.f32 %v2958, %v3000
        %v3008 = vlaneseq
        %v3009 = vshrl.u32 %v3008, 7
        %v3010 = vsub.s32 0, %v3009
        %v3011 = vrot.slane %v2927, %v3010
        %v3013 = vmul.f32 %v3001, %v3011
        %v3014 = vmul.f32 %v3002, %v3011
        %v3015 = vmul.f32 %v3003, %v3011
        %v3016 = vmul.f32 %v3004, %v3011
        %v3017 = vmul.f32 %v3005, %v3011
        %v3018 = vmul.f32 %v3006, %v3011
        %v3020 = vlaneseq
        %v3021 = vshrl.u32 %v3020, 7
        %v3022 = vsub.s32 0, %v3021
        %v3023 = vrot.slane %v2928, %v3022
        %v3025 = vadd.f32 %v3013, %v3023
        %v3026 = vadd.f32 %v3014, %v3023
        %v3027 = vadd.f32 %v3015, %v3023
        %v3028 = vadd.f32 %v3016, %v3023
        %v3029 = vadd.f32 %v3017, %v3023
        %v3030 = vadd.f32 %v3018, %v3023
        %v3031 = vpack.c.bf16 %v3026, %v3025
        %v3032 = vpack.c.bf16 %v3028, %v3027
        %v3033 = vpack.c.bf16 %v3030, %v3029
        %v3034 = vld [vmem:[%s884] sm:$0xf]
        %v3035 = vld [vmem:[%s884 + $0x4] sm:$0xf]
        %v3036 = vld [vmem:[%s884 + $0x8] sm:$0xf]
        %v3037 = vld [vmem:[%s884 + $0xc] sm:$0xf]
        %v3038 = vld [vmem:[%s887] sm:$0x1]
        %v3040 = vlaneseq
        %v3041 = vshrl.u32 %v3040, 7
        %v3042 = vsub.s32 0, %v3041
        %v3043 = vrot.slane %v3038, %v3042
        %v3049 = vunpack.c.l.b16 %v3034
        %v3050 = vunpack.c.l.b16 %v3035
        %v3051 = vunpack.c.l.b16 %v3036
        %v3052 = vunpack.c.l.b16 %v3037
        %v3053 = vpack.c.b16 %v3050, %v3049
        %v3054 = vpack.c.b16 %v3052, %v3051
        %v3058 = vsel %vm1167, %v3031, 0
        %v3061 = vsel %vm1167, %v3032, 0
        %v3064 = vsel %vm1167, %v3033, 0
        %3066 = vmatprep.subr.bf16.mxu0 0
        %3067 = vmatpush1.bf16.msra.mxu0 %v3053
        %3068 = vmatprep.subr.bf16.mxu0 0
        %3069 = vmatpush1.bf16.msra.mxu0 %v3054
        %3070 = vmatprep.subr.bf16.mxu0 0
        %3071 = vmatpush1.bf16.msra.mxu0 0
        %3072 = vmatprep.subr.bf16.mxu0 0
        %3073 = vmatpush1.bf16.msra.mxu0 0
        %3074 = vmatprep.subr.bf16.mxu0 0
        %3075 = vmatpush1.bf16.msra.mxu0 0
        %3076 = vmatprep.subr.bf16.mxu0 0
        %3077 = vmatpush1.bf16.msra.mxu0 0
        %3078 = vmatprep.subr.bf16.mxu0 0
        %3079 = vmatpush1.bf16.msra.mxu0 0
        %3080 = vmatprep.subr.bf16.mxu0 0
        %3081 = vmatpush1.bf16.msra.mxu0 0
        %3082 = vmatprep.subr.bf16.mxu0 0
        %3083 = vmatpush1.bf16.msra.mxu0 0
        %3084 = vmatprep.subr.bf16.mxu0 0
        %3085 = vmatpush1.bf16.msra.mxu0 0
        %3086 = vmatprep.subr.bf16.mxu0 0
        %3087 = vmatpush1.bf16.msra.mxu0 0
        %3088 = vmatprep.subr.bf16.mxu0 0
        %3089 = vmatpush1.bf16.msra.mxu0 0
        %3090 = vmatprep.subr.bf16.mxu0 0
        %3091 = vmatpush1.bf16.msra.mxu0 0
        %3092 = vmatprep.subr.bf16.mxu0 0
        %3093 = vmatpush1.bf16.msra.mxu0 0
        %3094 = vmatprep.subr.bf16.mxu0 0
        %3095 = vmatpush1.bf16.msra.mxu0 0
        %3096 = vmatprep.subr.bf16.mxu0 0
        %3097 = vmatpush1.bf16.msra.mxu0 0
        %3098 = vmatprep.mubr.bf16.mxu0 0
        %3099 = vmatmul.mubr.bf16.gmra.mrb[0].mxu0 %v3058
        %v3100 = vpop.f32.mrb[0].mxu0
        %v3101 = vadd.f32 %v3043, %v3100
        %v3102 = vpop.f32.mrb[0].mxu0
        %v3103 = vpop.f32.mrb[0].mxu0
        %v3104 = vadd.f32 %v3043, %v3103
        %v3105 = vpop.f32.mrb[0].mxu0
        %3106 = vmatprep.mubr.bf16.mxu0 0
        %3107 = vmatmul.mubr.bf16.gmra.mrb[0].mxu0 %v3061
        %v3108 = vpop.f32.mrb[0].mxu0
        %v3109 = vadd.f32 %v3043, %v3108
        %v3110 = vpop.f32.mrb[0].mxu0
        %v3111 = vpop.f32.mrb[0].mxu0
        %v3112 = vadd.f32 %v3043, %v3111
        %v3113 = vpop.f32.mrb[0].mxu0
        %3114 = vmatprep.mubr.bf16.mxu0 0
        %3115 = vmatmul.mubr.bf16.gmra.mrb[0].mxu0 %v3064
        %v3116 = vpop.f32.mrb[0].mxu0
        %v3117 = vadd.f32 %v3043, %v3116
        %v3118 = vpop.f32.mrb[0].mxu0
        %v3119 = vpop.f32.mrb[0].mxu0
        %v3120 = vadd.f32 %v3043, %v3119
        %v3121 = vpop.f32.mrb[0].mxu0
        %3122 = vdwg.mxu0
        %v3123 = vmul.f32 %v3101, -1.702
        %v3124 = vmul.f32 %v3104, -1.702
        %v3125 = vmul.f32 %v3109, -1.702
        %v3126 = vmul.f32 %v3112, -1.702
        %v3127 = vmul.f32 %v3117, -1.702
        %v3128 = vmul.f32 %v3120, -1.702
        %v3129 = vmul.f32 %v3123, 1.442695
        %v3130 = vpow.pop %v3129
        %v3131 = vmul.f32 %v3124, 1.442695
        %v3132 = vpow.pop %v3131
        %v3133 = vmul.f32 %v3125, 1.442695
        %v3134 = vpow.pop %v3133
        %v3135 = vmul.f32 %v3126, 1.442695
        %v3136 = vpow.pop %v3135
        %v3137 = vmul.f32 %v3127, 1.442695
        %v3138 = vpow.pop %v3137
        %v3139 = vmul.f32 %v3128, 1.442695
        %v3140 = vpow.pop %v3139
        %v3141 = vadd.f32 %v3130, 1.0
        %v3142 = vadd.f32 %v3132, 1.0
        %v3143 = vadd.f32 %v3134, 1.0
        %v3144 = vadd.f32 %v3136, 1.0
        %v3145 = vadd.f32 %v3138, 1.0
        %v3146 = vadd.f32 %v3140, 1.0
        %v3147 = vrcp.pop %v3141
        %v3148 = vmul.f32 1.0, %v3147
        %v3149 = vrcp.pop %v3142
        %v3150 = vmul.f32 1.0, %v3149
        %v3151 = vrcp.pop %v3143
        %v3152 = vmul.f32 1.0, %v3151
        %v3153 = vrcp.pop %v3144
        %v3154 = vmul.f32 1.0, %v3153
        %v3155 = vrcp.pop %v3145
        %v3156 = vmul.f32 1.0, %v3155
        %v3157 = vrcp.pop %v3146
        %v3158 = vmul.f32 1.0, %v3157
        %v3159 = vmul.f32 %v3101, %v3148
        %v3160 = vmul.f32 %v3104, %v3150
        %v3161 = vmul.f32 %v3109, %v3152
        %v3162 = vmul.f32 %v3112, %v3154
        %v3163 = vmul.f32 %v3117, %v3156
        %v3164 = vmul.f32 %v3120, %v3158
        %v3165 = vpack.c.bf16 %v3160, %v3159
        %v3166 = vpack.c.bf16 %v3162, %v3161
        %v3167 = vpack.c.bf16 %v3164, %v3163
        %v3168 = vld [vmem:[%s892] sm:$0xf]
        %v3169 = vld [vmem:[%s892 + $0x4] sm:$0xf]
        %v3170 = vld [vmem:[%s892 + $0x8] sm:$0xf]
        %v3171 = vld [vmem:[%s892 + $0xc] sm:$0xf]
        %v3172 = vld [vmem:[%s892 + $0x10] sm:$0xf]
        %v3173 = vld [vmem:[%s892 + $0x14] sm:$0xf]
        %v3174 = vld [vmem:[%s892 + $0x18] sm:$0xf]
        %v3175 = vld [vmem:[%s892 + $0x1c] sm:$0xf]
        %v3176 = vld [vmem:[%s892 + $0x20] sm:$0xf]
        %v3177 = vld [vmem:[%s892 + $0x24] sm:$0xf]
        %v3178 = vld [vmem:[%s892 + $0x28] sm:$0xf]
        %v3179 = vld [vmem:[%s892 + $0x2c] sm:$0xf]
        %v3180 = vld [vmem:[%s892 + $0x30] sm:$0xf]
        %v3181 = vld [vmem:[%s892 + $0x34] sm:$0xf]
        %v3182 = vld [vmem:[%s892 + $0x38] sm:$0xf]
        %v3183 = vld [vmem:[%s892 + $0x3c] sm:$0xf]
        %v3200 = vunpack.c.l.b16 %v3168
        %v3201 = vunpack.c.l.b16 %v3169
        %v3202 = vunpack.c.l.b16 %v3170
        %v3203 = vunpack.c.l.b16 %v3171
        %v3204 = vunpack.c.l.b16 %v3172
        %v3205 = vunpack.c.l.b16 %v3173
        %v3206 = vunpack.c.l.b16 %v3174
        %v3207 = vunpack.c.l.b16 %v3175
        %v3208 = vunpack.c.l.b16 %v3176
        %v3209 = vunpack.c.l.b16 %v3177
        %v3210 = vunpack.c.l.b16 %v3178
        %v3211 = vunpack.c.l.b16 %v3179
        %v3212 = vunpack.c.l.b16 %v3180
        %v3213 = vunpack.c.l.b16 %v3181
        %v3214 = vunpack.c.l.b16 %v3182
        %v3215 = vunpack.c.l.b16 %v3183
        %v3216 = vpack.c.b16 %v3201, %v3200
        %v3217 = vpack.c.b16 %v3203, %v3202
        %v3218 = vpack.c.b16 %v3205, %v3204
        %v3219 = vpack.c.b16 %v3207, %v3206
        %v3220 = vpack.c.b16 %v3209, %v3208
        %v3221 = vpack.c.b16 %v3211, %v3210
        %v3222 = vpack.c.b16 %v3213, %v3212
        %v3223 = vpack.c.b16 %v3215, %v3214
        %3232 = vmatprep.subr.bf16.mxu0 0
        %3233 = vmatpush1.bf16.msra.mxu0 %v3216
        %3234 = vmatprep.subr.bf16.mxu0 0
        %3235 = vmatpush1.bf16.msra.mxu0 %v3217
        %3236 = vmatprep.subr.bf16.mxu0 0
        %3237 = vmatpush1.bf16.msra.mxu0 %v3218
        %3238 = vmatprep.subr.bf16.mxu0 0
        %3239 = vmatpush1.bf16.msra.mxu0 %v3219
        %3240 = vmatprep.subr.bf16.mxu0 0
        %3241 = vmatpush1.bf16.msra.mxu0 %v3220
        %3242 = vmatprep.subr.bf16.mxu0 0
        %3243 = vmatpush1.bf16.msra.mxu0 %v3221
        %3244 = vmatprep.subr.bf16.mxu0 0
        %3245 = vmatpush1.bf16.msra.mxu0 %v3222
        %3246 = vmatprep.subr.bf16.mxu0 0
        %3247 = vmatpush1.bf16.msra.mxu0 %v3223
        %3248 = vmatprep.subr.bf16.mxu0 0
        %3249 = vmatpush1.bf16.msra.mxu0 0
        %3250 = vmatprep.subr.bf16.mxu0 0
        %3251 = vmatpush1.bf16.msra.mxu0 0
        %3252 = vmatprep.subr.bf16.mxu0 0
        %3253 = vmatpush1.bf16.msra.mxu0 0
        %3254 = vmatprep.subr.bf16.mxu0 0
        %3255 = vmatpush1.bf16.msra.mxu0 0
        %3256 = vmatprep.subr.bf16.mxu0 0
        %3257 = vmatpush1.bf16.msra.mxu0 0
        %3258 = vmatprep.subr.bf16.mxu0 0
        %3259 = vmatpush1.bf16.msra.mxu0 0
        %3260 = vmatprep.subr.bf16.mxu0 0
        %3261 = vmatpush1.bf16.msra.mxu0 0
        %3262 = vmatprep.subr.bf16.mxu0 0
        %3263 = vmatpush1.bf16.msra.mxu0 0
        %3264 = vmatprep.mubr.bf16.mxu0 0
        %3265 = vmatmul.mubr.bf16.gmra.mrb[0].mxu0 %v3165
        %v3266 = vpop.f32.mrb[0].mxu0
        %v3267 = vadd.f32 0.0, %v3266
        %v3268 = vpop.f32.mrb[0].mxu0
        %v3269 = vpop.f32.mrb[0].mxu0
        %v3270 = vadd.f32 0.0, %v3269
        %v3271 = vpop.f32.mrb[0].mxu0
        %3272 = vmatprep.mubr.bf16.mxu0 0
        %3273 = vmatmul.mubr.bf16.gmra.mrb[0].mxu0 %v3166
        %v3274 = vpop.f32.mrb[0].mxu0
        %v3275 = vadd.f32 0.0, %v3274
        %v3276 = vpop.f32.mrb[0].mxu0
        %v3277 = vpop.f32.mrb[0].mxu0
        %v3278 = vadd.f32 0.0, %v3277
        %v3279 = vpop.f32.mrb[0].mxu0
        %3280 = vmatprep.mubr.bf16.mxu0 0
        %3281 = vmatmul.mubr.bf16.gmra.mrb[0].mxu0 %v3167
        %v3282 = vpop.f32.mrb[0].mxu0
        %v3283 = vadd.f32 0.0, %v3282
        %v3284 = vpop.f32.mrb[0].mxu0
        %v3285 = vpop.f32.mrb[0].mxu0
        %v3286 = vadd.f32 0.0, %v3285
        %v3287 = vpop.f32.mrb[0].mxu0
        %3288 = vdwg.mxu0
        %v3289 = vadd.f32 %v2921, %v3267
        %v3290 = vadd.f32 %v2922, %v3270
        %v3291 = vadd.f32 %v2923, %v3275
        %v3292 = vadd.f32 %v2924, %v3278
        %v3293 = vadd.f32 %v2925, %v3283
        %v3294 = vadd.f32 %v2926, %v3286
        %v3295 = vld [vmem:[%s895] sm:$0x1]
        %v3297 = vlaneseq
        %v3298 = vshrl.u32 %v3297, 7
        %v3299 = vsub.s32 0, %v3298
        %v3300 = vrot.slane %v3295, %v3299
        %v3302 = vadd.f32 %v3289, %v3300
        %v3303 = vadd.f32 %v3290, %v3300
        %v3304 = vadd.f32 %v3291, %v3300
        %v3305 = vadd.f32 %v3292, %v3300
        %v3306 = vadd.f32 %v3293, %v3300
        %v3307 = vadd.f32 %v3294, %v3300
        %3308 = vst.msk [vmem:[#allocation2] sm:$0xff] %vm1167, %v3302
        %3309 = vst.msk [vmem:[#allocation2 + $0x8] sm:$0xff] %vm1167, %v3303
        %3310 = vst.msk [vmem:[#allocation2 + $0x10] sm:$0xff] %vm1167, %v3304
        %3311 = vst.msk [vmem:[#allocation2 + $0x18] sm:$0xff] %vm1167, %v3305
        %3312 = vst.msk [vmem:[#allocation2 + $0x20] sm:$0xff] %vm1167, %v3306
        %3313 = vst.msk [vmem:[#allocation2 + $0x28] sm:$0xff] %vm1167, %v3307
        %p3314 = scmp.eq.s32.totalorder %s36, 1
        // Predicated region
        $region121: #{clip_vision_forward.1} parent=115 // pred_check
          %p3315 = pneg %p3314
        $region122: #{clip_vision_forward.1} parent=115 // pred_check_branch
          %3317 = sbr.rel (%p3315) target = $region124
        $region123: #{clip_vision_forward.1} parent=115 // pred_region
          %v3318 = vld [vmem:[%s21] sm:$0x1]
          %v3319 = vld [vmem:[%s22] sm:$0x1]
          %v3322 = vrot.slane %v3305, 7
          %vm3323 = vcmask 1041409
          %v3324 = vsel %vm3323, %v3322, %v3302
          %vm3326 = vcmask 254976
          %v3327 = vsel %vm3326, %v3324, 0.0
          %3328 = vadd.xlane.f32.xlu0 %v3327
          %v3329 = vpop.xlane.xlu0 %3328
          %v3330 = vmul.f32 %v3329, %v1186
          %v3332 = vrot.slane %v3330, 1
          %v3335 = vsub.f32 %v3302, %v3330
          %v3336 = vsub.f32 %v3305, %v3332
          %v3337 = vmul.f32 %v3335, %v3335
          %v3338 = vmul.f32 %v3336, %v3336
          %v3341 = vrot.slane %v3338, 7
          %v3342 = vsel %vm3323, %v3341, %v3337
          %v3344 = vsel %vm3326, %v3342, 0.0
          %3345 = vadd.xlane.f32.xlu0 %v3344
          %v3346 = vpop.xlane.xlu0 %3345
          %v3347 = vmul.f32 %v3346, %v1186
          %v3348 = vadd.f32 %v3347, 1e-05
          %v3349 = vrsqrt.pop %v3348
          %v3351 = vrot.slane %v3349, 1
          %v3354 = vmul.f32 %v3335, %v3349
          %v3355 = vmul.f32 %v3336, %v3351
          %v3357 = vlaneseq
          %v3358 = vshrl.u32 %v3357, 7
          %v3359 = vsub.s32 0, %v3358
          %v3360 = vrot.slane %v3318, %v3359
          %v3362 = vmul.f32 %v3354, %v3360
          %v3363 = vmul.f32 %v3355, %v3360
          %v3365 = vlaneseq
          %v3366 = vshrl.u32 %v3365, 7
          %v3367 = vsub.s32 0, %v3366
          %v3368 = vrot.slane %v3319, %v3367
          %v3370 = vadd.f32 %v3362, %v3368
          %v3371 = vadd.f32 %v3363, %v3368
          %v3372 = vpack.c.bf16 %v3370, %v3370
          %v3373 = vpack.c.bf16 %v3371, %v3371
          %v3374 = vld [vmem:[%s23] sm:$0xf]
          %v3375 = vld [vmem:[%s23 + $0x4] sm:$0xf]
          %v3376 = vld [vmem:[%s23 + $0x8] sm:$0xf]
          %v3377 = vld [vmem:[%s23 + $0xc] sm:$0xf]
          %v3380 = vunpack.c.l.b16 %v3372
          %v3381 = vunpack.c.l.b16 %v3373
          %v3382 = vrot.slane %v3381, 7
          %v3383 = vsel %vm3323, %v3382, %v3380
          %v3384 = vpack.c.b16 %v3383, %v3383
          %v3389 = vunpack.c.l.b16 %v3374
          %v3390 = vunpack.c.l.b16 %v3375
          %v3391 = vunpack.c.l.b16 %v3376
          %v3392 = vunpack.c.l.b16 %v3377
          %v3393 = vpack.c.b16 %v3390, %v3389
          %v3394 = vpack.c.b16 %v3392, %v3391
          %v3398 = vsel %vm1167, %v3384, 0
          %3400 = vmatprep.subr.bf16.mxu0 0
          %3401 = vmatpush1.bf16.msra.mxu0 %v3393
          %3402 = vmatprep.subr.bf16.mxu0 0
          %3403 = vmatpush1.bf16.msra.mxu0 %v3394
          %3404 = vmatprep.subr.bf16.mxu0 0
          %3405 = vmatpush1.bf16.msra.mxu0 0
          %3406 = vmatprep.subr.bf16.mxu0 0
          %3407 = vmatpush1.bf16.msra.mxu0 0
          %3408 = vmatprep.subr.bf16.mxu0 0
          %3409 = vmatpush1.bf16.msra.mxu0 0
          %3410 = vmatprep.subr.bf16.mxu0 0
          %3411 = vmatpush1.bf16.msra.mxu0 0
          %3412 = vmatprep.subr.bf16.mxu0 0
          %3413 = vmatpush1.bf16.msra.mxu0 0
          %3414 = vmatprep.subr.bf16.mxu0 0
          %3415 = vmatpush1.bf16.msra.mxu0 0
          %3416 = vmatprep.subr.bf16.mxu0 0
          %3417 = vmatpush1.bf16.msra.mxu0 0
          %3418 = vmatprep.subr.bf16.mxu0 0
          %3419 = vmatpush1.bf16.msra.mxu0 0
          %3420 = vmatprep.subr.bf16.mxu0 0
          %3421 = vmatpush1.bf16.msra.mxu0 0
          %3422 = vmatprep.subr.bf16.mxu0 0
          %3423 = vmatpush1.bf16.msra.mxu0 0
          %3424 = vmatprep.subr.bf16.mxu0 0
          %3425 = vmatpush1.bf16.msra.mxu0 0
          %3426 = vmatprep.subr.bf16.mxu0 0
          %3427 = vmatpush1.bf16.msra.mxu0 0
          %3428 = vmatprep.subr.bf16.mxu0 0
          %3429 = vmatpush1.bf16.msra.mxu0 0
          %3430 = vmatprep.subr.bf16.mxu0 0
          %3431 = vmatpush1.bf16.msra.mxu0 0
          %3432 = vmatprep.mubr.bf16.mxu0 0
          %3433 = vmatmul.mubr.bf16.gmra.mrb[0].mxu0 %v3398
          %v3434 = vpop.f32.mrb[0].mxu0
          %v3435 = vadd.f32 0.0, %v3434
          %v3436 = vpop.f32.mrb[0].mxu0
          %v3437 = vpop.f32.mrb[0].mxu0
          %v3438 = vpop.f32.mrb[0].mxu0
          %3439 = vdwg.mxu0
          %vm3440 = vcmask 123904
          %3441 = vst.msk [vmem:[#allocation3] sm:$0x3] %vm3440, %v3435
        $region124: #{clip_vision_forward.1} parent=115 // pred_fallthru
          _
        // Predicated region
        $region125: #{clip_vision_forward.1} parent=115 // pred_check
          %p3442 = pneg %p613
        $region126: #{clip_vision_forward.1} parent=115 // pred_check_branch
          %3444 = sbr.rel (%p3442) target = $region128
        $region127: #{clip_vision_forward.1} parent=115 // pred_region
          %s3446 = ssub.s32 32, 32
          %3447 = vsyncadd [#allocation4], %s3446
          %s3449 = sshll.u32 [#allocation3], 4
          %s3450 = int_to_ptr.vmem [resolvable:$true] %s3449
          %3452 = dma.vmem_to_hbm [thread:$0]  %s3450, 32, %s24, [#allocation4]
        $region128: #{clip_vision_forward.1} parent=115 // pred_fallthru
          _
        // Predicated region
        $region129: #{clip_vision_forward.1} parent=115 // pred_check
          %p3453 = pneg %p613
        $region130: #{clip_vision_forward.1} parent=115 // pred_check_branch
          %3455 = sbr.rel (%p3453) target = $region132
        $region131: #{clip_vision_forward.1} parent=115 // pred_region
          %3456 = dma.done [#allocation4], 32
        $region132: #{clip_vision_forward.1} parent=115 // pred_fallthru
          _
      $region116: #{clip_vision_forward.1} parent=5 // pred_fallthru
        _
      %p3457 = scmp.le.s32.totalorder 2, %s31
      // Predicated region
      $region133: #{clip_vision_forward.1} parent=5 // pred_check
        %p3458 = pneg %p3457
      $region134: #{clip_vision_forward.1} parent=5 // pred_check_branch
        %3460 = sbr.rel (%p3458) target = $region136
      $region135: #{clip_vision_forward.1} parent=5 // pred_region
        %s3461 = ssub.s32 %s31, 2
      $region136: #{clip_vision_forward.1} parent=5 // pred_fallthru
        _
    $region6: #{clip_vision_forward.1} parent=1 // loop_footer
      %s35 = sadd.s32 1, %s31
    $region7: #{clip_vision_forward.1} parent=1 // loop_footer_branch
      %30 = sbr.rel target = $region3
    $region8: #{clip_vision_forward.1} parent=1 // loop_exit
      _
    %3462 = vsyncpa [#allocation4], 1
    %s3463 = scalar_lea.sflag [#allocation4], 1
    %3464 = vsyncpa %s3463, 1

</llo_original>
